<compile_context>
chip_gen: v7x
topology: tpu7x:2x2x1
jax: 0.10.0
libtpu: 0.0.40
codegen_flags: <defaults>
</compile_context>

<pallas_src>
import functools
import inspect
import math
import warnings

import jax
import jax.numpy as jnp
from jax.experimental import pallas as pl
from jax.experimental.pallas import tpu as pltpu

EPS = 1e-5


# ----------------------------------------------------------------------------
# Feature detection (done once; fallbacks warn instead of silently changing).
# ----------------------------------------------------------------------------
def _detect_features():
    try:
        pl.BlockSpec((8, 128), lambda i: (0, 0), pipeline_mode=pl.Buffered(1))
        has_buffered = True
    except Exception:
        has_buffered = False
    try:
        params = inspect.signature(pl.pallas_call).parameters
        has_cost = ("cost_estimate" in params or
                    any(p.kind is inspect.Parameter.VAR_KEYWORD
                        for p in params.values()))
    except (TypeError, ValueError):
        has_cost = True
    return has_buffered, has_cost


_HAS_BUFFERED, _HAS_COST = _detect_features()


# ----------------------------------------------------------------------------
# Kernel
# ----------------------------------------------------------------------------
def _long_term_interest_kernel(
    his_ref,   # (TB, S, D)  history tile, compute dtype (bf16 or f32)
    ut_ref,    # (TB, D) f32 BN(user_transform(user)) per batch row
    rb_ref,    # (TB, D) f32 per-row bias: ut @ (W1b - W1c) + b1
    Wl_ref,    # (D, D)      compute dtype   W_l
    W1s_ref,   # (2D, D)     compute dtype   vstack([W1a + W1c, W1d])
    w2_ref,    # (1, D)  f32 BN-folded final linear weight (row vector)
    b2_ref,    # (1, 1)  f32 BN-folded final linear bias
    out_ref,   # (TB, D) f32 z_l tile
    *, fuse_stage2, approx_softmax,
):
    TB, S, D = his_ref.shape
    f32 = jnp.float32
    mxu_dtype = Wl_ref.dtype

    his = his_ref[...]                                   # compute dtype
    his2 = his.reshape(TB * S, D)                        # fold batch into MXU M dim

    # h = his @ W_l   (M = TB*S rows, f32 accumulation)
    h2 = jnp.dot(his2, Wl_ref[...], preferred_element_type=f32)
    h3 = h2.reshape(TB, S, D)

    # prod = h * u  (u broadcast over the sequence axis), back to MXU dtype.
    prod2 = (h3 * ut_ref[...][:, None, :]).reshape(TB * S, D).astype(mxu_dtype)
    h2m = h2.astype(mxu_dtype)

    # Folded concat-matmul: cat @ W1 + b1 == h@(W1a+W1c) + (h*u)@W1d + rb
    if fuse_stage2:
        # D % 128 == 0: lane-aligned concat doubles the MXU K dim (K = 2D).
        z2 = jnp.dot(jnp.concatenate([h2m, prod2], axis=-1), W1s_ref[...],
                     preferred_element_type=f32)
    else:
        z2 = (jnp.dot(h2m, W1s_ref[:D, :], preferred_element_type=f32)
              + jnp.dot(prod2, W1s_ref[D:, :], preferred_element_type=f32))

    z3 = z2.reshape(TB, S, D) + rb_ref[...][:, None, :]
    z3 = jnp.maximum(z3, 0.0)                            # ReLU (BN folded into w2/b2)

    # Final Linear(D->1) with eval-mode BatchNorm folded into (w2_eff, b2_eff).
    alpha = jnp.sum(z3 * w2_ref[...][None, :, :], axis=-1) + b2_ref[...]  # (TB, S)

    # Softmax over the sequence axis (lanes), per batch row.
    m = jnp.max(alpha, axis=-1, keepdims=True)
    e = jnp.exp(alpha - m)
    denom = jnp.sum(e, axis=-1, keepdims=True)
    if approx_softmax:
        a = e * pl.reciprocal(denom, approx=True)        # EUP slot, effectively free
    else:
        a = e / denom                                    # exact path (f32 validation)

    # z_l = sum_s a[b,s] * his[b,s,:]  — VPU multiply + sublane (XLU) reduction,
    # replacing the previous M=1 batched-matmul einsum.
    out_ref[...] = jnp.sum(a[:, :, None] * his.astype(f32), axis=1).astype(out_ref.dtype)


# ----------------------------------------------------------------------------
# Tiling / wrapper
# ----------------------------------------------------------------------------
def _pick_block_b(batch, seq, dim, itemsize, target_bytes=2 << 20):
    """Pick the batch tile TB by byte budget (~2 MiB his tile), not row count.

    TB is a multiple of 8 dividing `batch` (so the (TB, D) per-row blocks obey
    the (8, 128) sublane rule), except when TB == batch.  When batch >= 16 TB
    is capped at batch // 2 so the grid has >= 2 steps and the "parallel" batch
    axis can shard across v7x's two TensorCores.
    """
    if batch <= 8:
        return batch
    row_bytes = max(seq * dim * itemsize, 1)
    want = max(8, target_bytes // row_bytes)
    if batch >= 16:
        want = min(want, batch // 2)
    want = int(min(want, batch))
    candidates = [tb for tb in range(8, batch + 1, 8) if batch % tb == 0]
    if not candidates:
        return batch          # batch not a multiple of 8: single full-batch tile
    fits = [tb for tb in candidates if tb <= want]
    return max(fits) if fits else min(candidates)


def long_term_interest_pallas(his, user, params, *, block_b=None,
                              compute_dtype=jnp.bfloat16):
    """his: (B, S, D), user: (B, E) -> z_l: (B, D) float32.

    `compute_dtype` is the dtype fed to the MXU for `his` and the large weights
    (bf16 by default). Bias path, softmax and all accumulations stay in f32.
    """
    B, S, D = his.shape
    W_l, Wu, bu, ubn, W1, b1, bn1, W2t, b2 = params
    f32 = jnp.float32

    # ---- host-side folding (plain XLA, once per call) -----------------------
    # user_transform + user_bn (eval mode) for the whole batch at once.
    ut = user.astype(f32) @ Wu.astype(f32) + bu.astype(f32)            # (B, D)
    ut = (ut - ubn[2]) * jax.lax.rsqrt(ubn[3] + EPS) * ubn[0] + ubn[1]

    # concat-matmul folding: cat @ W1 = h@(W1a+W1c) + u@(W1b-W1c) + (h*u)@W1d
    W1 = W1.astype(f32)
    W1a, W1b, W1c, W1d = W1[:D], W1[D:2 * D], W1[2 * D:3 * D], W1[3 * D:]
    rb = ut @ (W1b - W1c) + b1.astype(f32)                              # (B, D)
    W1s = jnp.concatenate([W1a + W1c, W1d], axis=0)                     # (2D, D)

    # Fold eval-mode mlp BatchNorm (Linear->ReLU->BN->Dropout->Linear) into
    # the final Linear(D -> 1).
    inv1 = jax.lax.rsqrt(bn1[3] + EPS)
    w2 = W2t[0].astype(f32)
    w2_eff = (w2 * bn1[0] * inv1)[None, :]                              # (1, D)
    b2_eff = (b2.astype(f32)[0, 0]
              + jnp.sum((bn1[1] - bn1[2] * bn1[0] * inv1) * w2)).reshape(1, 1)

    # MXU-facing tensors in compute dtype; everything else stays f32.
    his_c = his.astype(compute_dtype)
    Wl_c = W_l.astype(compute_dtype)
    W1s_c = W1s.astype(compute_dtype)
    itemsize = jnp.dtype(compute_dtype).itemsize

    # ---- grid / specs --------------------------------------------------------
    # Note: keep S a multiple of 8 so the in-kernel (TB,S,D)<->(TB*S,D) reshapes
    # are layout no-ops (no VMEM relayout copies).
    TB = _pick_block_b(B, S, D, itemsize) if block_b is None else block_b
    assert B % TB == 0, (B, TB)
    grid = (B // TB,)
    fuse_stage2 = (D % 128 == 0)
    approx_softmax = (jnp.dtype(compute_dtype) != jnp.dtype(jnp.float32))

    cost = None
    if _HAS_COST:
        cost = pl.CostEstimate(
            flops=int(6 * B * S * D * D + 10 * B * S * D),
            transcendentals=int(B * S + B),
            bytes_accessed=int(itemsize * (B * S * D + 3 * D * D)
                               + 4 * (3 * B * D + D + 1)),
        )

    kernel = functools.partial(_long_term_interest_kernel,
                               fuse_stage2=fuse_stage2,
                               approx_softmax=approx_softmax)

    def build(use_buffered, use_cost):
        def const_spec(shape):
            index_map = lambda i: (0,) * len(shape)
            if use_buffered:
                # Grid-invariant weights: single-buffered (halves their VMEM).
                return pl.BlockSpec(shape, index_map, pipeline_mode=pl.Buffered(1))
            return pl.BlockSpec(shape, index_map)

        # VMEM budget (v7x: 64 MiB physical / 32 MiB scoped default; v5e default
        # is only 16 MiB): double-buffered his tile + ~4 live f32 (TB*S, D)
        # temporaries + weights + per-row tiles, with 2x headroom.
        his_tile = TB * S * D * itemsize
        f32_tmp = 4 * TB * S * D * 4
        weights = 3 * D * D * itemsize + (D + 1) * 4
        row_io = 3 * 2 * TB * D * 4
        needed = 2 * his_tile + f32_tmp + weights * (1 if use_buffered else 2) + row_io
        vmem_limit = int(min(max(2 * needed, 32 << 20), 64 << 20))

        in_specs = [
            pl.BlockSpec((TB, S, D), lambda i: (i, 0, 0)),   # his tile
            pl.BlockSpec((TB, D), lambda i: (i, 0)),         # ut tile
            pl.BlockSpec((TB, D), lambda i: (i, 0)),         # row-bias tile
            const_spec((D, D)),                              # W_l
            const_spec((2 * D, D)),                          # [W1a+W1c ; W1d]
            const_spec((1, D)),                              # folded w2
            const_spec((1, 1)),                              # folded b2
        ]
        kwargs = dict(
            out_shape=jax.ShapeDtypeStruct((B, D), f32),
            grid=grid,
            in_specs=in_specs,
            out_specs=pl.BlockSpec((TB, D), lambda i: (i, 0)),
            compiler_params=pltpu.CompilerParams(
                dimension_semantics=("parallel",),
                vmem_limit_bytes=vmem_limit),
        )
        if use_cost and cost is not None:
            kwargs["cost_estimate"] = cost
        return pl.pallas_call(kernel, **kwargs)

    args = (his_c, ut, rb, Wl_c, W1s_c, w2_eff, b2_eff)

    attempts = []
    for ub in ([True, False] if _HAS_BUFFERED else [False]):
        for uc in ([True, False] if _HAS_COST else [False]):
            if (ub, uc) not in attempts:
                attempts.append((ub, uc))
    last_err = None
    for idx, (ub, uc) in enumerate(attempts):
        try:
            return build(ub, uc)(*args)
        except Exception as err:
            last_err = err
            if idx + 1 < len(attempts):
                warnings.warn(
                    f"pallas_call config (buffered={ub}, cost={uc}) failed with "
                    f"{type(err).__name__}: {err}; retrying {attempts[idx + 1]}")
    raise last_err


# ----------------------------------------------------------------------------
# Deterministic parameter initialization (mirrors __init__: xavier_uniform on
# the linear/W_l weights, PyTorch-default uniform biases, default BN stats).
# ----------------------------------------------------------------------------
def _xavier_uniform(key, shape_in_out):
    fan_in, fan_out = shape_in_out
    limit = math.sqrt(6.0 / (fan_in + fan_out))
    return jax.random.uniform(key, (fan_in, fan_out), jnp.float32, -limit, limit)


def init_params(key, combined_dim, embedding_dim):
    D, E = combined_dim, embedding_dim
    ks = jax.random.split(key, 8)
    W_l = _xavier_uniform(ks[0], (D, D))                       # (D, D)
    Wu = _xavier_uniform(ks[1], (E, D))                        # user_transform W^T
    bu = jax.random.uniform(ks[2], (1, D), jnp.float32,
                            -1.0 / math.sqrt(E), 1.0 / math.sqrt(E))
    ubn = jnp.stack([jnp.ones((D,)), jnp.zeros((D,)),
                     jnp.zeros((D,)), jnp.ones((D,))], axis=0).astype(jnp.float32)
    W1 = _xavier_uniform(ks[3], (4 * D, D))                    # mlp[0] weight^T
    b1 = jax.random.uniform(ks[4], (1, D), jnp.float32,
                            -1.0 / math.sqrt(4 * D), 1.0 / math.sqrt(4 * D))
    bn1 = jnp.stack([jnp.ones((D,)), jnp.zeros((D,)),
                     jnp.zeros((D,)), jnp.ones((D,))], axis=0).astype(jnp.float32)
    W2t = _xavier_uniform(ks[5], (D, 1)).T                     # (1, D)
    b2 = jax.random.uniform(ks[6], (1, 1), jnp.float32,
                            -1.0 / math.sqrt(D), 1.0 / math.sqrt(D))
    return (W_l, Wu, bu, ubn, W1, b1, bn1, W2t, b2)


def reference_forward(his, user, params):
    """Pure-JAX reference mirroring the PyTorch forward (eval mode), unfolded."""
    W_l, Wu, bu, ubn, W1, b1, bn1, W2t, b2 = params
    h = jnp.einsum('bsd,de->bse', his, W_l)
    ut = user @ Wu + bu[0]
    ut = (ut - ubn[2]) / jnp.sqrt(ubn[3] + EPS) * ubn[0] + ubn[1]
    ue = ut[:, None, :]
    cat = jnp.concatenate([h, jnp.broadcast_to(ue, h.shape), h - ue, h * ue], axis=-1)
    z1 = jnp.maximum(cat @ W1 + b1[0], 0.0)
    z1 = (z1 - bn1[2]) / jnp.sqrt(bn1[3] + EPS) * bn1[0] + bn1[1]
    alpha = jnp.sum(z1 * W2t[0], axis=-1) + b2[0, 0]           # (B, S)
    a = jax.nn.softmax(alpha, axis=1)
    return jnp.sum(a[..., None] * his, axis=1)


if __name__ == "__main__":
    key = jax.random.PRNGKey(0)
    (k_his, k_user, k_params, k_his2, k_user2,
     k_his3, k_user3, k_params3) = jax.random.split(key, 8)

    # --- small config: batch=4, seq=8, combined_dim=32, embedding_dim=16 -----
    B, S, D, E = 4, 8, 32, 16
    his = jax.random.normal(k_his, (B, S, D), jnp.float32)
    user = jax.random.normal(k_user, (B, E), jnp.float32)
    params = init_params(k_params, D, E)
    z_ref = reference_forward(his, user, params)

    # 1) exact-math validation: f32 compute path, tight tolerance.
    z_f32 = jax.block_until_ready(
        long_term_interest_pallas(his, user, params, compute_dtype=jnp.float32))
    assert z_f32.shape == (B, D)
    err = float(jnp.max(jnp.abs(z_f32 - z_ref)))
    assert jnp.allclose(z_f32, z_ref, atol=1e-4, rtol=1e-4), f"f32 max abs err={err}"

    # 2) default bf16 MXU path; loose tolerance for bf16 rounding only
    #    (semantics already validated tightly by the f32 path above).
    z_bf = jax.block_until_ready(long_term_interest_pallas(his, user, params))
    err = float(jnp.max(jnp.abs(z_bf - z_ref)))
    assert jnp.allclose(z_bf, z_ref, atol=1e-1, rtol=1e-1), f"bf16 max abs err={err}"

    # 3) larger batch forcing several grid steps (exercises batch tiling).
    B2 = 32
    his_b = jax.random.normal(k_his2, (B2, S, D), jnp.float32)
    user_b = jax.random.normal(k_user2, (B2, E), jnp.float32)
    z_b = jax.block_until_ready(
        long_term_interest_pallas(his_b, user_b, params, block_b=8))
    z_b_ref = reference_forward(his_b, user_b, params)
    err = float(jnp.max(jnp.abs(z_b - z_b_ref)))
    assert jnp.allclose(z_b, z_b_ref, atol=1e-1, rtol=1e-1), f"tiled max abs err={err}"

    # 4) D = 128 exercises the fused (K = 2D) stage-2 matmul path.
    B3, S3, D3 = 8, 16, 128
    his_d128 = jax.random.normal(k_his3, (B3, S3, D3), jnp.float32)
    user_d128 = jax.random.normal(k_user3, (B3, E), jnp.float32)
    params3 = init_params(k_params3, D3, E)
    z_c_ref = reference_forward(his_d128, user_d128, params3)
    z_c32 = jax.block_until_ready(
        long_term_interest_pallas(his_d128, user_d128, params3,
                                  compute_dtype=jnp.float32))
    err = float(jnp.max(jnp.abs(z_c32 - z_c_ref)))
    assert jnp.allclose(z_c32, z_c_ref, atol=1e-4, rtol=1e-4), f"fused f32 err={err}"
    z_c = jax.block_until_ready(
        long_term_interest_pallas(his_d128, user_d128, params3))
    err = float(jnp.max(jnp.abs(z_c - z_c_ref)))
    assert jnp.allclose(z_c, z_c_ref, atol=1e-1, rtol=1e-1), f"fused bf16 err={err}"

    print("KERNEL_OK")
</pallas_src>

<mosaic_0001>
module attributes {stable_mosaic.version = 11 : i64} {
  func.func @_long_term_interest_kernel(%arg0: i32, %arg1: memref<4x8x32xf32, #tpu.memory_space<vmem>>, %arg2: memref<4x32xf32, #tpu.memory_space<vmem>>, %arg3: memref<4x32xf32, #tpu.memory_space<vmem>>, %arg4: memref<32x32xf32, #tpu.memory_space<vmem>>, %arg5: memref<64x32xf32, #tpu.memory_space<vmem>>, %arg6: memref<1x32xf32, #tpu.memory_space<vmem>>, %arg7: memref<1x1xf32, #tpu.memory_space<vmem>>, %arg8: memref<4x32xf32, #tpu.memory_space<vmem>>) attributes {dimension_semantics = [#tpu.dimension_semantics<parallel>], iteration_bounds = array<i64: 1>, scalar_prefetch = 0 : i64, scratch_operands = 0 : i64, tpu.core_type = #tpu.core_type<tc>, window_params = [{transform_indices = @transform_0, window_bounds = array<i64: 4, 8, 32>}, {transform_indices = @transform_1, window_bounds = array<i64: 4, 32>}, {transform_indices = @transform_2, window_bounds = array<i64: 4, 32>}, {pipeline_mode = #tpu.pipeline_mode<synchronous>, transform_indices = @transform_3, window_bounds = array<i64: 32, 32>}, {pipeline_mode = #tpu.pipeline_mode<synchronous>, transform_indices = @transform_4, window_bounds = array<i64: 64, 32>}, {pipeline_mode = #tpu.pipeline_mode<synchronous>, transform_indices = @transform_5, window_bounds = array<i64: 1, 32>}, {pipeline_mode = #tpu.pipeline_mode<synchronous>, transform_indices = @transform_6, window_bounds = array<i64: 1, 1>}, {transform_indices = @transform_7, window_bounds = array<i64: 4, 32>}]} {
    %c0 = arith.constant 0 : index
    %c0_0 = arith.constant 0 : index
    %c0_1 = arith.constant 0 : index
    %0 = vector.load %arg1[%c0, %c0_0, %c0_1] : memref<4x8x32xf32, #tpu.memory_space<vmem>>, vector<4x8x32xf32>
    %1 = vector.shape_cast %0 : vector<4x8x32xf32> to vector<32x32xf32>
    %c0_2 = arith.constant 0 : index
    %c0_3 = arith.constant 0 : index
    %2 = vector.load %arg4[%c0_2, %c0_3] : memref<32x32xf32, #tpu.memory_space<vmem>>, vector<32x32xf32>
    %cst = arith.constant dense<0.000000e+00> : vector<32x32xf32>
    %3 = tpu.matmul %1, %2, %cst {dimension_numbers = #tpu.dot_dimension_numbers<[1], [0], [0], [1], [0, 0, 1, 1], [], []>} : vector<32x32xf32>, vector<32x32xf32>, vector<32x32xf32> -> vector<32x32xf32>
    %4 = vector.shape_cast %3 : vector<32x32xf32> to vector<4x8x32xf32>
    %c0_4 = arith.constant 0 : index
    %c0_5 = arith.constant 0 : index
    %5 = vector.load %arg2[%c0_4, %c0_5] : memref<4x32xf32, #tpu.memory_space<vmem>>, vector<4x32xf32>
    %6 = vector.shape_cast %5 : vector<4x32xf32> to vector<4x1x32xf32>
    %7 = vector.broadcast %6 : vector<4x1x32xf32> to vector<4x8x32xf32>
    %8 = arith.mulf %4, %7 : vector<4x8x32xf32>
    %9 = vector.shape_cast %8 : vector<4x8x32xf32> to vector<32x32xf32>
    %c0_6 = arith.constant 0 : index
    %c0_7 = arith.constant 0 : index
    %10 = vector.load %arg5[%c0_6, %c0_7] : memref<64x32xf32, #tpu.memory_space<vmem>>, vector<32x32xf32>
    %cst_8 = arith.constant dense<0.000000e+00> : vector<32x32xf32>
    %11 = tpu.matmul %3, %10, %cst_8 {dimension_numbers = #tpu.dot_dimension_numbers<[1], [0], [0], [1], [0, 0, 1, 1], [], []>} : vector<32x32xf32>, vector<32x32xf32>, vector<32x32xf32> -> vector<32x32xf32>
    %c32 = arith.constant 32 : index
    %c0_9 = arith.constant 0 : index
    %12 = vector.load %arg5[%c32, %c0_9] : memref<64x32xf32, #tpu.memory_space<vmem>>, vector<32x32xf32>
    %cst_10 = arith.constant dense<0.000000e+00> : vector<32x32xf32>
    %13 = tpu.matmul %9, %12, %cst_10 {dimension_numbers = #tpu.dot_dimension_numbers<[1], [0], [0], [1], [0, 0, 1, 1], [], []>} : vector<32x32xf32>, vector<32x32xf32>, vector<32x32xf32> -> vector<32x32xf32>
    %14 = arith.addf %11, %13 : vector<32x32xf32>
    %15 = vector.shape_cast %14 : vector<32x32xf32> to vector<4x8x32xf32>
    %c0_11 = arith.constant 0 : index
    %c0_12 = arith.constant 0 : index
    %16 = vector.load %arg3[%c0_11, %c0_12] : memref<4x32xf32, #tpu.memory_space<vmem>>, vector<4x32xf32>
    %17 = vector.shape_cast %16 : vector<4x32xf32> to vector<4x1x32xf32>
    %18 = vector.broadcast %17 : vector<4x1x32xf32> to vector<4x8x32xf32>
    %19 = arith.addf %15, %18 : vector<4x8x32xf32>
    %cst_13 = arith.constant 0.000000e+00 : f32
    %20 = vector.broadcast %cst_13 : f32 to vector<4x8x32xf32>
    %21 = arith.maximumf %19, %20 : vector<4x8x32xf32>
    %c0_14 = arith.constant 0 : index
    %c0_15 = arith.constant 0 : index
    %22 = vector.load %arg6[%c0_14, %c0_15] : memref<1x32xf32, #tpu.memory_space<vmem>>, vector<1x32xf32>
    %23 = vector.shape_cast %22 : vector<1x32xf32> to vector<1x1x32xf32>
    %24 = vector.broadcast %23 : vector<1x1x32xf32> to vector<4x8x32xf32>
    %25 = arith.mulf %21, %24 : vector<4x8x32xf32>
    %cst_16 = arith.constant dense<0.000000e+00> : vector<4x8xf32>
    %26 = vector.multi_reduction <add>, %25, %cst_16 [2] : vector<4x8x32xf32> to vector<4x8xf32>
    %c0_17 = arith.constant 0 : index
    %c0_18 = arith.constant 0 : index
    %27 = vector.load %arg7[%c0_17, %c0_18] : memref<1x1xf32, #tpu.memory_space<vmem>>, vector<1x1xf32>
    %28 = vector.broadcast %27 : vector<1x1xf32> to vector<4x8xf32>
    %29 = arith.addf %26, %28 : vector<4x8xf32>
    %cst_19 = arith.constant dense<0xFF800000> : vector<4xf32>
    %30 = vector.multi_reduction <maximumf>, %29, %cst_19 [1] : vector<4x8xf32> to vector<4xf32>
    %31 = vector.shape_cast %30 : vector<4xf32> to vector<4x1xf32>
    %32 = vector.broadcast %31 : vector<4x1xf32> to vector<4x8xf32>
    %33 = arith.subf %29, %32 : vector<4x8xf32>
    %34 = math.exp %33 : vector<4x8xf32>
    %cst_20 = arith.constant dense<0.000000e+00> : vector<4xf32>
    %35 = vector.multi_reduction <add>, %34, %cst_20 [1] : vector<4x8xf32> to vector<4xf32>
    %36 = vector.shape_cast %35 : vector<4xf32> to vector<4x1xf32>
    %37 = vector.broadcast %36 : vector<4x1xf32> to vector<4x8xf32>
    %38 = arith.divf %34, %37 : vector<4x8xf32>
    %39 = vector.shape_cast %38 : vector<4x8xf32> to vector<4x8x1xf32>
    %40 = vector.broadcast %39 : vector<4x8x1xf32> to vector<4x8x32xf32>
    %41 = arith.mulf %40, %0 : vector<4x8x32xf32>
    %cst_21 = arith.constant dense<0.000000e+00> : vector<4x32xf32>
    %42 = vector.multi_reduction <add>, %41, %cst_21 [1] : vector<4x8x32xf32> to vector<4x32xf32>
    %c0_22 = arith.constant 0 : index
    %c0_23 = arith.constant 0 : index
    %43 = vector.load %arg8[%c0_22, %c0_23] : memref<4x32xf32, #tpu.memory_space<vmem>>, vector<4x32xf32>
    tpu.vector_store %arg8[%c0_22, %c0_23], %42 {strides = array<i32>} : memref<4x32xf32, #tpu.memory_space<vmem>>, vector<4x32xf32>,
    return
  }
  func.func @transform_0(%arg0: i32) -> (i32, i32, i32) {
    %c0_i32 = arith.constant 0 : i32
    %c0_i32_0 = arith.constant 0 : i32
    %c0_i32_1 = arith.constant 0 : i32
    return %arg0, %c0_i32, %c0_i32_0 : i32, i32, i32
  }
  func.func @transform_1(%arg0: i32) -> (i32, i32) {
    %c0_i32 = arith.constant 0 : i32
    %c0_i32_0 = arith.constant 0 : i32
    return %arg0, %c0_i32 : i32, i32
  }
  func.func @transform_2(%arg0: i32) -> (i32, i32) {
    %c0_i32 = arith.constant 0 : i32
    %c0_i32_0 = arith.constant 0 : i32
    return %arg0, %c0_i32 : i32, i32
  }
  func.func @transform_3(%arg0: i32) -> (i32, i32) {
    %c0_i32 = arith.constant 0 : i32
    %c0_i32_0 = arith.constant 0 : i32
    %c0_i32_1 = arith.constant 0 : i32
    return %c0_i32, %c0_i32_0 : i32, i32
  }
  func.func @transform_4(%arg0: i32) -> (i32, i32) {
    %c0_i32 = arith.constant 0 : i32
    %c0_i32_0 = arith.constant 0 : i32
    %c0_i32_1 = arith.constant 0 : i32
    return %c0_i32, %c0_i32_0 : i32, i32
  }
  func.func @transform_5(%arg0: i32) -> (i32, i32) {
    %c0_i32 = arith.constant 0 : i32
    %c0_i32_0 = arith.constant 0 : i32
    %c0_i32_1 = arith.constant 0 : i32
    return %c0_i32, %c0_i32_0 : i32, i32
  }
  func.func @transform_6(%arg0: i32) -> (i32, i32) {
    %c0_i32 = arith.constant 0 : i32
    %c0_i32_0 = arith.constant 0 : i32
    %c0_i32_1 = arith.constant 0 : i32
    return %c0_i32, %c0_i32_0 : i32, i32
  }
  func.func @transform_7(%arg0: i32) -> (i32, i32) {
    %c0_i32 = arith.constant 0 : i32
    %c0_i32_0 = arith.constant 0 : i32
    return %arg0, %c0_i32 : i32, i32
  }
}

module attributes {stable_mosaic.version = 11 : i64} {
  func.func @_long_term_interest_kernel(%arg0: i32, %arg1: memref<4x8x32xf32, #tpu.memory_space<vmem>>, %arg2: memref<4x32xf32, #tpu.memory_space<vmem>>, %arg3: memref<4x32xf32, #tpu.memory_space<vmem>>, %arg4: memref<32x32xf32, #tpu.memory_space<vmem>>, %arg5: memref<64x32xf32, #tpu.memory_space<vmem>>, %arg6: memref<1x32xf32, #tpu.memory_space<vmem>>, %arg7: memref<1x1xf32, #tpu.memory_space<vmem>>, %arg8: memref<4x32xf32, #tpu.memory_space<vmem>>) attributes {dimension_semantics = [#tpu.dimension_semantics<parallel>], iteration_bounds = array<i64: 1>, scalar_prefetch = 0 : i64, scratch_operands = 0 : i64, tpu.core_type = #tpu.core_type<tc>, window_params = [{transform_indices = @transform_0, window_bounds = array<i64: 4, 8, 32>}, {transform_indices = @transform_1, window_bounds = array<i64: 4, 32>}, {transform_indices = @transform_2, window_bounds = array<i64: 4, 32>}, {pipeline_mode = #tpu.pipeline_mode<synchronous>, transform_indices = @transform_3, window_bounds = array<i64: 32, 32>}, {pipeline_mode = #tpu.pipeline_mode<synchronous>, transform_indices = @transform_4, window_bounds = array<i64: 64, 32>}, {pipeline_mode = #tpu.pipeline_mode<synchronous>, transform_indices = @transform_5, window_bounds = array<i64: 1, 32>}, {pipeline_mode = #tpu.pipeline_mode<synchronous>, transform_indices = @transform_6, window_bounds = array<i64: 1, 1>}, {transform_indices = @transform_7, window_bounds = array<i64: 4, 32>}]} {
    %c0 = arith.constant 0 : index
    %c0_0 = arith.constant 0 : index
    %c0_1 = arith.constant 0 : index
    %0 = vector.load %arg1[%c0, %c0_0, %c0_1] : memref<4x8x32xf32, #tpu.memory_space<vmem>>, vector<4x8x32xf32>
    %1 = vector.shape_cast %0 : vector<4x8x32xf32> to vector<32x32xf32>
    %c0_2 = arith.constant 0 : index
    %c0_3 = arith.constant 0 : index
    %2 = vector.load %arg4[%c0_2, %c0_3] : memref<32x32xf32, #tpu.memory_space<vmem>>, vector<32x32xf32>
    %cst = arith.constant dense<0.000000e+00> : vector<32x32xf32>
    %3 = tpu.matmul %1, %2, %cst {dimension_numbers = #tpu.dot_dimension_numbers<[1], [0], [0], [1], [0, 0, 1, 1], [], []>} : vector<32x32xf32>, vector<32x32xf32>, vector<32x32xf32> -> vector<32x32xf32>
    %4 = vector.shape_cast %3 : vector<32x32xf32> to vector<4x8x32xf32>
    %c0_4 = arith.constant 0 : index
    %c0_5 = arith.constant 0 : index
    %5 = vector.load %arg2[%c0_4, %c0_5] : memref<4x32xf32, #tpu.memory_space<vmem>>, vector<4x32xf32>
    %6 = vector.shape_cast %5 : vector<4x32xf32> to vector<4x1x32xf32>
    %7 = vector.broadcast %6 : vector<4x1x32xf32> to vector<4x8x32xf32>
    %8 = arith.mulf %4, %7 : vector<4x8x32xf32>
    %9 = vector.shape_cast %8 : vector<4x8x32xf32> to vector<32x32xf32>
    %c0_6 = arith.constant 0 : index
    %c0_7 = arith.constant 0 : index
    %10 = vector.load %arg5[%c0_6, %c0_7] : memref<64x32xf32, #tpu.memory_space<vmem>>, vector<32x32xf32>
    %cst_8 = arith.constant dense<0.000000e+00> : vector<32x32xf32>
    %11 = tpu.matmul %3, %10, %cst_8 {dimension_numbers = #tpu.dot_dimension_numbers<[1], [0], [0], [1], [0, 0, 1, 1], [], []>} : vector<32x32xf32>, vector<32x32xf32>, vector<32x32xf32> -> vector<32x32xf32>
    %c32 = arith.constant 32 : index
    %c0_9 = arith.constant 0 : index
    %12 = vector.load %arg5[%c32, %c0_9] : memref<64x32xf32, #tpu.memory_space<vmem>>, vector<32x32xf32>
    %cst_10 = arith.constant dense<0.000000e+00> : vector<32x32xf32>
    %13 = tpu.matmul %9, %12, %cst_10 {dimension_numbers = #tpu.dot_dimension_numbers<[1], [0], [0], [1], [0, 0, 1, 1], [], []>} : vector<32x32xf32>, vector<32x32xf32>, vector<32x32xf32> -> vector<32x32xf32>
    %14 = arith.addf %11, %13 : vector<32x32xf32>
    %15 = vector.shape_cast %14 : vector<32x32xf32> to vector<4x8x32xf32>
    %c0_11 = arith.constant 0 : index
    %c0_12 = arith.constant 0 : index
    %16 = vector.load %arg3[%c0_11, %c0_12] : memref<4x32xf32, #tpu.memory_space<vmem>>, vector<4x32xf32>
    %17 = vector.shape_cast %16 : vector<4x32xf32> to vector<4x1x32xf32>
    %18 = vector.broadcast %17 : vector<4x1x32xf32> to vector<4x8x32xf32>
    %19 = arith.addf %15, %18 : vector<4x8x32xf32>
    %cst_13 = arith.constant 0.000000e+00 : f32
    %20 = vector.broadcast %cst_13 : f32 to vector<4x8x32xf32>
    %21 = arith.maximumf %19, %20 : vector<4x8x32xf32>
    %c0_14 = arith.constant 0 : index
    %c0_15 = arith.constant 0 : index
    %22 = vector.load %arg6[%c0_14, %c0_15] : memref<1x32xf32, #tpu.memory_space<vmem>>, vector<1x32xf32>
    %23 = vector.shape_cast %22 : vector<1x32xf32> to vector<1x1x32xf32>
    %24 = vector.broadcast %23 : vector<1x1x32xf32> to vector<4x8x32xf32>
    %25 = arith.mulf %21, %24 : vector<4x8x32xf32>
    %cst_16 = arith.constant dense<0.000000e+00> : vector<4x8xf32>
    %26 = vector.multi_reduction <add>, %25, %cst_16 [2] : vector<4x8x32xf32> to vector<4x8xf32>
    %c0_17 = arith.constant 0 : index
    %c0_18 = arith.constant 0 : index
    %27 = vector.load %arg7[%c0_17, %c0_18] : memref<1x1xf32, #tpu.memory_space<vmem>>, vector<1x1xf32>
    %28 = vector.broadcast %27 : vector<1x1xf32> to vector<4x8xf32>
    %29 = arith.addf %26, %28 : vector<4x8xf32>
    %cst_19 = arith.constant dense<0xFF800000> : vector<4xf32>
    %30 = vector.multi_reduction <maximumf>, %29, %cst_19 [1] : vector<4x8xf32> to vector<4xf32>
    %31 = vector.shape_cast %30 : vector<4xf32> to vector<4x1xf32>
    %32 = vector.broadcast %31 : vector<4x1xf32> to vector<4x8xf32>
    %33 = arith.subf %29, %32 : vector<4x8xf32>
    %34 = math.exp %33 : vector<4x8xf32>
    %cst_20 = arith.constant dense<0.000000e+00> : vector<4xf32>
    %35 = vector.multi_reduction <add>, %34, %cst_20 [1] : vector<4x8xf32> to vector<4xf32>
    %36 = vector.shape_cast %35 : vector<4xf32> to vector<4x1xf32>
    %37 = vector.broadcast %36 : vector<4x1xf32> to vector<4x8xf32>
    %38 = arith.divf %34, %37 : vector<4x8xf32>
    %39 = vector.shape_cast %38 : vector<4x8xf32> to vector<4x8x1xf32>
    %40 = vector.broadcast %39 : vector<4x8x1xf32> to vector<4x8x32xf32>
    %41 = arith.mulf %40, %0 : vector<4x8x32xf32>
    %cst_21 = arith.constant dense<0.000000e+00> : vector<4x32xf32>
    %42 = vector.multi_reduction <add>, %41, %cst_21 [1] : vector<4x8x32xf32> to vector<4x32xf32>
    %c0_22 = arith.constant 0 : index
    %c0_23 = arith.constant 0 : index
    %43 = vector.load %arg8[%c0_22, %c0_23] : memref<4x32xf32, #tpu.memory_space<vmem>>, vector<4x32xf32>
    tpu.vector_store %arg8[%c0_22, %c0_23], %42 {strides = array<i32>} : memref<4x32xf32, #tpu.memory_space<vmem>>, vector<4x32xf32>,
    return
  }
  func.func @transform_0(%arg0: i32) -> (i32, i32, i32) {
    %c0_i32 = arith.constant 0 : i32
    %c0_i32_0 = arith.constant 0 : i32
    %c0_i32_1 = arith.constant 0 : i32
    return %arg0, %c0_i32, %c0_i32_0 : i32, i32, i32
  }
  func.func @transform_1(%arg0: i32) -> (i32, i32) {
    %c0_i32 = arith.constant 0 : i32
    %c0_i32_0 = arith.constant 0 : i32
    return %arg0, %c0_i32 : i32, i32
  }
  func.func @transform_2(%arg0: i32) -> (i32, i32) {
    %c0_i32 = arith.constant 0 : i32
    %c0_i32_0 = arith.constant 0 : i32
    return %arg0, %c0_i32 : i32, i32
  }
  func.func @transform_3(%arg0: i32) -> (i32, i32) {
    %c0_i32 = arith.constant 0 : i32
    %c0_i32_0 = arith.constant 0 : i32
    %c0_i32_1 = arith.constant 0 : i32
    return %c0_i32, %c0_i32_0 : i32, i32
  }
  func.func @transform_4(%arg0: i32) -> (i32, i32) {
    %c0_i32 = arith.constant 0 : i32
    %c0_i32_0 = arith.constant 0 : i32
    %c0_i32_1 = arith.constant 0 : i32
    return %c0_i32, %c0_i32_0 : i32, i32
  }
  func.func @transform_5(%arg0: i32) -> (i32, i32) {
    %c0_i32 = arith.constant 0 : i32
    %c0_i32_0 = arith.constant 0 : i32
    %c0_i32_1 = arith.constant 0 : i32
    return %c0_i32, %c0_i32_0 : i32, i32
  }
  func.func @transform_6(%arg0: i32) -> (i32, i32) {
    %c0_i32 = arith.constant 0 : i32
    %c0_i32_0 = arith.constant 0 : i32
    %c0_i32_1 = arith.constant 0 : i32
    return %c0_i32, %c0_i32_0 : i32, i32
  }
  func.func @transform_7(%arg0: i32) -> (i32, i32) {
    %c0_i32 = arith.constant 0 : i32
    %c0_i32_0 = arith.constant 0 : i32
    return %arg0, %c0_i32 : i32, i32
  }
}

module attributes {stable_mosaic.version = 11 : i64} {
  func.func @_long_term_interest_kernel(%arg0: i32, %arg1: memref<4x8x32xf32, #tpu.memory_space<vmem>>, %arg2: memref<4x32xf32, #tpu.memory_space<vmem>>, %arg3: memref<4x32xf32, #tpu.memory_space<vmem>>, %arg4: memref<32x32xf32, #tpu.memory_space<vmem>>, %arg5: memref<64x32xf32, #tpu.memory_space<vmem>>, %arg6: memref<1x32xf32, #tpu.memory_space<vmem>>, %arg7: memref<1x1xf32, #tpu.memory_space<vmem>>, %arg8: memref<4x32xf32, #tpu.memory_space<vmem>>) attributes {dimension_semantics = [#tpu.dimension_semantics<parallel>], iteration_bounds = array<i64: 1>, scalar_prefetch = 0 : i64, scratch_operands = 0 : i64, tpu.core_type = #tpu.core_type<tc>, window_params = [{transform_indices = @transform_0, window_bounds = array<i64: 4, 8, 32>}, {transform_indices = @transform_1, window_bounds = array<i64: 4, 32>}, {transform_indices = @transform_2, window_bounds = array<i64: 4, 32>}, {pipeline_mode = #tpu.pipeline_mode<synchronous>, transform_indices = @transform_3, window_bounds = array<i64: 32, 32>}, {pipeline_mode = #tpu.pipeline_mode<synchronous>, transform_indices = @transform_4, window_bounds = array<i64: 64, 32>}, {pipeline_mode = #tpu.pipeline_mode<synchronous>, transform_indices = @transform_5, window_bounds = array<i64: 1, 32>}, {pipeline_mode = #tpu.pipeline_mode<synchronous>, transform_indices = @transform_6, window_bounds = array<i64: 1, 1>}, {transform_indices = @transform_7, window_bounds = array<i64: 4, 32>}]} {
    %c0 = arith.constant 0 : index
    %c0_0 = arith.constant 0 : index
    %c0_1 = arith.constant 0 : index
    %0 = vector.load %arg1[%c0, %c0_0, %c0_1] : memref<4x8x32xf32, #tpu.memory_space<vmem>>, vector<4x8x32xf32>
    %1 = vector.shape_cast %0 : vector<4x8x32xf32> to vector<32x32xf32>
    %c0_2 = arith.constant 0 : index
    %c0_3 = arith.constant 0 : index
    %2 = vector.load %arg4[%c0_2, %c0_3] : memref<32x32xf32, #tpu.memory_space<vmem>>, vector<32x32xf32>
    %cst = arith.constant dense<0.000000e+00> : vector<32x32xf32>
    %3 = tpu.matmul %1, %2, %cst {dimension_numbers = #tpu.dot_dimension_numbers<[1], [0], [0], [1], [0, 0, 1, 1], [], []>} : vector<32x32xf32>, vector<32x32xf32>, vector<32x32xf32> -> vector<32x32xf32>
    %4 = vector.shape_cast %3 : vector<32x32xf32> to vector<4x8x32xf32>
    %c0_4 = arith.constant 0 : index
    %c0_5 = arith.constant 0 : index
    %5 = vector.load %arg2[%c0_4, %c0_5] : memref<4x32xf32, #tpu.memory_space<vmem>>, vector<4x32xf32>
    %6 = vector.shape_cast %5 : vector<4x32xf32> to vector<4x1x32xf32>
    %7 = vector.broadcast %6 : vector<4x1x32xf32> to vector<4x8x32xf32>
    %8 = arith.mulf %4, %7 : vector<4x8x32xf32>
    %9 = vector.shape_cast %8 : vector<4x8x32xf32> to vector<32x32xf32>
    %c0_6 = arith.constant 0 : index
    %c0_7 = arith.constant 0 : index
    %10 = vector.load %arg5[%c0_6, %c0_7] : memref<64x32xf32, #tpu.memory_space<vmem>>, vector<32x32xf32>
    %cst_8 = arith.constant dense<0.000000e+00> : vector<32x32xf32>
    %11 = tpu.matmul %3, %10, %cst_8 {dimension_numbers = #tpu.dot_dimension_numbers<[1], [0], [0], [1], [0, 0, 1, 1], [], []>} : vector<32x32xf32>, vector<32x32xf32>, vector<32x32xf32> -> vector<32x32xf32>
    %c32 = arith.constant 32 : index
    %c0_9 = arith.constant 0 : index
    %12 = vector.load %arg5[%c32, %c0_9] : memref<64x32xf32, #tpu.memory_space<vmem>>, vector<32x32xf32>
    %cst_10 = arith.constant dense<0.000000e+00> : vector<32x32xf32>
    %13 = tpu.matmul %9, %12, %cst_10 {dimension_numbers = #tpu.dot_dimension_numbers<[1], [0], [0], [1], [0, 0, 1, 1], [], []>} : vector<32x32xf32>, vector<32x32xf32>, vector<32x32xf32> -> vector<32x32xf32>
    %14 = arith.addf %11, %13 : vector<32x32xf32>
    %15 = vector.shape_cast %14 : vector<32x32xf32> to vector<4x8x32xf32>
    %c0_11 = arith.constant 0 : index
    %c0_12 = arith.constant 0 : index
    %16 = vector.load %arg3[%c0_11, %c0_12] : memref<4x32xf32, #tpu.memory_space<vmem>>, vector<4x32xf32>
    %17 = vector.shape_cast %16 : vector<4x32xf32> to vector<4x1x32xf32>
    %18 = vector.broadcast %17 : vector<4x1x32xf32> to vector<4x8x32xf32>
    %19 = arith.addf %15, %18 : vector<4x8x32xf32>
    %cst_13 = arith.constant 0.000000e+00 : f32
    %20 = vector.broadcast %cst_13 : f32 to vector<4x8x32xf32>
    %21 = arith.maximumf %19, %20 : vector<4x8x32xf32>
    %c0_14 = arith.constant 0 : index
    %c0_15 = arith.constant 0 : index
    %22 = vector.load %arg6[%c0_14, %c0_15] : memref<1x32xf32, #tpu.memory_space<vmem>>, vector<1x32xf32>
    %23 = vector.shape_cast %22 : vector<1x32xf32> to vector<1x1x32xf32>
    %24 = vector.broadcast %23 : vector<1x1x32xf32> to vector<4x8x32xf32>
    %25 = arith.mulf %21, %24 : vector<4x8x32xf32>
    %cst_16 = arith.constant dense<0.000000e+00> : vector<4x8xf32>
    %26 = vector.multi_reduction <add>, %25, %cst_16 [2] : vector<4x8x32xf32> to vector<4x8xf32>
    %c0_17 = arith.constant 0 : index
    %c0_18 = arith.constant 0 : index
    %27 = vector.load %arg7[%c0_17, %c0_18] : memref<1x1xf32, #tpu.memory_space<vmem>>, vector<1x1xf32>
    %28 = vector.broadcast %27 : vector<1x1xf32> to vector<4x8xf32>
    %29 = arith.addf %26, %28 : vector<4x8xf32>
    %cst_19 = arith.constant dense<0xFF800000> : vector<4xf32>
    %30 = vector.multi_reduction <maximumf>, %29, %cst_19 [1] : vector<4x8xf32> to vector<4xf32>
    %31 = vector.shape_cast %30 : vector<4xf32> to vector<4x1xf32>
    %32 = vector.broadcast %31 : vector<4x1xf32> to vector<4x8xf32>
    %33 = arith.subf %29, %32 : vector<4x8xf32>
    %34 = math.exp %33 : vector<4x8xf32>
    %cst_20 = arith.constant dense<0.000000e+00> : vector<4xf32>
    %35 = vector.multi_reduction <add>, %34, %cst_20 [1] : vector<4x8xf32> to vector<4xf32>
    %36 = vector.shape_cast %35 : vector<4xf32> to vector<4x1xf32>
    %37 = vector.broadcast %36 : vector<4x1xf32> to vector<4x8xf32>
    %38 = arith.divf %34, %37 : vector<4x8xf32>
    %39 = vector.shape_cast %38 : vector<4x8xf32> to vector<4x8x1xf32>
    %40 = vector.broadcast %39 : vector<4x8x1xf32> to vector<4x8x32xf32>
    %41 = arith.mulf %40, %0 : vector<4x8x32xf32>
    %cst_21 = arith.constant dense<0.000000e+00> : vector<4x32xf32>
    %42 = vector.multi_reduction <add>, %41, %cst_21 [1] : vector<4x8x32xf32> to vector<4x32xf32>
    %c0_22 = arith.constant 0 : index
    %c0_23 = arith.constant 0 : index
    %43 = vector.load %arg8[%c0_22, %c0_23] : memref<4x32xf32, #tpu.memory_space<vmem>>, vector<4x32xf32>
    tpu.vector_store %arg8[%c0_22, %c0_23], %42 {strides = array<i32>} : memref<4x32xf32, #tpu.memory_space<vmem>>, vector<4x32xf32>,
    return
  }
  func.func @transform_0(%arg0: i32) -> (i32, i32, i32) {
    %c0_i32 = arith.constant 0 : i32
    %c0_i32_0 = arith.constant 0 : i32
    %c0_i32_1 = arith.constant 0 : i32
    return %arg0, %c0_i32, %c0_i32_0 : i32, i32, i32
  }
  func.func @transform_1(%arg0: i32) -> (i32, i32) {
    %c0_i32 = arith.constant 0 : i32
    %c0_i32_0 = arith.constant 0 : i32
    return %arg0, %c0_i32 : i32, i32
  }
  func.func @transform_2(%arg0: i32) -> (i32, i32) {
    %c0_i32 = arith.constant 0 : i32
    %c0_i32_0 = arith.constant 0 : i32
    return %arg0, %c0_i32 : i32, i32
  }
  func.func @transform_3(%arg0: i32) -> (i32, i32) {
    %c0_i32 = arith.constant 0 : i32
    %c0_i32_0 = arith.constant 0 : i32
    %c0_i32_1 = arith.constant 0 : i32
    return %c0_i32, %c0_i32_0 : i32, i32
  }
  func.func @transform_4(%arg0: i32) -> (i32, i32) {
    %c0_i32 = arith.constant 0 : i32
    %c0_i32_0 = arith.constant 0 : i32
    %c0_i32_1 = arith.constant 0 : i32
    return %c0_i32, %c0_i32_0 : i32, i32
  }
  func.func @transform_5(%arg0: i32) -> (i32, i32) {
    %c0_i32 = arith.constant 0 : i32
    %c0_i32_0 = arith.constant 0 : i32
    %c0_i32_1 = arith.constant 0 : i32
    return %c0_i32, %c0_i32_0 : i32, i32
  }
  func.func @transform_6(%arg0: i32) -> (i32, i32) {
    %c0_i32 = arith.constant 0 : i32
    %c0_i32_0 = arith.constant 0 : i32
    %c0_i32_1 = arith.constant 0 : i32
    return %c0_i32, %c0_i32_0 : i32, i32
  }
  func.func @transform_7(%arg0: i32) -> (i32, i32) {
    %c0_i32 = arith.constant 0 : i32
    %c0_i32_0 = arith.constant 0 : i32
    return %arg0, %c0_i32 : i32, i32
  }
}

module attributes {stable_mosaic.version = 11 : i64} {
  func.func @_long_term_interest_kernel(%arg0: i32, %arg1: memref<4x8x32xf32, #tpu.memory_space<vmem>>, %arg2: memref<4x32xf32, #tpu.memory_space<vmem>>, %arg3: memref<4x32xf32, #tpu.memory_space<vmem>>, %arg4: memref<32x32xf32, #tpu.memory_space<vmem>>, %arg5: memref<64x32xf32, #tpu.memory_space<vmem>>, %arg6: memref<1x32xf32, #tpu.memory_space<vmem>>, %arg7: memref<1x1xf32, #tpu.memory_space<vmem>>, %arg8: memref<4x32xf32, #tpu.memory_space<vmem>>) attributes {dimension_semantics = [#tpu.dimension_semantics<parallel>], iteration_bounds = array<i64: 1>, scalar_prefetch = 0 : i64, scratch_operands = 0 : i64, tpu.core_type = #tpu.core_type<tc>, window_params = [{transform_indices = @transform_0, window_bounds = array<i64: 4, 8, 32>}, {transform_indices = @transform_1, window_bounds = array<i64: 4, 32>}, {transform_indices = @transform_2, window_bounds = array<i64: 4, 32>}, {pipeline_mode = #tpu.pipeline_mode<synchronous>, transform_indices = @transform_3, window_bounds = array<i64: 32, 32>}, {pipeline_mode = #tpu.pipeline_mode<synchronous>, transform_indices = @transform_4, window_bounds = array<i64: 64, 32>}, {pipeline_mode = #tpu.pipeline_mode<synchronous>, transform_indices = @transform_5, window_bounds = array<i64: 1, 32>}, {pipeline_mode = #tpu.pipeline_mode<synchronous>, transform_indices = @transform_6, window_bounds = array<i64: 1, 1>}, {transform_indices = @transform_7, window_bounds = array<i64: 4, 32>}]} {
    %c0 = arith.constant 0 : index
    %c0_0 = arith.constant 0 : index
    %c0_1 = arith.constant 0 : index
    %0 = vector.load %arg1[%c0, %c0_0, %c0_1] : memref<4x8x32xf32, #tpu.memory_space<vmem>>, vector<4x8x32xf32>
    %1 = vector.shape_cast %0 : vector<4x8x32xf32> to vector<32x32xf32>
    %c0_2 = arith.constant 0 : index
    %c0_3 = arith.constant 0 : index
    %2 = vector.load %arg4[%c0_2, %c0_3] : memref<32x32xf32, #tpu.memory_space<vmem>>, vector<32x32xf32>
    %cst = arith.constant dense<0.000000e+00> : vector<32x32xf32>
    %3 = tpu.matmul %1, %2, %cst {dimension_numbers = #tpu.dot_dimension_numbers<[1], [0], [0], [1], [0, 0, 1, 1], [], []>} : vector<32x32xf32>, vector<32x32xf32>, vector<32x32xf32> -> vector<32x32xf32>
    %4 = vector.shape_cast %3 : vector<32x32xf32> to vector<4x8x32xf32>
    %c0_4 = arith.constant 0 : index
    %c0_5 = arith.constant 0 : index
    %5 = vector.load %arg2[%c0_4, %c0_5] : memref<4x32xf32, #tpu.memory_space<vmem>>, vector<4x32xf32>
    %6 = vector.shape_cast %5 : vector<4x32xf32> to vector<4x1x32xf32>
    %7 = vector.broadcast %6 : vector<4x1x32xf32> to vector<4x8x32xf32>
    %8 = arith.mulf %4, %7 : vector<4x8x32xf32>
    %9 = vector.shape_cast %8 : vector<4x8x32xf32> to vector<32x32xf32>
    %c0_6 = arith.constant 0 : index
    %c0_7 = arith.constant 0 : index
    %10 = vector.load %arg5[%c0_6, %c0_7] : memref<64x32xf32, #tpu.memory_space<vmem>>, vector<32x32xf32>
    %cst_8 = arith.constant dense<0.000000e+00> : vector<32x32xf32>
    %11 = tpu.matmul %3, %10, %cst_8 {dimension_numbers = #tpu.dot_dimension_numbers<[1], [0], [0], [1], [0, 0, 1, 1], [], []>} : vector<32x32xf32>, vector<32x32xf32>, vector<32x32xf32> -> vector<32x32xf32>
    %c32 = arith.constant 32 : index
    %c0_9 = arith.constant 0 : index
    %12 = vector.load %arg5[%c32, %c0_9] : memref<64x32xf32, #tpu.memory_space<vmem>>, vector<32x32xf32>
    %cst_10 = arith.constant dense<0.000000e+00> : vector<32x32xf32>
    %13 = tpu.matmul %9, %12, %cst_10 {dimension_numbers = #tpu.dot_dimension_numbers<[1], [0], [0], [1], [0, 0, 1, 1], [], []>} : vector<32x32xf32>, vector<32x32xf32>, vector<32x32xf32> -> vector<32x32xf32>
    %14 = arith.addf %11, %13 : vector<32x32xf32>
    %15 = vector.shape_cast %14 : vector<32x32xf32> to vector<4x8x32xf32>
    %c0_11 = arith.constant 0 : index
    %c0_12 = arith.constant 0 : index
    %16 = vector.load %arg3[%c0_11, %c0_12] : memref<4x32xf32, #tpu.memory_space<vmem>>, vector<4x32xf32>
    %17 = vector.shape_cast %16 : vector<4x32xf32> to vector<4x1x32xf32>
    %18 = vector.broadcast %17 : vector<4x1x32xf32> to vector<4x8x32xf32>
    %19 = arith.addf %15, %18 : vector<4x8x32xf32>
    %cst_13 = arith.constant 0.000000e+00 : f32
    %20 = vector.broadcast %cst_13 : f32 to vector<4x8x32xf32>
    %21 = arith.maximumf %19, %20 : vector<4x8x32xf32>
    %c0_14 = arith.constant 0 : index
    %c0_15 = arith.constant 0 : index
    %22 = vector.load %arg6[%c0_14, %c0_15] : memref<1x32xf32, #tpu.memory_space<vmem>>, vector<1x32xf32>
    %23 = vector.shape_cast %22 : vector<1x32xf32> to vector<1x1x32xf32>
    %24 = vector.broadcast %23 : vector<1x1x32xf32> to vector<4x8x32xf32>
    %25 = arith.mulf %21, %24 : vector<4x8x32xf32>
    %cst_16 = arith.constant dense<0.000000e+00> : vector<4x8xf32>
    %26 = vector.multi_reduction <add>, %25, %cst_16 [2] : vector<4x8x32xf32> to vector<4x8xf32>
    %c0_17 = arith.constant 0 : index
    %c0_18 = arith.constant 0 : index
    %27 = vector.load %arg7[%c0_17, %c0_18] : memref<1x1xf32, #tpu.memory_space<vmem>>, vector<1x1xf32>
    %28 = vector.broadcast %27 : vector<1x1xf32> to vector<4x8xf32>
    %29 = arith.addf %26, %28 : vector<4x8xf32>
    %cst_19 = arith.constant dense<0xFF800000> : vector<4xf32>
    %30 = vector.multi_reduction <maximumf>, %29, %cst_19 [1] : vector<4x8xf32> to vector<4xf32>
    %31 = vector.shape_cast %30 : vector<4xf32> to vector<4x1xf32>
    %32 = vector.broadcast %31 : vector<4x1xf32> to vector<4x8xf32>
    %33 = arith.subf %29, %32 : vector<4x8xf32>
    %34 = math.exp %33 : vector<4x8xf32>
    %cst_20 = arith.constant dense<0.000000e+00> : vector<4xf32>
    %35 = vector.multi_reduction <add>, %34, %cst_20 [1] : vector<4x8xf32> to vector<4xf32>
    %36 = vector.shape_cast %35 : vector<4xf32> to vector<4x1xf32>
    %37 = vector.broadcast %36 : vector<4x1xf32> to vector<4x8xf32>
    %38 = arith.divf %34, %37 : vector<4x8xf32>
    %39 = vector.shape_cast %38 : vector<4x8xf32> to vector<4x8x1xf32>
    %40 = vector.broadcast %39 : vector<4x8x1xf32> to vector<4x8x32xf32>
    %41 = arith.mulf %40, %0 : vector<4x8x32xf32>
    %cst_21 = arith.constant dense<0.000000e+00> : vector<4x32xf32>
    %42 = vector.multi_reduction <add>, %41, %cst_21 [1] : vector<4x8x32xf32> to vector<4x32xf32>
    %c0_22 = arith.constant 0 : index
    %c0_23 = arith.constant 0 : index
    %43 = vector.load %arg8[%c0_22, %c0_23] : memref<4x32xf32, #tpu.memory_space<vmem>>, vector<4x32xf32>
    tpu.vector_store %arg8[%c0_22, %c0_23], %42 {strides = array<i32>} : memref<4x32xf32, #tpu.memory_space<vmem>>, vector<4x32xf32>,
    return
  }
  func.func @transform_0(%arg0: i32) -> (i32, i32, i32) {
    %c0_i32 = arith.constant 0 : i32
    %c0_i32_0 = arith.constant 0 : i32
    %c0_i32_1 = arith.constant 0 : i32
    return %arg0, %c0_i32, %c0_i32_0 : i32, i32, i32
  }
  func.func @transform_1(%arg0: i32) -> (i32, i32) {
    %c0_i32 = arith.constant 0 : i32
    %c0_i32_0 = arith.constant 0 : i32
    return %arg0, %c0_i32 : i32, i32
  }
  func.func @transform_2(%arg0: i32) -> (i32, i32) {
    %c0_i32 = arith.constant 0 : i32
    %c0_i32_0 = arith.constant 0 : i32
    return %arg0, %c0_i32 : i32, i32
  }
  func.func @transform_3(%arg0: i32) -> (i32, i32) {
    %c0_i32 = arith.constant 0 : i32
    %c0_i32_0 = arith.constant 0 : i32
    %c0_i32_1 = arith.constant 0 : i32
    return %c0_i32, %c0_i32_0 : i32, i32
  }
  func.func @transform_4(%arg0: i32) -> (i32, i32) {
    %c0_i32 = arith.constant 0 : i32
    %c0_i32_0 = arith.constant 0 : i32
    %c0_i32_1 = arith.constant 0 : i32
    return %c0_i32, %c0_i32_0 : i32, i32
  }
  func.func @transform_5(%arg0: i32) -> (i32, i32) {
    %c0_i32 = arith.constant 0 : i32
    %c0_i32_0 = arith.constant 0 : i32
    %c0_i32_1 = arith.constant 0 : i32
    return %c0_i32, %c0_i32_0 : i32, i32
  }
  func.func @transform_6(%arg0: i32) -> (i32, i32) {
    %c0_i32 = arith.constant 0 : i32
    %c0_i32_0 = arith.constant 0 : i32
    %c0_i32_1 = arith.constant 0 : i32
    return %c0_i32, %c0_i32_0 : i32, i32
  }
  func.func @transform_7(%arg0: i32) -> (i32, i32) {
    %c0_i32 = arith.constant 0 : i32
    %c0_i32_0 = arith.constant 0 : i32
    return %arg0, %c0_i32 : i32, i32
  }
}

</mosaic_0001>

<llo_original>
// kernel: tpu_custom_call.1
$region0: #{tpu_custom_call.1}
  #allocation0 [shape = 'u32[]', space=smem, size = 0x4, offset = 0x4, fixed_abs, tag = 'smem constant byte address 0x4 - core index']
  #allocation1 [shape = 'u32[144,128]{1,0:T(1,128)}', space=vmem, size = 0x12000, scoped, tag = 'internal scratch']
  #allocation2 [shape = 'f32[1,1]{1,0:T(1,128)S(1)}', space=vmem, size = 0x200, scoped, tag = 'scoped memory for tpu_custom_call.1']
  %s0 = inlined_call_operand.vmem [shape: f32[4,8,32], index: 0, kind: input, shape index: {}]
  %s1 = inlined_call_operand.vmem [shape: f32[4,32], index: 1, kind: input, shape index: {}]
  %s2 = inlined_call_operand.vmem [shape: f32[4,32], index: 2, kind: input, shape index: {}]
  %s3 = inlined_call_operand.vmem [shape: f32[32,32], index: 3, kind: input, shape index: {}]
  %s4 = inlined_call_operand.vmem [shape: f32[64,32], index: 4, kind: input, shape index: {}]
  %s5 = inlined_call_operand.vmem [shape: f32[1,32], index: 5, kind: input, shape index: {}]
  %s6 = inlined_call_operand.<no memory space> [shape: f32[1,1], index: 6, kind: input, shape index: {}]
  %s7 = inlined_call_operand.hbm [shape: f32[4,32], index: 7, kind: output, shape index: {}]
  %s8 = sld [smem:[#allocation0]]
  $region38: #{tpu_custom_call.1} parent=0
    _
  %s10 = ssub.s32 1, %s8
  %s11 = scalar_select 0, %s10, %s8
  %v12 = vstv %s6
  %13 = vst [vmem:[#allocation2] sm:$0x1] %v12
  $region1: #{tpu_custom_call.1} parent=0
    #allocation3 [shape = 'u8[2048]{0}', space=vmem, size = 0x800, scoped, tag = 'output window, operand 0, single buffered']
    #allocation4 [shape = 's32[1]{0}', space=sflag, size = 0x4, scoped, tag = 'scoped memory for tpu_custom_call.1']
    %14 = vsyncpa [#allocation4], 0
    // Predicated region
    $region2: #{tpu_custom_call.1} parent=1 // pred_check
      _
    $region3: #{tpu_custom_call.1} parent=1 // pred_check_branch
      %16 = sbr.rel (0) target = $region5
    $region4: #{tpu_custom_call.1} parent=1 // pred_region
      _
    $region5: #{tpu_custom_call.1} parent=1 // pred_fallthru
      _
    // Predicated region
    $region6: #{tpu_custom_call.1} parent=1 // pred_check
      _
    $region7: #{tpu_custom_call.1} parent=1 // pred_check_branch
      %18 = sbr.rel (0) target = $region9
    $region8: #{tpu_custom_call.1} parent=1 // pred_region
      _
    $region9: #{tpu_custom_call.1} parent=1 // pred_fallthru
      _
    // Predicated region
    $region10: #{tpu_custom_call.1} parent=1 // pred_check
      _
    $region11: #{tpu_custom_call.1} parent=1 // pred_check_branch
      %20 = sbr.rel (0) target = $region13
    $region12: #{tpu_custom_call.1} parent=1 // pred_region
      _
    $region13: #{tpu_custom_call.1} parent=1 // pred_fallthru
      _
    // Predicated region
    $region14: #{tpu_custom_call.1} parent=1 // pred_check
      _
    $region15: #{tpu_custom_call.1} parent=1 // pred_check_branch
      %22 = sbr.rel (0) target = $region17
    $region16: #{tpu_custom_call.1} parent=1 // pred_region
      _
    $region17: #{tpu_custom_call.1} parent=1 // pred_fallthru
      _
    // Predicated region
    $region18: #{tpu_custom_call.1} parent=1 // pred_check
      _
    $region19: #{tpu_custom_call.1} parent=1 // pred_check_branch
      %24 = sbr.rel (0) target = $region21
    $region20: #{tpu_custom_call.1} parent=1 // pred_region
      _
    $region21: #{tpu_custom_call.1} parent=1 // pred_fallthru
      _
    // Predicated region
    $region22: #{tpu_custom_call.1} parent=1 // pred_check
      _
    $region23: #{tpu_custom_call.1} parent=1 // pred_check_branch
      %26 = sbr.rel (0) target = $region25
    $region24: #{tpu_custom_call.1} parent=1 // pred_region
      _
    $region25: #{tpu_custom_call.1} parent=1 // pred_fallthru
      _
    // Predicated region
    $region26: #{tpu_custom_call.1} parent=1 // pred_check
      _
    $region27: #{tpu_custom_call.1} parent=1 // pred_check_branch
      %28 = sbr.rel (0) target = $region29
    $region28: #{tpu_custom_call.1} parent=1 // pred_region
      _
    $region29: #{tpu_custom_call.1} parent=1 // pred_fallthru
      _
    %v29 = vld [vmem:[%s0] sm:$0xff]
    %v30 = vld [vmem:[%s0 + $0x8] sm:$0xff]
    %v31 = vld [vmem:[%s0 + $0x10] sm:$0xff]
    %v32 = vld [vmem:[%s0 + $0x18] sm:$0xff]
    %v33 = vld [vmem:[%s3] sm:$0xff]
    %v34 = vld [vmem:[%s3 + $0x8] sm:$0xff]
    %v35 = vld [vmem:[%s3 + $0x10] sm:$0xff]
    %v36 = vld [vmem:[%s3 + $0x18] sm:$0xff]
    %vm37 = vcmask 261120
    %v39 = vsel %vm37, %v29, 0
    %v42 = vsel %vm37, %v30, 0
    %v45 = vsel %vm37, %v31, 0
    %v48 = vsel %vm37, %v32, 0
    %50 = vmatprep.subr.mxu0 0.0
    %51 = vmatpush1.msra.mxu0 %v33
    %52 = vmatprep.subr.mxu0 0.0
    %53 = vmatpush1.msra.mxu0 %v34
    %54 = vmatprep.subr.mxu0 0.0
    %55 = vmatpush1.msra.mxu0 %v35
    %56 = vmatprep.subr.mxu0 0.0
    %57 = vmatpush1.msra.mxu0 %v36
    %58 = vmatprep.subr.mxu0 0.0
    %59 = vmatpush1.msra.mxu0 0.0
    %60 = vmatprep.subr.mxu0 0.0
    %61 = vmatpush1.msra.mxu0 0.0
    %62 = vmatprep.subr.mxu0 0.0
    %63 = vmatpush1.msra.mxu0 0.0
    %64 = vmatprep.subr.mxu0 0.0
    %65 = vmatpush1.msra.mxu0 0.0
    %66 = vmatprep.subr.mxu0 0.0
    %67 = vmatpush1.msra.mxu0 0.0
    %68 = vmatprep.subr.mxu0 0.0
    %69 = vmatpush1.msra.mxu0 0.0
    %70 = vmatprep.subr.mxu0 0.0
    %71 = vmatpush1.msra.mxu0 0.0
    %72 = vmatprep.subr.mxu0 0.0
    %73 = vmatpush1.msra.mxu0 0.0
    %74 = vmatprep.subr.mxu0 0.0
    %75 = vmatpush1.msra.mxu0 0.0
    %76 = vmatprep.subr.mxu0 0.0
    %77 = vmatpush1.msra.mxu0 0.0
    %78 = vmatprep.subr.mxu0 0.0
    %79 = vmatpush1.msra.mxu0 0.0
    %80 = vmatprep.subr.mxu0 0.0
    %81 = vmatpush1.msra.mxu0 0.0
    %82 = vmatprep.subr.mxu0 0.0
    %83 = vmatpush1.msra.mxu0 0.0
    %84 = vmatprep.subr.mxu0 0.0
    %85 = vmatpush1.msra.mxu0 0.0
    %86 = vmatprep.subr.mxu0 0.0
    %87 = vmatpush1.msra.mxu0 0.0
    %88 = vmatprep.subr.mxu0 0.0
    %89 = vmatpush1.msra.mxu0 0.0
    %90 = vmatprep.subr.mxu0 0.0
    %91 = vmatpush1.msra.mxu0 0.0
    %92 = vmatprep.subr.mxu0 0.0
    %93 = vmatpush1.msra.mxu0 0.0
    %94 = vmatprep.subr.mxu0 0.0
    %95 = vmatpush1.msra.mxu0 0.0
    %96 = vmatprep.subr.mxu0 0.0
    %97 = vmatpush1.msra.mxu0 0.0
    %98 = vmatprep.subr.mxu0 0.0
    %99 = vmatpush1.msra.mxu0 0.0
    %100 = vmatprep.subr.mxu0 0.0
    %101 = vmatpush1.msra.mxu0 0.0
    %102 = vmatprep.subr.mxu0 0.0
    %103 = vmatpush1.msra.mxu0 0.0
    %104 = vmatprep.subr.mxu0 0.0
    %105 = vmatpush1.msra.mxu0 0.0
    %106 = vmatprep.subr.mxu0 0.0
    %107 = vmatpush1.msra.mxu0 0.0
    %108 = vmatprep.subr.mxu0 0.0
    %109 = vmatpush1.msra.mxu0 0.0
    %110 = vmatprep.subr.mxu0 0.0
    %111 = vmatpush1.msra.mxu0 0.0
    %112 = vmatprep.subr.mxu0 0.0
    %113 = vmatpush1.msra.mxu0 0.0
    %114 = vmatprep.mubr.f32.mxu0 0.0
    %115 = vmatmul.mubr.f32.gmra.mrb[0].mxu0 %v39
    %v116 = vpop.f32.mrb[0].mxu0
    %v117 = vadd.f32 0.0, %v116
    %v118 = vpop.f32.mrb[0].mxu0
    %119 = vmatprep.mubr.f32.mxu0 0.0
    %120 = vmatmul.mubr.f32.gmra.mrb[0].mxu0 %v42
    %v121 = vpop.f32.mrb[0].mxu0
    %v122 = vadd.f32 0.0, %v121
    %v123 = vpop.f32.mrb[0].mxu0
    %124 = vmatprep.mubr.f32.mxu0 0.0
    %125 = vmatmul.mubr.f32.gmra.mrb[0].mxu0 %v45
    %v126 = vpop.f32.mrb[0].mxu0
    %v127 = vadd.f32 0.0, %v126
    %v128 = vpop.f32.mrb[0].mxu0
    %129 = vmatprep.mubr.f32.mxu0 0.0
    %130 = vmatmul.mubr.f32.gmra.mrb[0].mxu0 %v48
    %v131 = vpop.f32.mrb[0].mxu0
    %v132 = vadd.f32 0.0, %v131
    %v133 = vpop.f32.mrb[0].mxu0
    %134 = vdwg.mxu0
    %v135 = vld [vmem:[%s1] sm:$0xf]
    %v138 = vunpack.c.l.s4 1966171168
    %v139 = vunpack.c.0.s8 %v138
    %v140 = vlaneseq
    %v141 = vshrl.u32 %v140, 7
    %v142 = vsub.s32 %v139, %v141
    %v143 = vrot.slane %v135, %v142
    %v144 = vcombine.high %v143, %v143
    %v146 = vunpack.c.l.s4 1966171168
    %v147 = vunpack.c.0.s8 %v146
    %v148 = vlaneseq
    %v149 = vshrl.u32 %v148, 7
    %v150 = vsub.s32 %v147, %v149
    %v151 = vrot.slane %v143, %v150
    %v153 = vunpack.c.l.s4 1966171168
    %v154 = vunpack.c.0.s8 %v153
    %v155 = vlaneseq
    %v156 = vshrl.u32 %v155, 7
    %v157 = vsub.s32 %v154, %v156
    %v158 = vrot.slane %v144, %v157
    %v159 = vcombine.high %v151, %v151
    %v160 = vcombine.high %v158, %v158
    %v161 = vlaneseq
    %v162 = vshrl.u32 %v161, 7
    %v163 = vsub.s32 0, %v162
    %v164 = vrot.slane %v151, %v163
    %v165 = vlaneseq
    %v166 = vshrl.u32 %v165, 7
    %v167 = vsub.s32 0, %v166
    %v168 = vrot.slane %v158, %v167
    %v169 = vlaneseq
    %v170 = vshrl.u32 %v169, 7
    %v171 = vsub.s32 0, %v170
    %v172 = vrot.slane %v159, %v171
    %v173 = vlaneseq
    %v174 = vshrl.u32 %v173, 7
    %v175 = vsub.s32 0, %v174
    %v176 = vrot.slane %v160, %v175
    %v181 = vmul.f32 %v117, %v164
    %v182 = vmul.f32 %v122, %v168
    %v183 = vmul.f32 %v127, %v172
    %v184 = vmul.f32 %v132, %v176
    %v185 = vld [vmem:[%s4] sm:$0xff]
    %v186 = vld [vmem:[%s4 + $0x8] sm:$0xff]
    %v187 = vld [vmem:[%s4 + $0x10] sm:$0xff]
    %v188 = vld [vmem:[%s4 + $0x18] sm:$0xff]
    %v189 = vld [vmem:[%s4 + $0x20] sm:$0xff]
    %v190 = vld [vmem:[%s4 + $0x28] sm:$0xff]
    %v191 = vld [vmem:[%s4 + $0x30] sm:$0xff]
    %v192 = vld [vmem:[%s4 + $0x38] sm:$0xff]
    %v194 = vsel %vm37, %v181, 0
    %v197 = vsel %vm37, %v182, 0
    %v200 = vsel %vm37, %v183, 0
    %v203 = vsel %vm37, %v184, 0
    %205 = vmatprep.subr.mxu0 0.0
    %206 = vmatpush1.msra.mxu0 %v189
    %207 = vmatprep.subr.mxu0 0.0
    %208 = vmatpush1.msra.mxu0 %v190
    %209 = vmatprep.subr.mxu0 0.0
    %210 = vmatpush1.msra.mxu0 %v191
    %211 = vmatprep.subr.mxu0 0.0
    %212 = vmatpush1.msra.mxu0 %v192
    %213 = vmatprep.subr.mxu0 0.0
    %214 = vmatpush1.msra.mxu0 0.0
    %215 = vmatprep.subr.mxu0 0.0
    %216 = vmatpush1.msra.mxu0 0.0
    %217 = vmatprep.subr.mxu0 0.0
    %218 = vmatpush1.msra.mxu0 0.0
    %219 = vmatprep.subr.mxu0 0.0
    %220 = vmatpush1.msra.mxu0 0.0
    %221 = vmatprep.subr.mxu0 0.0
    %222 = vmatpush1.msra.mxu0 0.0
    %223 = vmatprep.subr.mxu0 0.0
    %224 = vmatpush1.msra.mxu0 0.0
    %225 = vmatprep.subr.mxu0 0.0
    %226 = vmatpush1.msra.mxu0 0.0
    %227 = vmatprep.subr.mxu0 0.0
    %228 = vmatpush1.msra.mxu0 0.0
    %229 = vmatprep.subr.mxu0 0.0
    %230 = vmatpush1.msra.mxu0 0.0
    %231 = vmatprep.subr.mxu0 0.0
    %232 = vmatpush1.msra.mxu0 0.0
    %233 = vmatprep.subr.mxu0 0.0
    %234 = vmatpush1.msra.mxu0 0.0
    %235 = vmatprep.subr.mxu0 0.0
    %236 = vmatpush1.msra.mxu0 0.0
    %237 = vmatprep.subr.mxu0 0.0
    %238 = vmatpush1.msra.mxu0 0.0
    %239 = vmatprep.subr.mxu0 0.0
    %240 = vmatpush1.msra.mxu0 0.0
    %241 = vmatprep.subr.mxu0 0.0
    %242 = vmatpush1.msra.mxu0 0.0
    %243 = vmatprep.subr.mxu0 0.0
    %244 = vmatpush1.msra.mxu0 0.0
    %245 = vmatprep.subr.mxu0 0.0
    %246 = vmatpush1.msra.mxu0 0.0
    %247 = vmatprep.subr.mxu0 0.0
    %248 = vmatpush1.msra.mxu0 0.0
    %249 = vmatprep.subr.mxu0 0.0
    %250 = vmatpush1.msra.mxu0 0.0
    %251 = vmatprep.subr.mxu0 0.0
    %252 = vmatpush1.msra.mxu0 0.0
    %253 = vmatprep.subr.mxu0 0.0
    %254 = vmatpush1.msra.mxu0 0.0
    %255 = vmatprep.subr.mxu0 0.0
    %256 = vmatpush1.msra.mxu0 0.0
    %257 = vmatprep.subr.mxu0 0.0
    %258 = vmatpush1.msra.mxu0 0.0
    %259 = vmatprep.subr.mxu0 0.0
    %260 = vmatpush1.msra.mxu0 0.0
    %261 = vmatprep.subr.mxu0 0.0
    %262 = vmatpush1.msra.mxu0 0.0
    %263 = vmatprep.subr.mxu0 0.0
    %264 = vmatpush1.msra.mxu0 0.0
    %265 = vmatprep.subr.mxu0 0.0
    %266 = vmatpush1.msra.mxu0 0.0
    %267 = vmatprep.subr.mxu0 0.0
    %268 = vmatpush1.msra.mxu0 0.0
    %269 = vmatprep.mubr.f32.mxu0 0.0
    %270 = vmatmul.mubr.f32.gmra.mrb[0].mxu0 %v194
    %v271 = vpop.f32.mrb[0].mxu0
    %v272 = vadd.f32 0.0, %v271
    %v273 = vpop.f32.mrb[0].mxu0
    %274 = vmatprep.mubr.f32.mxu0 0.0
    %275 = vmatmul.mubr.f32.gmra.mrb[0].mxu0 %v197
    %v276 = vpop.f32.mrb[0].mxu0
    %v277 = vadd.f32 0.0, %v276
    %v278 = vpop.f32.mrb[0].mxu0
    %279 = vmatprep.mubr.f32.mxu0 0.0
    %280 = vmatmul.mubr.f32.gmra.mrb[0].mxu0 %v200
    %v281 = vpop.f32.mrb[0].mxu0
    %v282 = vadd.f32 0.0, %v281
    %v283 = vpop.f32.mrb[0].mxu0
    %284 = vmatprep.mubr.f32.mxu0 0.0
    %285 = vmatmul.mubr.f32.gmra.mrb[0].mxu0 %v203
    %v286 = vpop.f32.mrb[0].mxu0
    %v287 = vadd.f32 0.0, %v286
    %v288 = vpop.f32.mrb[0].mxu0
    %289 = vdwg.mxu0
    %v291 = vsel %vm37, %v117, 0
    %v294 = vsel %vm37, %v122, 0
    %v297 = vsel %vm37, %v127, 0
    %v300 = vsel %vm37, %v132, 0
    %302 = vmatprep.subr.mxu0 0.0
    %303 = vmatpush1.msra.mxu0 %v185
    %304 = vmatprep.subr.mxu0 0.0
    %305 = vmatpush1.msra.mxu0 %v186
    %306 = vmatprep.subr.mxu0 0.0
    %307 = vmatpush1.msra.mxu0 %v187
    %308 = vmatprep.subr.mxu0 0.0
    %309 = vmatpush1.msra.mxu0 %v188
    %310 = vmatprep.subr.mxu0 0.0
    %311 = vmatpush1.msra.mxu0 0.0
    %312 = vmatprep.subr.mxu0 0.0
    %313 = vmatpush1.msra.mxu0 0.0
    %314 = vmatprep.subr.mxu0 0.0
    %315 = vmatpush1.msra.mxu0 0.0
    %316 = vmatprep.subr.mxu0 0.0
    %317 = vmatpush1.msra.mxu0 0.0
    %318 = vmatprep.subr.mxu0 0.0
    %319 = vmatpush1.msra.mxu0 0.0
    %320 = vmatprep.subr.mxu0 0.0
    %321 = vmatpush1.msra.mxu0 0.0
    %322 = vmatprep.subr.mxu0 0.0
    %323 = vmatpush1.msra.mxu0 0.0
    %324 = vmatprep.subr.mxu0 0.0
    %325 = vmatpush1.msra.mxu0 0.0
    %326 = vmatprep.subr.mxu0 0.0
    %327 = vmatpush1.msra.mxu0 0.0
    %328 = vmatprep.subr.mxu0 0.0
    %329 = vmatpush1.msra.mxu0 0.0
    %330 = vmatprep.subr.mxu0 0.0
    %331 = vmatpush1.msra.mxu0 0.0
    %332 = vmatprep.subr.mxu0 0.0
    %333 = vmatpush1.msra.mxu0 0.0
    %334 = vmatprep.subr.mxu0 0.0
    %335 = vmatpush1.msra.mxu0 0.0
    %336 = vmatprep.subr.mxu0 0.0
    %337 = vmatpush1.msra.mxu0 0.0
    %338 = vmatprep.subr.mxu0 0.0
    %339 = vmatpush1.msra.mxu0 0.0
    %340 = vmatprep.subr.mxu0 0.0
    %341 = vmatpush1.msra.mxu0 0.0
    %342 = vmatprep.subr.mxu0 0.0
    %343 = vmatpush1.msra.mxu0 0.0
    %344 = vmatprep.subr.mxu0 0.0
    %345 = vmatpush1.msra.mxu0 0.0
    %346 = vmatprep.subr.mxu0 0.0
    %347 = vmatpush1.msra.mxu0 0.0
    %348 = vmatprep.subr.mxu0 0.0
    %349 = vmatpush1.msra.mxu0 0.0
    %350 = vmatprep.subr.mxu0 0.0
    %351 = vmatpush1.msra.mxu0 0.0
    %352 = vmatprep.subr.mxu0 0.0
    %353 = vmatpush1.msra.mxu0 0.0
    %354 = vmatprep.subr.mxu0 0.0
    %355 = vmatpush1.msra.mxu0 0.0
    %356 = vmatprep.subr.mxu0 0.0
    %357 = vmatpush1.msra.mxu0 0.0
    %358 = vmatprep.subr.mxu0 0.0
    %359 = vmatpush1.msra.mxu0 0.0
    %360 = vmatprep.subr.mxu0 0.0
    %361 = vmatpush1.msra.mxu0 0.0
    %362 = vmatprep.subr.mxu0 0.0
    %363 = vmatpush1.msra.mxu0 0.0
    %364 = vmatprep.subr.mxu0 0.0
    %365 = vmatpush1.msra.mxu0 0.0
    %366 = vmatprep.mubr.f32.mxu0 0.0
    %367 = vmatmul.mubr.f32.gmra.mrb[0].mxu0 %v291
    %v368 = vpop.f32.mrb[0].mxu0
    %v369 = vadd.f32 %v272, %v368
    %v370 = vpop.f32.mrb[0].mxu0
    %371 = vmatprep.mubr.f32.mxu0 0.0
    %372 = vmatmul.mubr.f32.gmra.mrb[0].mxu0 %v294
    %v373 = vpop.f32.mrb[0].mxu0
    %v374 = vadd.f32 %v277, %v373
    %v375 = vpop.f32.mrb[0].mxu0
    %376 = vmatprep.mubr.f32.mxu0 0.0
    %377 = vmatmul.mubr.f32.gmra.mrb[0].mxu0 %v297
    %v378 = vpop.f32.mrb[0].mxu0
    %v379 = vadd.f32 %v282, %v378
    %v380 = vpop.f32.mrb[0].mxu0
    %381 = vmatprep.mubr.f32.mxu0 0.0
    %382 = vmatmul.mubr.f32.gmra.mrb[0].mxu0 %v300
    %v383 = vpop.f32.mrb[0].mxu0
    %v384 = vadd.f32 %v287, %v383
    %v385 = vpop.f32.mrb[0].mxu0
    %386 = vdwg.mxu0
    %v387 = vld [vmem:[%s2] sm:$0xf]
    %v390 = vunpack.c.l.s4 1966171168
    %v391 = vunpack.c.0.s8 %v390
    %v392 = vlaneseq
    %v393 = vshrl.u32 %v392, 7
    %v394 = vsub.s32 %v391, %v393
    %v395 = vrot.slane %v387, %v394
    %v396 = vcombine.high %v395, %v395
    %v398 = vunpack.c.l.s4 1966171168
    %v399 = vunpack.c.0.s8 %v398
    %v400 = vlaneseq
    %v401 = vshrl.u32 %v400, 7
    %v402 = vsub.s32 %v399, %v401
    %v403 = vrot.slane %v395, %v402
    %v405 = vunpack.c.l.s4 1966171168
    %v406 = vunpack.c.0.s8 %v405
    %v407 = vlaneseq
    %v408 = vshrl.u32 %v407, 7
    %v409 = vsub.s32 %v406, %v408
    %v410 = vrot.slane %v396, %v409
    %v411 = vcombine.high %v403, %v403
    %v412 = vcombine.high %v410, %v410
    %v413 = vlaneseq
    %v414 = vshrl.u32 %v413, 7
    %v415 = vsub.s32 0, %v414
    %v416 = vrot.slane %v403, %v415
    %v417 = vlaneseq
    %v418 = vshrl.u32 %v417, 7
    %v419 = vsub.s32 0, %v418
    %v420 = vrot.slane %v410, %v419
    %v421 = vlaneseq
    %v422 = vshrl.u32 %v421, 7
    %v423 = vsub.s32 0, %v422
    %v424 = vrot.slane %v411, %v423
    %v425 = vlaneseq
    %v426 = vshrl.u32 %v425, 7
    %v427 = vsub.s32 0, %v426
    %v428 = vrot.slane %v412, %v427
    %v433 = vadd.f32 %v369, %v416
    %v434 = vadd.f32 %v374, %v420
    %v435 = vadd.f32 %v379, %v424
    %v436 = vadd.f32 %v384, %v428
    %v437 = vmax.f32 %v433, 0.0
    %v438 = vmax.f32 %v434, 0.0
    %v439 = vmax.f32 %v435, 0.0
    %v440 = vmax.f32 %v436, 0.0
    %v441 = vld [vmem:[%s5] sm:$0x1]
    %v443 = vlaneseq
    %v444 = vshrl.u32 %v443, 7
    %v445 = vsub.s32 0, %v444
    %v446 = vrot.slane %v441, %v445
    %v448 = vmul.f32 %v437, %v446
    %v449 = vmul.f32 %v438, %v446
    %v450 = vmul.f32 %v439, %v446
    %v451 = vmul.f32 %v440, %v446
    %v452 = vsel %vm37, %v448, 0.0
    %453 = vadd.xlane.f32.xlu0 %v452
    %v454 = vpop.xlane.xlu0 %453
    %v455 = vsel %vm37, %v449, 0.0
    %456 = vadd.xlane.f32.xlu0 %v455
    %v457 = vpop.xlane.xlu0 %456
    %v458 = vsel %vm37, %v450, 0.0
    %459 = vadd.xlane.f32.xlu0 %v458
    %v460 = vpop.xlane.xlu0 %459
    %v461 = vsel %vm37, %v451, 0.0
    %462 = vadd.xlane.f32.xlu0 %v461
    %v463 = vpop.xlane.xlu0 %462
    %v464 = vld [vmem:[#allocation2] sm:$0x1]
    %v466 = vlaneseq
    %v467 = vshrl.u32 %v466, 7
    %v468 = vsub.s32 0, %v467
    %v469 = vrot.slane %v464, %v468
    %470 = vset.pattern.permute.xlu0 0
    %471 = vperm.xlu0 %470, %v469
    %v472 = vpop.permute.xlu0 %471
    %v474 = vadd.f32 %v454, %v472
    %v475 = vadd.f32 %v457, %v472
    %v476 = vadd.f32 %v460, %v472
    %v477 = vadd.f32 %v463, %v472
    %v482 = vlaneseq
    %v483 = vand.u32 %v482, 127
    %v484 = vlaneseq
    %v485 = vshrl.u32 %v484, 7
    %v486 = vsub.s32 %v483, %v485
    %v487 = vrot.slane %v474, %v486
    %v488 = vlaneseq
    %v489 = vshrl.u32 %v488, 7
    %v490 = vsub.s32 %v483, %v489
    %v491 = vrot.slane %v475, %v490
    %v492 = vlaneseq
    %v493 = vshrl.u32 %v492, 7
    %v494 = vsub.s32 %v483, %v493
    %v495 = vrot.slane %v476, %v494
    %v496 = vlaneseq
    %v497 = vshrl.u32 %v496, 7
    %v498 = vsub.s32 %v483, %v497
    %v499 = vrot.slane %v477, %v498
    %vm500 = vcmask 1041409
    %v501 = vsel %vm500, %v491, %v487
    %vm502 = vcmask 1042434
    %v503 = vsel %vm502, %v495, %v501
    %vm504 = vcmask 1043459
    %v505 = vsel %vm504, %v499, %v503
    %vm507 = vcmask 60416
    %v508 = vsel %vm507, %v505, -inf
    %509 = vmax.xlane.f32.xlu0 %v508
    %v510 = vpop.xlane.xlu0 %509
    %v512 = vlaneseq
    %v513 = vshrl.u32 %v512, 7
    %v514 = vsub.s32 0, %v513
    %v515 = vrot.slane %v510, %v514
    %v516 = vlaneseq
    %v517 = vshrl.u32 %v516, 7
    %v518 = vsub.s32 1, %v517
    %v519 = vrot.slane %v510, %v518
    %v520 = vlaneseq
    %v521 = vshrl.u32 %v520, 7
    %v522 = vsub.s32 2, %v521
    %v523 = vrot.slane %v510, %v522
    %v524 = vlaneseq
    %v525 = vshrl.u32 %v524, 7
    %v526 = vsub.s32 3, %v525
    %v527 = vrot.slane %v510, %v526
    %v532 = vsub.f32 %v474, %v515
    %v533 = vsub.f32 %v475, %v519
    %v534 = vsub.f32 %v476, %v523
    %v535 = vsub.f32 %v477, %v527
    %v536 = vmul.f32 %v532, 1.442695
    %v537 = vpow.pop %v536
    %v538 = vmul.f32 %v533, 1.442695
    %v539 = vpow.pop %v538
    %v540 = vmul.f32 %v534, 1.442695
    %v541 = vpow.pop %v540
    %v542 = vmul.f32 %v535, 1.442695
    %v543 = vpow.pop %v542
    %548 = vset.pattern.permute.xlu0 0
    %549 = vperm.xlu0 %548, %v537
    %v550 = vpop.permute.xlu0 %549
    %551 = vset.pattern.permute.xlu0 0
    %552 = vperm.xlu0 %551, %v539
    %v553 = vpop.permute.xlu0 %552
    %554 = vset.pattern.permute.xlu0 0
    %555 = vperm.xlu0 %554, %v541
    %v556 = vpop.permute.xlu0 %555
    %557 = vset.pattern.permute.xlu0 0
    %558 = vperm.xlu0 %557, %v543
    %v559 = vpop.permute.xlu0 %558
    %v560 = vlaneseq
    %v561 = vshrl.u32 %v560, 7
    %v562 = vsub.s32 %v483, %v561
    %v563 = vrot.slane %v550, %v562
    %v564 = vlaneseq
    %v565 = vshrl.u32 %v564, 7
    %v566 = vsub.s32 %v483, %v565
    %v567 = vrot.slane %v553, %v566
    %v568 = vlaneseq
    %v569 = vshrl.u32 %v568, 7
    %v570 = vsub.s32 %v483, %v569
    %v571 = vrot.slane %v556, %v570
    %v572 = vlaneseq
    %v573 = vshrl.u32 %v572, 7
    %v574 = vsub.s32 %v483, %v573
    %v575 = vrot.slane %v559, %v574
    %v576 = vsel %vm500, %v567, %v563
    %v577 = vsel %vm502, %v571, %v576
    %v578 = vsel %vm504, %v575, %v577
    %v580 = vsel %vm507, %v578, 0.0
    %581 = vadd.xlane.f32.xlu0 %v580
    %v582 = vpop.xlane.xlu0 %581
    %v584 = vlaneseq
    %v585 = vshrl.u32 %v584, 7
    %v586 = vsub.s32 0, %v585
    %v587 = vrot.slane %v582, %v586
    %v588 = vlaneseq
    %v589 = vshrl.u32 %v588, 7
    %v590 = vsub.s32 1, %v589
    %v591 = vrot.slane %v582, %v590
    %v592 = vlaneseq
    %v593 = vshrl.u32 %v592, 7
    %v594 = vsub.s32 2, %v593
    %v595 = vrot.slane %v582, %v594
    %v596 = vlaneseq
    %v597 = vshrl.u32 %v596, 7
    %v598 = vsub.s32 3, %v597
    %v599 = vrot.slane %v582, %v598
    %v604 = vrcp.pop %v587
    %v605 = vmul.f32 %v537, %v604
    %v606 = vrcp.pop %v591
    %v607 = vmul.f32 %v539, %v606
    %v608 = vrcp.pop %v595
    %v609 = vmul.f32 %v541, %v608
    %v610 = vrcp.pop %v599
    %v611 = vmul.f32 %v543, %v610
    %613 = vset.pattern.permute.xlu0 0
    %614 = vperm.xlu0 %613, %v605
    %v615 = vpop.permute.xlu0 %614
    %618 = vset.pattern.permute.xlu0 0
    %619 = vperm.xlu0 %618, %v607
    %v620 = vpop.permute.xlu0 %619
    %623 = vset.pattern.permute.xlu0 0
    %624 = vperm.xlu0 %623, %v609
    %v625 = vpop.permute.xlu0 %624
    %628 = vset.pattern.permute.xlu0 0
    %629 = vperm.xlu0 %628, %v611
    %v630 = vpop.permute.xlu0 %629
    %v632 = vmul.f32 %v615, %v29
    %v633 = vmul.f32 %v620, %v30
    %v634 = vmul.f32 %v625, %v31
    %v635 = vmul.f32 %v630, %v32
    %v636 = vsel %vm37, %v632, 0.0
    %v637 = vrot.slane %v636, 4
    %v638 = vadd.f32 %v636, %v637
    %v639 = vrot.slane %v638, 2
    %v640 = vadd.f32 %v638, %v639
    %v641 = vrot.slane %v640, 1
    %v642 = vadd.f32 %v640, %v641
    %v643 = vsel %vm37, %v633, 0.0
    %v644 = vrot.slane %v643, 4
    %v645 = vadd.f32 %v643, %v644
    %v646 = vrot.slane %v645, 2
    %v647 = vadd.f32 %v645, %v646
    %v648 = vrot.slane %v647, 1
    %v649 = vadd.f32 %v647, %v648
    %v650 = vsel %vm37, %v634, 0.0
    %v651 = vrot.slane %v650, 4
    %v652 = vadd.f32 %v650, %v651
    %v653 = vrot.slane %v652, 2
    %v654 = vadd.f32 %v652, %v653
    %v655 = vrot.slane %v654, 1
    %v656 = vadd.f32 %v654, %v655
    %v657 = vsel %vm37, %v635, 0.0
    %v658 = vrot.slane %v657, 4
    %v659 = vadd.f32 %v657, %v658
    %v660 = vrot.slane %v659, 2
    %v661 = vadd.f32 %v659, %v660
    %v662 = vrot.slane %v661, 1
    %v663 = vadd.f32 %v661, %v662
    %v668 = vsel %vm500, %v649, %v642
    %v669 = vsel %vm502, %v656, %v668
    %v670 = vsel %vm504, %v663, %v669
    %vm672 = vcmask 257024
    %673 = vst.msk [vmem:[#allocation3] sm:$0xf] %vm672, %v670
    // Predicated region
    $region30: #{tpu_custom_call.1} parent=1 // pred_check
      _
    $region31: #{tpu_custom_call.1} parent=1 // pred_check_branch
      %675 = sbr.rel (0) target = $region33
    $region32: #{tpu_custom_call.1} parent=1 // pred_region
      %s677 = ssub.s32 64, 64
      %678 = vsyncadd [#allocation4], %s677
      %s680 = sshll.u32 [#allocation3], 4
      %s681 = int_to_ptr.vmem [resolvable:$true] %s680
      %683 = dma.vmem_to_hbm [thread:$0]  %s681, 64, %s7, [#allocation4]
    $region33: #{tpu_custom_call.1} parent=1 // pred_fallthru
      _
    // Predicated region
    $region34: #{tpu_custom_call.1} parent=1 // pred_check
      _
    $region35: #{tpu_custom_call.1} parent=1 // pred_check_branch
      %685 = sbr.rel (0) target = $region37
    $region36: #{tpu_custom_call.1} parent=1 // pred_region
      %686 = dma.done [#allocation4], 64
    $region37: #{tpu_custom_call.1} parent=1 // pred_fallthru
      _
    %687 = vsyncpa [#allocation4], 1

// kernel: tpu_custom_call.1
$region0: #{tpu_custom_call.1}
  #allocation0 [shape = 'u32[]', space=smem, size = 0x4, offset = 0x4, fixed_abs, tag = 'smem constant byte address 0x4 - core index']
  #allocation1 [shape = 'u32[144,128]{1,0:T(1,128)}', space=vmem, size = 0x12000, scoped, tag = 'internal scratch']
  #allocation2 [shape = 'f32[1,1]{1,0:T(1,128)S(1)}', space=vmem, size = 0x200, scoped, tag = 'scoped memory for tpu_custom_call.1']
  %s0 = inlined_call_operand.vmem [shape: f32[4,8,32], index: 0, kind: input, shape index: {}]
  %s1 = inlined_call_operand.vmem [shape: f32[4,32], index: 1, kind: input, shape index: {}]
  %s2 = inlined_call_operand.vmem [shape: f32[4,32], index: 2, kind: input, shape index: {}]
  %s3 = inlined_call_operand.vmem [shape: f32[32,32], index: 3, kind: input, shape index: {}]
  %s4 = inlined_call_operand.vmem [shape: f32[64,32], index: 4, kind: input, shape index: {}]
  %s5 = inlined_call_operand.vmem [shape: f32[1,32], index: 5, kind: input, shape index: {}]
  %s6 = inlined_call_operand.<no memory space> [shape: f32[1,1], index: 6, kind: input, shape index: {}]
  %s7 = inlined_call_operand.hbm [shape: f32[4,32], index: 7, kind: output, shape index: {}]
  %s8 = sld [smem:[#allocation0]]
  $region38: #{tpu_custom_call.1} parent=0
    _
  %s10 = ssub.s32 1, %s8
  %s11 = scalar_select 0, %s10, %s8
  %v12 = vstv %s6
  %13 = vst [vmem:[#allocation2] sm:$0x1] %v12
  $region1: #{tpu_custom_call.1} parent=0
    #allocation3 [shape = 'u8[2048]{0}', space=vmem, size = 0x800, scoped, tag = 'output window, operand 0, single buffered']
    #allocation4 [shape = 's32[1]{0}', space=sflag, size = 0x4, scoped, tag = 'scoped memory for tpu_custom_call.1']
    %14 = vsyncpa [#allocation4], 0
    // Predicated region
    $region2: #{tpu_custom_call.1} parent=1 // pred_check
      _
    $region3: #{tpu_custom_call.1} parent=1 // pred_check_branch
      %16 = sbr.rel (0) target = $region5
    $region4: #{tpu_custom_call.1} parent=1 // pred_region
      _
    $region5: #{tpu_custom_call.1} parent=1 // pred_fallthru
      _
    // Predicated region
    $region6: #{tpu_custom_call.1} parent=1 // pred_check
      _
    $region7: #{tpu_custom_call.1} parent=1 // pred_check_branch
      %18 = sbr.rel (0) target = $region9
    $region8: #{tpu_custom_call.1} parent=1 // pred_region
      _
    $region9: #{tpu_custom_call.1} parent=1 // pred_fallthru
      _
    // Predicated region
    $region10: #{tpu_custom_call.1} parent=1 // pred_check
      _
    $region11: #{tpu_custom_call.1} parent=1 // pred_check_branch
      %20 = sbr.rel (0) target = $region13
    $region12: #{tpu_custom_call.1} parent=1 // pred_region
      _
    $region13: #{tpu_custom_call.1} parent=1 // pred_fallthru
      _
    // Predicated region
    $region14: #{tpu_custom_call.1} parent=1 // pred_check
      _
    $region15: #{tpu_custom_call.1} parent=1 // pred_check_branch
      %22 = sbr.rel (0) target = $region17
    $region16: #{tpu_custom_call.1} parent=1 // pred_region
      _
    $region17: #{tpu_custom_call.1} parent=1 // pred_fallthru
      _
    // Predicated region
    $region18: #{tpu_custom_call.1} parent=1 // pred_check
      _
    $region19: #{tpu_custom_call.1} parent=1 // pred_check_branch
      %24 = sbr.rel (0) target = $region21
    $region20: #{tpu_custom_call.1} parent=1 // pred_region
      _
    $region21: #{tpu_custom_call.1} parent=1 // pred_fallthru
      _
    // Predicated region
    $region22: #{tpu_custom_call.1} parent=1 // pred_check
      _
    $region23: #{tpu_custom_call.1} parent=1 // pred_check_branch
      %26 = sbr.rel (0) target = $region25
    $region24: #{tpu_custom_call.1} parent=1 // pred_region
      _
    $region25: #{tpu_custom_call.1} parent=1 // pred_fallthru
      _
    // Predicated region
    $region26: #{tpu_custom_call.1} parent=1 // pred_check
      _
    $region27: #{tpu_custom_call.1} parent=1 // pred_check_branch
      %28 = sbr.rel (0) target = $region29
    $region28: #{tpu_custom_call.1} parent=1 // pred_region
      _
    $region29: #{tpu_custom_call.1} parent=1 // pred_fallthru
      _
    %v29 = vld [vmem:[%s0] sm:$0xff]
    %v30 = vld [vmem:[%s0 + $0x8] sm:$0xff]
    %v31 = vld [vmem:[%s0 + $0x10] sm:$0xff]
    %v32 = vld [vmem:[%s0 + $0x18] sm:$0xff]
    %v33 = vld [vmem:[%s3] sm:$0xff]
    %v34 = vld [vmem:[%s3 + $0x8] sm:$0xff]
    %v35 = vld [vmem:[%s3 + $0x10] sm:$0xff]
    %v36 = vld [vmem:[%s3 + $0x18] sm:$0xff]
    %vm37 = vcmask 261120
    %v39 = vsel %vm37, %v29, 0
    %v42 = vsel %vm37, %v30, 0
    %v45 = vsel %vm37, %v31, 0
    %v48 = vsel %vm37, %v32, 0
    %50 = vmatprep.subr.mxu0 0.0
    %51 = vmatpush1.msra.mxu0 %v33
    %52 = vmatprep.subr.mxu0 0.0
    %53 = vmatpush1.msra.mxu0 %v34
    %54 = vmatprep.subr.mxu0 0.0
    %55 = vmatpush1.msra.mxu0 %v35
    %56 = vmatprep.subr.mxu0 0.0
    %57 = vmatpush1.msra.mxu0 %v36
    %58 = vmatprep.subr.mxu0 0.0
    %59 = vmatpush1.msra.mxu0 0.0
    %60 = vmatprep.subr.mxu0 0.0
    %61 = vmatpush1.msra.mxu0 0.0
    %62 = vmatprep.subr.mxu0 0.0
    %63 = vmatpush1.msra.mxu0 0.0
    %64 = vmatprep.subr.mxu0 0.0
    %65 = vmatpush1.msra.mxu0 0.0
    %66 = vmatprep.subr.mxu0 0.0
    %67 = vmatpush1.msra.mxu0 0.0
    %68 = vmatprep.subr.mxu0 0.0
    %69 = vmatpush1.msra.mxu0 0.0
    %70 = vmatprep.subr.mxu0 0.0
    %71 = vmatpush1.msra.mxu0 0.0
    %72 = vmatprep.subr.mxu0 0.0
    %73 = vmatpush1.msra.mxu0 0.0
    %74 = vmatprep.subr.mxu0 0.0
    %75 = vmatpush1.msra.mxu0 0.0
    %76 = vmatprep.subr.mxu0 0.0
    %77 = vmatpush1.msra.mxu0 0.0
    %78 = vmatprep.subr.mxu0 0.0
    %79 = vmatpush1.msra.mxu0 0.0
    %80 = vmatprep.subr.mxu0 0.0
    %81 = vmatpush1.msra.mxu0 0.0
    %82 = vmatprep.subr.mxu0 0.0
    %83 = vmatpush1.msra.mxu0 0.0
    %84 = vmatprep.subr.mxu0 0.0
    %85 = vmatpush1.msra.mxu0 0.0
    %86 = vmatprep.subr.mxu0 0.0
    %87 = vmatpush1.msra.mxu0 0.0
    %88 = vmatprep.subr.mxu0 0.0
    %89 = vmatpush1.msra.mxu0 0.0
    %90 = vmatprep.subr.mxu0 0.0
    %91 = vmatpush1.msra.mxu0 0.0
    %92 = vmatprep.subr.mxu0 0.0
    %93 = vmatpush1.msra.mxu0 0.0
    %94 = vmatprep.subr.mxu0 0.0
    %95 = vmatpush1.msra.mxu0 0.0
    %96 = vmatprep.subr.mxu0 0.0
    %97 = vmatpush1.msra.mxu0 0.0
    %98 = vmatprep.subr.mxu0 0.0
    %99 = vmatpush1.msra.mxu0 0.0
    %100 = vmatprep.subr.mxu0 0.0
    %101 = vmatpush1.msra.mxu0 0.0
    %102 = vmatprep.subr.mxu0 0.0
    %103 = vmatpush1.msra.mxu0 0.0
    %104 = vmatprep.subr.mxu0 0.0
    %105 = vmatpush1.msra.mxu0 0.0
    %106 = vmatprep.subr.mxu0 0.0
    %107 = vmatpush1.msra.mxu0 0.0
    %108 = vmatprep.subr.mxu0 0.0
    %109 = vmatpush1.msra.mxu0 0.0
    %110 = vmatprep.subr.mxu0 0.0
    %111 = vmatpush1.msra.mxu0 0.0
    %112 = vmatprep.subr.mxu0 0.0
    %113 = vmatpush1.msra.mxu0 0.0
    %114 = vmatprep.mubr.f32.mxu0 0.0
    %115 = vmatmul.mubr.f32.gmra.mrb[0].mxu0 %v39
    %v116 = vpop.f32.mrb[0].mxu0
    %v117 = vadd.f32 0.0, %v116
    %v118 = vpop.f32.mrb[0].mxu0
    %119 = vmatprep.mubr.f32.mxu0 0.0
    %120 = vmatmul.mubr.f32.gmra.mrb[0].mxu0 %v42
    %v121 = vpop.f32.mrb[0].mxu0
    %v122 = vadd.f32 0.0, %v121
    %v123 = vpop.f32.mrb[0].mxu0
    %124 = vmatprep.mubr.f32.mxu0 0.0
    %125 = vmatmul.mubr.f32.gmra.mrb[0].mxu0 %v45
    %v126 = vpop.f32.mrb[0].mxu0
    %v127 = vadd.f32 0.0, %v126
    %v128 = vpop.f32.mrb[0].mxu0
    %129 = vmatprep.mubr.f32.mxu0 0.0
    %130 = vmatmul.mubr.f32.gmra.mrb[0].mxu0 %v48
    %v131 = vpop.f32.mrb[0].mxu0
    %v132 = vadd.f32 0.0, %v131
    %v133 = vpop.f32.mrb[0].mxu0
    %134 = vdwg.mxu0
    %v135 = vld [vmem:[%s1] sm:$0xf]
    %v138 = vunpack.c.l.s4 1966171168
    %v139 = vunpack.c.0.s8 %v138
    %v140 = vlaneseq
    %v141 = vshrl.u32 %v140, 7
    %v142 = vsub.s32 %v139, %v141
    %v143 = vrot.slane %v135, %v142
    %v144 = vcombine.high %v143, %v143
    %v146 = vunpack.c.l.s4 1966171168
    %v147 = vunpack.c.0.s8 %v146
    %v148 = vlaneseq
    %v149 = vshrl.u32 %v148, 7
    %v150 = vsub.s32 %v147, %v149
    %v151 = vrot.slane %v143, %v150
    %v153 = vunpack.c.l.s4 1966171168
    %v154 = vunpack.c.0.s8 %v153
    %v155 = vlaneseq
    %v156 = vshrl.u32 %v155, 7
    %v157 = vsub.s32 %v154, %v156
    %v158 = vrot.slane %v144, %v157
    %v159 = vcombine.high %v151, %v151
    %v160 = vcombine.high %v158, %v158
    %v161 = vlaneseq
    %v162 = vshrl.u32 %v161, 7
    %v163 = vsub.s32 0, %v162
    %v164 = vrot.slane %v151, %v163
    %v165 = vlaneseq
    %v166 = vshrl.u32 %v165, 7
    %v167 = vsub.s32 0, %v166
    %v168 = vrot.slane %v158, %v167
    %v169 = vlaneseq
    %v170 = vshrl.u32 %v169, 7
    %v171 = vsub.s32 0, %v170
    %v172 = vrot.slane %v159, %v171
    %v173 = vlaneseq
    %v174 = vshrl.u32 %v173, 7
    %v175 = vsub.s32 0, %v174
    %v176 = vrot.slane %v160, %v175
    %v181 = vmul.f32 %v117, %v164
    %v182 = vmul.f32 %v122, %v168
    %v183 = vmul.f32 %v127, %v172
    %v184 = vmul.f32 %v132, %v176
    %v185 = vld [vmem:[%s4] sm:$0xff]
    %v186 = vld [vmem:[%s4 + $0x8] sm:$0xff]
    %v187 = vld [vmem:[%s4 + $0x10] sm:$0xff]
    %v188 = vld [vmem:[%s4 + $0x18] sm:$0xff]
    %v189 = vld [vmem:[%s4 + $0x20] sm:$0xff]
    %v190 = vld [vmem:[%s4 + $0x28] sm:$0xff]
    %v191 = vld [vmem:[%s4 + $0x30] sm:$0xff]
    %v192 = vld [vmem:[%s4 + $0x38] sm:$0xff]
    %v194 = vsel %vm37, %v181, 0
    %v197 = vsel %vm37, %v182, 0
    %v200 = vsel %vm37, %v183, 0
    %v203 = vsel %vm37, %v184, 0
    %205 = vmatprep.subr.mxu0 0.0
    %206 = vmatpush1.msra.mxu0 %v189
    %207 = vmatprep.subr.mxu0 0.0
    %208 = vmatpush1.msra.mxu0 %v190
    %209 = vmatprep.subr.mxu0 0.0
    %210 = vmatpush1.msra.mxu0 %v191
    %211 = vmatprep.subr.mxu0 0.0
    %212 = vmatpush1.msra.mxu0 %v192
    %213 = vmatprep.subr.mxu0 0.0
    %214 = vmatpush1.msra.mxu0 0.0
    %215 = vmatprep.subr.mxu0 0.0
    %216 = vmatpush1.msra.mxu0 0.0
    %217 = vmatprep.subr.mxu0 0.0
    %218 = vmatpush1.msra.mxu0 0.0
    %219 = vmatprep.subr.mxu0 0.0
    %220 = vmatpush1.msra.mxu0 0.0
    %221 = vmatprep.subr.mxu0 0.0
    %222 = vmatpush1.msra.mxu0 0.0
    %223 = vmatprep.subr.mxu0 0.0
    %224 = vmatpush1.msra.mxu0 0.0
    %225 = vmatprep.subr.mxu0 0.0
    %226 = vmatpush1.msra.mxu0 0.0
    %227 = vmatprep.subr.mxu0 0.0
    %228 = vmatpush1.msra.mxu0 0.0
    %229 = vmatprep.subr.mxu0 0.0
    %230 = vmatpush1.msra.mxu0 0.0
    %231 = vmatprep.subr.mxu0 0.0
    %232 = vmatpush1.msra.mxu0 0.0
    %233 = vmatprep.subr.mxu0 0.0
    %234 = vmatpush1.msra.mxu0 0.0
    %235 = vmatprep.subr.mxu0 0.0
    %236 = vmatpush1.msra.mxu0 0.0
    %237 = vmatprep.subr.mxu0 0.0
    %238 = vmatpush1.msra.mxu0 0.0
    %239 = vmatprep.subr.mxu0 0.0
    %240 = vmatpush1.msra.mxu0 0.0
    %241 = vmatprep.subr.mxu0 0.0
    %242 = vmatpush1.msra.mxu0 0.0
    %243 = vmatprep.subr.mxu0 0.0
    %244 = vmatpush1.msra.mxu0 0.0
    %245 = vmatprep.subr.mxu0 0.0
    %246 = vmatpush1.msra.mxu0 0.0
    %247 = vmatprep.subr.mxu0 0.0
    %248 = vmatpush1.msra.mxu0 0.0
    %249 = vmatprep.subr.mxu0 0.0
    %250 = vmatpush1.msra.mxu0 0.0
    %251 = vmatprep.subr.mxu0 0.0
    %252 = vmatpush1.msra.mxu0 0.0
    %253 = vmatprep.subr.mxu0 0.0
    %254 = vmatpush1.msra.mxu0 0.0
    %255 = vmatprep.subr.mxu0 0.0
    %256 = vmatpush1.msra.mxu0 0.0
    %257 = vmatprep.subr.mxu0 0.0
    %258 = vmatpush1.msra.mxu0 0.0
    %259 = vmatprep.subr.mxu0 0.0
    %260 = vmatpush1.msra.mxu0 0.0
    %261 = vmatprep.subr.mxu0 0.0
    %262 = vmatpush1.msra.mxu0 0.0
    %263 = vmatprep.subr.mxu0 0.0
    %264 = vmatpush1.msra.mxu0 0.0
    %265 = vmatprep.subr.mxu0 0.0
    %266 = vmatpush1.msra.mxu0 0.0
    %267 = vmatprep.subr.mxu0 0.0
    %268 = vmatpush1.msra.mxu0 0.0
    %269 = vmatprep.mubr.f32.mxu0 0.0
    %270 = vmatmul.mubr.f32.gmra.mrb[0].mxu0 %v194
    %v271 = vpop.f32.mrb[0].mxu0
    %v272 = vadd.f32 0.0, %v271
    %v273 = vpop.f32.mrb[0].mxu0
    %274 = vmatprep.mubr.f32.mxu0 0.0
    %275 = vmatmul.mubr.f32.gmra.mrb[0].mxu0 %v197
    %v276 = vpop.f32.mrb[0].mxu0
    %v277 = vadd.f32 0.0, %v276
    %v278 = vpop.f32.mrb[0].mxu0
    %279 = vmatprep.mubr.f32.mxu0 0.0
    %280 = vmatmul.mubr.f32.gmra.mrb[0].mxu0 %v200
    %v281 = vpop.f32.mrb[0].mxu0
    %v282 = vadd.f32 0.0, %v281
    %v283 = vpop.f32.mrb[0].mxu0
    %284 = vmatprep.mubr.f32.mxu0 0.0
    %285 = vmatmul.mubr.f32.gmra.mrb[0].mxu0 %v203
    %v286 = vpop.f32.mrb[0].mxu0
    %v287 = vadd.f32 0.0, %v286
    %v288 = vpop.f32.mrb[0].mxu0
    %289 = vdwg.mxu0
    %v291 = vsel %vm37, %v117, 0
    %v294 = vsel %vm37, %v122, 0
    %v297 = vsel %vm37, %v127, 0
    %v300 = vsel %vm37, %v132, 0
    %302 = vmatprep.subr.mxu0 0.0
    %303 = vmatpush1.msra.mxu0 %v185
    %304 = vmatprep.subr.mxu0 0.0
    %305 = vmatpush1.msra.mxu0 %v186
    %306 = vmatprep.subr.mxu0 0.0
    %307 = vmatpush1.msra.mxu0 %v187
    %308 = vmatprep.subr.mxu0 0.0
    %309 = vmatpush1.msra.mxu0 %v188
    %310 = vmatprep.subr.mxu0 0.0
    %311 = vmatpush1.msra.mxu0 0.0
    %312 = vmatprep.subr.mxu0 0.0
    %313 = vmatpush1.msra.mxu0 0.0
    %314 = vmatprep.subr.mxu0 0.0
    %315 = vmatpush1.msra.mxu0 0.0
    %316 = vmatprep.subr.mxu0 0.0
    %317 = vmatpush1.msra.mxu0 0.0
    %318 = vmatprep.subr.mxu0 0.0
    %319 = vmatpush1.msra.mxu0 0.0
    %320 = vmatprep.subr.mxu0 0.0
    %321 = vmatpush1.msra.mxu0 0.0
    %322 = vmatprep.subr.mxu0 0.0
    %323 = vmatpush1.msra.mxu0 0.0
    %324 = vmatprep.subr.mxu0 0.0
    %325 = vmatpush1.msra.mxu0 0.0
    %326 = vmatprep.subr.mxu0 0.0
    %327 = vmatpush1.msra.mxu0 0.0
    %328 = vmatprep.subr.mxu0 0.0
    %329 = vmatpush1.msra.mxu0 0.0
    %330 = vmatprep.subr.mxu0 0.0
    %331 = vmatpush1.msra.mxu0 0.0
    %332 = vmatprep.subr.mxu0 0.0
    %333 = vmatpush1.msra.mxu0 0.0
    %334 = vmatprep.subr.mxu0 0.0
    %335 = vmatpush1.msra.mxu0 0.0
    %336 = vmatprep.subr.mxu0 0.0
    %337 = vmatpush1.msra.mxu0 0.0
    %338 = vmatprep.subr.mxu0 0.0
    %339 = vmatpush1.msra.mxu0 0.0
    %340 = vmatprep.subr.mxu0 0.0
    %341 = vmatpush1.msra.mxu0 0.0
    %342 = vmatprep.subr.mxu0 0.0
    %343 = vmatpush1.msra.mxu0 0.0
    %344 = vmatprep.subr.mxu0 0.0
    %345 = vmatpush1.msra.mxu0 0.0
    %346 = vmatprep.subr.mxu0 0.0
    %347 = vmatpush1.msra.mxu0 0.0
    %348 = vmatprep.subr.mxu0 0.0
    %349 = vmatpush1.msra.mxu0 0.0
    %350 = vmatprep.subr.mxu0 0.0
    %351 = vmatpush1.msra.mxu0 0.0
    %352 = vmatprep.subr.mxu0 0.0
    %353 = vmatpush1.msra.mxu0 0.0
    %354 = vmatprep.subr.mxu0 0.0
    %355 = vmatpush1.msra.mxu0 0.0
    %356 = vmatprep.subr.mxu0 0.0
    %357 = vmatpush1.msra.mxu0 0.0
    %358 = vmatprep.subr.mxu0 0.0
    %359 = vmatpush1.msra.mxu0 0.0
    %360 = vmatprep.subr.mxu0 0.0
    %361 = vmatpush1.msra.mxu0 0.0
    %362 = vmatprep.subr.mxu0 0.0
    %363 = vmatpush1.msra.mxu0 0.0
    %364 = vmatprep.subr.mxu0 0.0
    %365 = vmatpush1.msra.mxu0 0.0
    %366 = vmatprep.mubr.f32.mxu0 0.0
    %367 = vmatmul.mubr.f32.gmra.mrb[0].mxu0 %v291
    %v368 = vpop.f32.mrb[0].mxu0
    %v369 = vadd.f32 %v272, %v368
    %v370 = vpop.f32.mrb[0].mxu0
    %371 = vmatprep.mubr.f32.mxu0 0.0
    %372 = vmatmul.mubr.f32.gmra.mrb[0].mxu0 %v294
    %v373 = vpop.f32.mrb[0].mxu0
    %v374 = vadd.f32 %v277, %v373
    %v375 = vpop.f32.mrb[0].mxu0
    %376 = vmatprep.mubr.f32.mxu0 0.0
    %377 = vmatmul.mubr.f32.gmra.mrb[0].mxu0 %v297
    %v378 = vpop.f32.mrb[0].mxu0
    %v379 = vadd.f32 %v282, %v378
    %v380 = vpop.f32.mrb[0].mxu0
    %381 = vmatprep.mubr.f32.mxu0 0.0
    %382 = vmatmul.mubr.f32.gmra.mrb[0].mxu0 %v300
    %v383 = vpop.f32.mrb[0].mxu0
    %v384 = vadd.f32 %v287, %v383
    %v385 = vpop.f32.mrb[0].mxu0
    %386 = vdwg.mxu0
    %v387 = vld [vmem:[%s2] sm:$0xf]
    %v390 = vunpack.c.l.s4 1966171168
    %v391 = vunpack.c.0.s8 %v390
    %v392 = vlaneseq
    %v393 = vshrl.u32 %v392, 7
    %v394 = vsub.s32 %v391, %v393
    %v395 = vrot.slane %v387, %v394
    %v396 = vcombine.high %v395, %v395
    %v398 = vunpack.c.l.s4 1966171168
    %v399 = vunpack.c.0.s8 %v398
    %v400 = vlaneseq
    %v401 = vshrl.u32 %v400, 7
    %v402 = vsub.s32 %v399, %v401
    %v403 = vrot.slane %v395, %v402
    %v405 = vunpack.c.l.s4 1966171168
    %v406 = vunpack.c.0.s8 %v405
    %v407 = vlaneseq
    %v408 = vshrl.u32 %v407, 7
    %v409 = vsub.s32 %v406, %v408
    %v410 = vrot.slane %v396, %v409
    %v411 = vcombine.high %v403, %v403
    %v412 = vcombine.high %v410, %v410
    %v413 = vlaneseq
    %v414 = vshrl.u32 %v413, 7
    %v415 = vsub.s32 0, %v414
    %v416 = vrot.slane %v403, %v415
    %v417 = vlaneseq
    %v418 = vshrl.u32 %v417, 7
    %v419 = vsub.s32 0, %v418
    %v420 = vrot.slane %v410, %v419
    %v421 = vlaneseq
    %v422 = vshrl.u32 %v421, 7
    %v423 = vsub.s32 0, %v422
    %v424 = vrot.slane %v411, %v423
    %v425 = vlaneseq
    %v426 = vshrl.u32 %v425, 7
    %v427 = vsub.s32 0, %v426
    %v428 = vrot.slane %v412, %v427
    %v433 = vadd.f32 %v369, %v416
    %v434 = vadd.f32 %v374, %v420
    %v435 = vadd.f32 %v379, %v424
    %v436 = vadd.f32 %v384, %v428
    %v437 = vmax.f32 %v433, 0.0
    %v438 = vmax.f32 %v434, 0.0
    %v439 = vmax.f32 %v435, 0.0
    %v440 = vmax.f32 %v436, 0.0
    %v441 = vld [vmem:[%s5] sm:$0x1]
    %v443 = vlaneseq
    %v444 = vshrl.u32 %v443, 7
    %v445 = vsub.s32 0, %v444
    %v446 = vrot.slane %v441, %v445
    %v448 = vmul.f32 %v437, %v446
    %v449 = vmul.f32 %v438, %v446
    %v450 = vmul.f32 %v439, %v446
    %v451 = vmul.f32 %v440, %v446
    %v452 = vsel %vm37, %v448, 0.0
    %453 = vadd.xlane.f32.xlu0 %v452
    %v454 = vpop.xlane.xlu0 %453
    %v455 = vsel %vm37, %v449, 0.0
    %456 = vadd.xlane.f32.xlu0 %v455
    %v457 = vpop.xlane.xlu0 %456
    %v458 = vsel %vm37, %v450, 0.0
    %459 = vadd.xlane.f32.xlu0 %v458
    %v460 = vpop.xlane.xlu0 %459
    %v461 = vsel %vm37, %v451, 0.0
    %462 = vadd.xlane.f32.xlu0 %v461
    %v463 = vpop.xlane.xlu0 %462
    %v464 = vld [vmem:[#allocation2] sm:$0x1]
    %v466 = vlaneseq
    %v467 = vshrl.u32 %v466, 7
    %v468 = vsub.s32 0, %v467
    %v469 = vrot.slane %v464, %v468
    %470 = vset.pattern.permute.xlu0 0
    %471 = vperm.xlu0 %470, %v469
    %v472 = vpop.permute.xlu0 %471
    %v474 = vadd.f32 %v454, %v472
    %v475 = vadd.f32 %v457, %v472
    %v476 = vadd.f32 %v460, %v472
    %v477 = vadd.f32 %v463, %v472
    %v482 = vlaneseq
    %v483 = vand.u32 %v482, 127
    %v484 = vlaneseq
    %v485 = vshrl.u32 %v484, 7
    %v486 = vsub.s32 %v483, %v485
    %v487 = vrot.slane %v474, %v486
    %v488 = vlaneseq
    %v489 = vshrl.u32 %v488, 7
    %v490 = vsub.s32 %v483, %v489
    %v491 = vrot.slane %v475, %v490
    %v492 = vlaneseq
    %v493 = vshrl.u32 %v492, 7
    %v494 = vsub.s32 %v483, %v493
    %v495 = vrot.slane %v476, %v494
    %v496 = vlaneseq
    %v497 = vshrl.u32 %v496, 7
    %v498 = vsub.s32 %v483, %v497
    %v499 = vrot.slane %v477, %v498
    %vm500 = vcmask 1041409
    %v501 = vsel %vm500, %v491, %v487
    %vm502 = vcmask 1042434
    %v503 = vsel %vm502, %v495, %v501
    %vm504 = vcmask 1043459
    %v505 = vsel %vm504, %v499, %v503
    %vm507 = vcmask 60416
    %v508 = vsel %vm507, %v505, -inf
    %509 = vmax.xlane.f32.xlu0 %v508
    %v510 = vpop.xlane.xlu0 %509
    %v512 = vlaneseq
    %v513 = vshrl.u32 %v512, 7
    %v514 = vsub.s32 0, %v513
    %v515 = vrot.slane %v510, %v514
    %v516 = vlaneseq
    %v517 = vshrl.u32 %v516, 7
    %v518 = vsub.s32 1, %v517
    %v519 = vrot.slane %v510, %v518
    %v520 = vlaneseq
    %v521 = vshrl.u32 %v520, 7
    %v522 = vsub.s32 2, %v521
    %v523 = vrot.slane %v510, %v522
    %v524 = vlaneseq
    %v525 = vshrl.u32 %v524, 7
    %v526 = vsub.s32 3, %v525
    %v527 = vrot.slane %v510, %v526
    %v532 = vsub.f32 %v474, %v515
    %v533 = vsub.f32 %v475, %v519
    %v534 = vsub.f32 %v476, %v523
    %v535 = vsub.f32 %v477, %v527
    %v536 = vmul.f32 %v532, 1.442695
    %v537 = vpow.pop %v536
    %v538 = vmul.f32 %v533, 1.442695
    %v539 = vpow.pop %v538
    %v540 = vmul.f32 %v534, 1.442695
    %v541 = vpow.pop %v540
    %v542 = vmul.f32 %v535, 1.442695
    %v543 = vpow.pop %v542
    %548 = vset.pattern.permute.xlu0 0
    %549 = vperm.xlu0 %548, %v537
    %v550 = vpop.permute.xlu0 %549
    %551 = vset.pattern.permute.xlu0 0
    %552 = vperm.xlu0 %551, %v539
    %v553 = vpop.permute.xlu0 %552
    %554 = vset.pattern.permute.xlu0 0
    %555 = vperm.xlu0 %554, %v541
    %v556 = vpop.permute.xlu0 %555
    %557 = vset.pattern.permute.xlu0 0
    %558 = vperm.xlu0 %557, %v543
    %v559 = vpop.permute.xlu0 %558
    %v560 = vlaneseq
    %v561 = vshrl.u32 %v560, 7
    %v562 = vsub.s32 %v483, %v561
    %v563 = vrot.slane %v550, %v562
    %v564 = vlaneseq
    %v565 = vshrl.u32 %v564, 7
    %v566 = vsub.s32 %v483, %v565
    %v567 = vrot.slane %v553, %v566
    %v568 = vlaneseq
    %v569 = vshrl.u32 %v568, 7
    %v570 = vsub.s32 %v483, %v569
    %v571 = vrot.slane %v556, %v570
    %v572 = vlaneseq
    %v573 = vshrl.u32 %v572, 7
    %v574 = vsub.s32 %v483, %v573
    %v575 = vrot.slane %v559, %v574
    %v576 = vsel %vm500, %v567, %v563
    %v577 = vsel %vm502, %v571, %v576
    %v578 = vsel %vm504, %v575, %v577
    %v580 = vsel %vm507, %v578, 0.0
    %581 = vadd.xlane.f32.xlu0 %v580
    %v582 = vpop.xlane.xlu0 %581
    %v584 = vlaneseq
    %v585 = vshrl.u32 %v584, 7
    %v586 = vsub.s32 0, %v585
    %v587 = vrot.slane %v582, %v586
    %v588 = vlaneseq
    %v589 = vshrl.u32 %v588, 7
    %v590 = vsub.s32 1, %v589
    %v591 = vrot.slane %v582, %v590
    %v592 = vlaneseq
    %v593 = vshrl.u32 %v592, 7
    %v594 = vsub.s32 2, %v593
    %v595 = vrot.slane %v582, %v594
    %v596 = vlaneseq
    %v597 = vshrl.u32 %v596, 7
    %v598 = vsub.s32 3, %v597
    %v599 = vrot.slane %v582, %v598
    %v604 = vrcp.pop %v587
    %v605 = vmul.f32 %v537, %v604
    %v606 = vrcp.pop %v591
    %v607 = vmul.f32 %v539, %v606
    %v608 = vrcp.pop %v595
    %v609 = vmul.f32 %v541, %v608
    %v610 = vrcp.pop %v599
    %v611 = vmul.f32 %v543, %v610
    %613 = vset.pattern.permute.xlu0 0
    %614 = vperm.xlu0 %613, %v605
    %v615 = vpop.permute.xlu0 %614
    %618 = vset.pattern.permute.xlu0 0
    %619 = vperm.xlu0 %618, %v607
    %v620 = vpop.permute.xlu0 %619
    %623 = vset.pattern.permute.xlu0 0
    %624 = vperm.xlu0 %623, %v609
    %v625 = vpop.permute.xlu0 %624
    %628 = vset.pattern.permute.xlu0 0
    %629 = vperm.xlu0 %628, %v611
    %v630 = vpop.permute.xlu0 %629
    %v632 = vmul.f32 %v615, %v29
    %v633 = vmul.f32 %v620, %v30
    %v634 = vmul.f32 %v625, %v31
    %v635 = vmul.f32 %v630, %v32
    %v636 = vsel %vm37, %v632, 0.0
    %v637 = vrot.slane %v636, 4
    %v638 = vadd.f32 %v636, %v637
    %v639 = vrot.slane %v638, 2
    %v640 = vadd.f32 %v638, %v639
    %v641 = vrot.slane %v640, 1
    %v642 = vadd.f32 %v640, %v641
    %v643 = vsel %vm37, %v633, 0.0
    %v644 = vrot.slane %v643, 4
    %v645 = vadd.f32 %v643, %v644
    %v646 = vrot.slane %v645, 2
    %v647 = vadd.f32 %v645, %v646
    %v648 = vrot.slane %v647, 1
    %v649 = vadd.f32 %v647, %v648
    %v650 = vsel %vm37, %v634, 0.0
    %v651 = vrot.slane %v650, 4
    %v652 = vadd.f32 %v650, %v651
    %v653 = vrot.slane %v652, 2
    %v654 = vadd.f32 %v652, %v653
    %v655 = vrot.slane %v654, 1
    %v656 = vadd.f32 %v654, %v655
    %v657 = vsel %vm37, %v635, 0.0
    %v658 = vrot.slane %v657, 4
    %v659 = vadd.f32 %v657, %v658
    %v660 = vrot.slane %v659, 2
    %v661 = vadd.f32 %v659, %v660
    %v662 = vrot.slane %v661, 1
    %v663 = vadd.f32 %v661, %v662
    %v668 = vsel %vm500, %v649, %v642
    %v669 = vsel %vm502, %v656, %v668
    %v670 = vsel %vm504, %v663, %v669
    %vm672 = vcmask 257024
    %673 = vst.msk [vmem:[#allocation3] sm:$0xf] %vm672, %v670
    // Predicated region
    $region30: #{tpu_custom_call.1} parent=1 // pred_check
      _
    $region31: #{tpu_custom_call.1} parent=1 // pred_check_branch
      %675 = sbr.rel (0) target = $region33
    $region32: #{tpu_custom_call.1} parent=1 // pred_region
      %s677 = ssub.s32 64, 64
      %678 = vsyncadd [#allocation4], %s677
      %s680 = sshll.u32 [#allocation3], 4
      %s681 = int_to_ptr.vmem [resolvable:$true] %s680
      %683 = dma.vmem_to_hbm [thread:$0]  %s681, 64, %s7, [#allocation4]
    $region33: #{tpu_custom_call.1} parent=1 // pred_fallthru
      _
    // Predicated region
    $region34: #{tpu_custom_call.1} parent=1 // pred_check
      _
    $region35: #{tpu_custom_call.1} parent=1 // pred_check_branch
      %685 = sbr.rel (0) target = $region37
    $region36: #{tpu_custom_call.1} parent=1 // pred_region
      %686 = dma.done [#allocation4], 64
    $region37: #{tpu_custom_call.1} parent=1 // pred_fallthru
      _
    %687 = vsyncpa [#allocation4], 1

// kernel: tpu_custom_call.1
$region0: #{tpu_custom_call.1}
  #allocation0 [shape = 'u32[]', space=smem, size = 0x4, offset = 0x4, fixed_abs, tag = 'smem constant byte address 0x4 - core index']
  #allocation1 [shape = 'u32[144,128]{1,0:T(1,128)}', space=vmem, size = 0x12000, scoped, tag = 'internal scratch']
  #allocation2 [shape = 'f32[1,1]{1,0:T(1,128)S(1)}', space=vmem, size = 0x200, scoped, tag = 'scoped memory for tpu_custom_call.1']
  %s0 = inlined_call_operand.vmem [shape: f32[4,8,32], index: 0, kind: input, shape index: {}]
  %s1 = inlined_call_operand.vmem [shape: f32[4,32], index: 1, kind: input, shape index: {}]
  %s2 = inlined_call_operand.vmem [shape: f32[4,32], index: 2, kind: input, shape index: {}]
  %s3 = inlined_call_operand.vmem [shape: f32[32,32], index: 3, kind: input, shape index: {}]
  %s4 = inlined_call_operand.vmem [shape: f32[64,32], index: 4, kind: input, shape index: {}]
  %s5 = inlined_call_operand.vmem [shape: f32[1,32], index: 5, kind: input, shape index: {}]
  %s6 = inlined_call_operand.<no memory space> [shape: f32[1,1], index: 6, kind: input, shape index: {}]
  %s7 = inlined_call_operand.hbm [shape: f32[4,32], index: 7, kind: output, shape index: {}]
  %s8 = sld [smem:[#allocation0]]
  $region38: #{tpu_custom_call.1} parent=0
    _
  %s10 = ssub.s32 1, %s8
  %s11 = scalar_select 0, %s10, %s8
  %v12 = vstv %s6
  %13 = vst [vmem:[#allocation2] sm:$0x1] %v12
  $region1: #{tpu_custom_call.1} parent=0
    #allocation3 [shape = 'u8[2048]{0}', space=vmem, size = 0x800, scoped, tag = 'output window, operand 0, single buffered']
    #allocation4 [shape = 's32[1]{0}', space=sflag, size = 0x4, scoped, tag = 'scoped memory for tpu_custom_call.1']
    %14 = vsyncpa [#allocation4], 0
    // Predicated region
    $region2: #{tpu_custom_call.1} parent=1 // pred_check
      _
    $region3: #{tpu_custom_call.1} parent=1 // pred_check_branch
      %16 = sbr.rel (0) target = $region5
    $region4: #{tpu_custom_call.1} parent=1 // pred_region
      _
    $region5: #{tpu_custom_call.1} parent=1 // pred_fallthru
      _
    // Predicated region
    $region6: #{tpu_custom_call.1} parent=1 // pred_check
      _
    $region7: #{tpu_custom_call.1} parent=1 // pred_check_branch
      %18 = sbr.rel (0) target = $region9
    $region8: #{tpu_custom_call.1} parent=1 // pred_region
      _
    $region9: #{tpu_custom_call.1} parent=1 // pred_fallthru
      _
    // Predicated region
    $region10: #{tpu_custom_call.1} parent=1 // pred_check
      _
    $region11: #{tpu_custom_call.1} parent=1 // pred_check_branch
      %20 = sbr.rel (0) target = $region13
    $region12: #{tpu_custom_call.1} parent=1 // pred_region
      _
    $region13: #{tpu_custom_call.1} parent=1 // pred_fallthru
      _
    // Predicated region
    $region14: #{tpu_custom_call.1} parent=1 // pred_check
      _
    $region15: #{tpu_custom_call.1} parent=1 // pred_check_branch
      %22 = sbr.rel (0) target = $region17
    $region16: #{tpu_custom_call.1} parent=1 // pred_region
      _
    $region17: #{tpu_custom_call.1} parent=1 // pred_fallthru
      _
    // Predicated region
    $region18: #{tpu_custom_call.1} parent=1 // pred_check
      _
    $region19: #{tpu_custom_call.1} parent=1 // pred_check_branch
      %24 = sbr.rel (0) target = $region21
    $region20: #{tpu_custom_call.1} parent=1 // pred_region
      _
    $region21: #{tpu_custom_call.1} parent=1 // pred_fallthru
      _
    // Predicated region
    $region22: #{tpu_custom_call.1} parent=1 // pred_check
      _
    $region23: #{tpu_custom_call.1} parent=1 // pred_check_branch
      %26 = sbr.rel (0) target = $region25
    $region24: #{tpu_custom_call.1} parent=1 // pred_region
      _
    $region25: #{tpu_custom_call.1} parent=1 // pred_fallthru
      _
    // Predicated region
    $region26: #{tpu_custom_call.1} parent=1 // pred_check
      _
    $region27: #{tpu_custom_call.1} parent=1 // pred_check_branch
      %28 = sbr.rel (0) target = $region29
    $region28: #{tpu_custom_call.1} parent=1 // pred_region
      _
    $region29: #{tpu_custom_call.1} parent=1 // pred_fallthru
      _
    %v29 = vld [vmem:[%s0] sm:$0xff]
    %v30 = vld [vmem:[%s0 + $0x8] sm:$0xff]
    %v31 = vld [vmem:[%s0 + $0x10] sm:$0xff]
    %v32 = vld [vmem:[%s0 + $0x18] sm:$0xff]
    %v33 = vld [vmem:[%s3] sm:$0xff]
    %v34 = vld [vmem:[%s3 + $0x8] sm:$0xff]
    %v35 = vld [vmem:[%s3 + $0x10] sm:$0xff]
    %v36 = vld [vmem:[%s3 + $0x18] sm:$0xff]
    %vm37 = vcmask 261120
    %v39 = vsel %vm37, %v29, 0
    %v42 = vsel %vm37, %v30, 0
    %v45 = vsel %vm37, %v31, 0
    %v48 = vsel %vm37, %v32, 0
    %50 = vmatprep.subr.mxu0 0.0
    %51 = vmatpush1.msra.mxu0 %v33
    %52 = vmatprep.subr.mxu0 0.0
    %53 = vmatpush1.msra.mxu0 %v34
    %54 = vmatprep.subr.mxu0 0.0
    %55 = vmatpush1.msra.mxu0 %v35
    %56 = vmatprep.subr.mxu0 0.0
    %57 = vmatpush1.msra.mxu0 %v36
    %58 = vmatprep.subr.mxu0 0.0
    %59 = vmatpush1.msra.mxu0 0.0
    %60 = vmatprep.subr.mxu0 0.0
    %61 = vmatpush1.msra.mxu0 0.0
    %62 = vmatprep.subr.mxu0 0.0
    %63 = vmatpush1.msra.mxu0 0.0
    %64 = vmatprep.subr.mxu0 0.0
    %65 = vmatpush1.msra.mxu0 0.0
    %66 = vmatprep.subr.mxu0 0.0
    %67 = vmatpush1.msra.mxu0 0.0
    %68 = vmatprep.subr.mxu0 0.0
    %69 = vmatpush1.msra.mxu0 0.0
    %70 = vmatprep.subr.mxu0 0.0
    %71 = vmatpush1.msra.mxu0 0.0
    %72 = vmatprep.subr.mxu0 0.0
    %73 = vmatpush1.msra.mxu0 0.0
    %74 = vmatprep.subr.mxu0 0.0
    %75 = vmatpush1.msra.mxu0 0.0
    %76 = vmatprep.subr.mxu0 0.0
    %77 = vmatpush1.msra.mxu0 0.0
    %78 = vmatprep.subr.mxu0 0.0
    %79 = vmatpush1.msra.mxu0 0.0
    %80 = vmatprep.subr.mxu0 0.0
    %81 = vmatpush1.msra.mxu0 0.0
    %82 = vmatprep.subr.mxu0 0.0
    %83 = vmatpush1.msra.mxu0 0.0
    %84 = vmatprep.subr.mxu0 0.0
    %85 = vmatpush1.msra.mxu0 0.0
    %86 = vmatprep.subr.mxu0 0.0
    %87 = vmatpush1.msra.mxu0 0.0
    %88 = vmatprep.subr.mxu0 0.0
    %89 = vmatpush1.msra.mxu0 0.0
    %90 = vmatprep.subr.mxu0 0.0
    %91 = vmatpush1.msra.mxu0 0.0
    %92 = vmatprep.subr.mxu0 0.0
    %93 = vmatpush1.msra.mxu0 0.0
    %94 = vmatprep.subr.mxu0 0.0
    %95 = vmatpush1.msra.mxu0 0.0
    %96 = vmatprep.subr.mxu0 0.0
    %97 = vmatpush1.msra.mxu0 0.0
    %98 = vmatprep.subr.mxu0 0.0
    %99 = vmatpush1.msra.mxu0 0.0
    %100 = vmatprep.subr.mxu0 0.0
    %101 = vmatpush1.msra.mxu0 0.0
    %102 = vmatprep.subr.mxu0 0.0
    %103 = vmatpush1.msra.mxu0 0.0
    %104 = vmatprep.subr.mxu0 0.0
    %105 = vmatpush1.msra.mxu0 0.0
    %106 = vmatprep.subr.mxu0 0.0
    %107 = vmatpush1.msra.mxu0 0.0
    %108 = vmatprep.subr.mxu0 0.0
    %109 = vmatpush1.msra.mxu0 0.0
    %110 = vmatprep.subr.mxu0 0.0
    %111 = vmatpush1.msra.mxu0 0.0
    %112 = vmatprep.subr.mxu0 0.0
    %113 = vmatpush1.msra.mxu0 0.0
    %114 = vmatprep.mubr.f32.mxu0 0.0
    %115 = vmatmul.mubr.f32.gmra.mrb[0].mxu0 %v39
    %v116 = vpop.f32.mrb[0].mxu0
    %v117 = vadd.f32 0.0, %v116
    %v118 = vpop.f32.mrb[0].mxu0
    %119 = vmatprep.mubr.f32.mxu0 0.0
    %120 = vmatmul.mubr.f32.gmra.mrb[0].mxu0 %v42
    %v121 = vpop.f32.mrb[0].mxu0
    %v122 = vadd.f32 0.0, %v121
    %v123 = vpop.f32.mrb[0].mxu0
    %124 = vmatprep.mubr.f32.mxu0 0.0
    %125 = vmatmul.mubr.f32.gmra.mrb[0].mxu0 %v45
    %v126 = vpop.f32.mrb[0].mxu0
    %v127 = vadd.f32 0.0, %v126
    %v128 = vpop.f32.mrb[0].mxu0
    %129 = vmatprep.mubr.f32.mxu0 0.0
    %130 = vmatmul.mubr.f32.gmra.mrb[0].mxu0 %v48
    %v131 = vpop.f32.mrb[0].mxu0
    %v132 = vadd.f32 0.0, %v131
    %v133 = vpop.f32.mrb[0].mxu0
    %134 = vdwg.mxu0
    %v135 = vld [vmem:[%s1] sm:$0xf]
    %v138 = vunpack.c.l.s4 1966171168
    %v139 = vunpack.c.0.s8 %v138
    %v140 = vlaneseq
    %v141 = vshrl.u32 %v140, 7
    %v142 = vsub.s32 %v139, %v141
    %v143 = vrot.slane %v135, %v142
    %v144 = vcombine.high %v143, %v143
    %v146 = vunpack.c.l.s4 1966171168
    %v147 = vunpack.c.0.s8 %v146
    %v148 = vlaneseq
    %v149 = vshrl.u32 %v148, 7
    %v150 = vsub.s32 %v147, %v149
    %v151 = vrot.slane %v143, %v150
    %v153 = vunpack.c.l.s4 1966171168
    %v154 = vunpack.c.0.s8 %v153
    %v155 = vlaneseq
    %v156 = vshrl.u32 %v155, 7
    %v157 = vsub.s32 %v154, %v156
    %v158 = vrot.slane %v144, %v157
    %v159 = vcombine.high %v151, %v151
    %v160 = vcombine.high %v158, %v158
    %v161 = vlaneseq
    %v162 = vshrl.u32 %v161, 7
    %v163 = vsub.s32 0, %v162
    %v164 = vrot.slane %v151, %v163
    %v165 = vlaneseq
    %v166 = vshrl.u32 %v165, 7
    %v167 = vsub.s32 0, %v166
    %v168 = vrot.slane %v158, %v167
    %v169 = vlaneseq
    %v170 = vshrl.u32 %v169, 7
    %v171 = vsub.s32 0, %v170
    %v172 = vrot.slane %v159, %v171
    %v173 = vlaneseq
    %v174 = vshrl.u32 %v173, 7
    %v175 = vsub.s32 0, %v174
    %v176 = vrot.slane %v160, %v175
    %v181 = vmul.f32 %v117, %v164
    %v182 = vmul.f32 %v122, %v168
    %v183 = vmul.f32 %v127, %v172
    %v184 = vmul.f32 %v132, %v176
    %v185 = vld [vmem:[%s4] sm:$0xff]
    %v186 = vld [vmem:[%s4 + $0x8] sm:$0xff]
    %v187 = vld [vmem:[%s4 + $0x10] sm:$0xff]
    %v188 = vld [vmem:[%s4 + $0x18] sm:$0xff]
    %v189 = vld [vmem:[%s4 + $0x20] sm:$0xff]
    %v190 = vld [vmem:[%s4 + $0x28] sm:$0xff]
    %v191 = vld [vmem:[%s4 + $0x30] sm:$0xff]
    %v192 = vld [vmem:[%s4 + $0x38] sm:$0xff]
    %v194 = vsel %vm37, %v181, 0
    %v197 = vsel %vm37, %v182, 0
    %v200 = vsel %vm37, %v183, 0
    %v203 = vsel %vm37, %v184, 0
    %205 = vmatprep.subr.mxu0 0.0
    %206 = vmatpush1.msra.mxu0 %v189
    %207 = vmatprep.subr.mxu0 0.0
    %208 = vmatpush1.msra.mxu0 %v190
    %209 = vmatprep.subr.mxu0 0.0
    %210 = vmatpush1.msra.mxu0 %v191
    %211 = vmatprep.subr.mxu0 0.0
    %212 = vmatpush1.msra.mxu0 %v192
    %213 = vmatprep.subr.mxu0 0.0
    %214 = vmatpush1.msra.mxu0 0.0
    %215 = vmatprep.subr.mxu0 0.0
    %216 = vmatpush1.msra.mxu0 0.0
    %217 = vmatprep.subr.mxu0 0.0
    %218 = vmatpush1.msra.mxu0 0.0
    %219 = vmatprep.subr.mxu0 0.0
    %220 = vmatpush1.msra.mxu0 0.0
    %221 = vmatprep.subr.mxu0 0.0
    %222 = vmatpush1.msra.mxu0 0.0
    %223 = vmatprep.subr.mxu0 0.0
    %224 = vmatpush1.msra.mxu0 0.0
    %225 = vmatprep.subr.mxu0 0.0
    %226 = vmatpush1.msra.mxu0 0.0
    %227 = vmatprep.subr.mxu0 0.0
    %228 = vmatpush1.msra.mxu0 0.0
    %229 = vmatprep.subr.mxu0 0.0
    %230 = vmatpush1.msra.mxu0 0.0
    %231 = vmatprep.subr.mxu0 0.0
    %232 = vmatpush1.msra.mxu0 0.0
    %233 = vmatprep.subr.mxu0 0.0
    %234 = vmatpush1.msra.mxu0 0.0
    %235 = vmatprep.subr.mxu0 0.0
    %236 = vmatpush1.msra.mxu0 0.0
    %237 = vmatprep.subr.mxu0 0.0
    %238 = vmatpush1.msra.mxu0 0.0
    %239 = vmatprep.subr.mxu0 0.0
    %240 = vmatpush1.msra.mxu0 0.0
    %241 = vmatprep.subr.mxu0 0.0
    %242 = vmatpush1.msra.mxu0 0.0
    %243 = vmatprep.subr.mxu0 0.0
    %244 = vmatpush1.msra.mxu0 0.0
    %245 = vmatprep.subr.mxu0 0.0
    %246 = vmatpush1.msra.mxu0 0.0
    %247 = vmatprep.subr.mxu0 0.0
    %248 = vmatpush1.msra.mxu0 0.0
    %249 = vmatprep.subr.mxu0 0.0
    %250 = vmatpush1.msra.mxu0 0.0
    %251 = vmatprep.subr.mxu0 0.0
    %252 = vmatpush1.msra.mxu0 0.0
    %253 = vmatprep.subr.mxu0 0.0
    %254 = vmatpush1.msra.mxu0 0.0
    %255 = vmatprep.subr.mxu0 0.0
    %256 = vmatpush1.msra.mxu0 0.0
    %257 = vmatprep.subr.mxu0 0.0
    %258 = vmatpush1.msra.mxu0 0.0
    %259 = vmatprep.subr.mxu0 0.0
    %260 = vmatpush1.msra.mxu0 0.0
    %261 = vmatprep.subr.mxu0 0.0
    %262 = vmatpush1.msra.mxu0 0.0
    %263 = vmatprep.subr.mxu0 0.0
    %264 = vmatpush1.msra.mxu0 0.0
    %265 = vmatprep.subr.mxu0 0.0
    %266 = vmatpush1.msra.mxu0 0.0
    %267 = vmatprep.subr.mxu0 0.0
    %268 = vmatpush1.msra.mxu0 0.0
    %269 = vmatprep.mubr.f32.mxu0 0.0
    %270 = vmatmul.mubr.f32.gmra.mrb[0].mxu0 %v194
    %v271 = vpop.f32.mrb[0].mxu0
    %v272 = vadd.f32 0.0, %v271
    %v273 = vpop.f32.mrb[0].mxu0
    %274 = vmatprep.mubr.f32.mxu0 0.0
    %275 = vmatmul.mubr.f32.gmra.mrb[0].mxu0 %v197
    %v276 = vpop.f32.mrb[0].mxu0
    %v277 = vadd.f32 0.0, %v276
    %v278 = vpop.f32.mrb[0].mxu0
    %279 = vmatprep.mubr.f32.mxu0 0.0
    %280 = vmatmul.mubr.f32.gmra.mrb[0].mxu0 %v200
    %v281 = vpop.f32.mrb[0].mxu0
    %v282 = vadd.f32 0.0, %v281
    %v283 = vpop.f32.mrb[0].mxu0
    %284 = vmatprep.mubr.f32.mxu0 0.0
    %285 = vmatmul.mubr.f32.gmra.mrb[0].mxu0 %v203
    %v286 = vpop.f32.mrb[0].mxu0
    %v287 = vadd.f32 0.0, %v286
    %v288 = vpop.f32.mrb[0].mxu0
    %289 = vdwg.mxu0
    %v291 = vsel %vm37, %v117, 0
    %v294 = vsel %vm37, %v122, 0
    %v297 = vsel %vm37, %v127, 0
    %v300 = vsel %vm37, %v132, 0
    %302 = vmatprep.subr.mxu0 0.0
    %303 = vmatpush1.msra.mxu0 %v185
    %304 = vmatprep.subr.mxu0 0.0
    %305 = vmatpush1.msra.mxu0 %v186
    %306 = vmatprep.subr.mxu0 0.0
    %307 = vmatpush1.msra.mxu0 %v187
    %308 = vmatprep.subr.mxu0 0.0
    %309 = vmatpush1.msra.mxu0 %v188
    %310 = vmatprep.subr.mxu0 0.0
    %311 = vmatpush1.msra.mxu0 0.0
    %312 = vmatprep.subr.mxu0 0.0
    %313 = vmatpush1.msra.mxu0 0.0
    %314 = vmatprep.subr.mxu0 0.0
    %315 = vmatpush1.msra.mxu0 0.0
    %316 = vmatprep.subr.mxu0 0.0
    %317 = vmatpush1.msra.mxu0 0.0
    %318 = vmatprep.subr.mxu0 0.0
    %319 = vmatpush1.msra.mxu0 0.0
    %320 = vmatprep.subr.mxu0 0.0
    %321 = vmatpush1.msra.mxu0 0.0
    %322 = vmatprep.subr.mxu0 0.0
    %323 = vmatpush1.msra.mxu0 0.0
    %324 = vmatprep.subr.mxu0 0.0
    %325 = vmatpush1.msra.mxu0 0.0
    %326 = vmatprep.subr.mxu0 0.0
    %327 = vmatpush1.msra.mxu0 0.0
    %328 = vmatprep.subr.mxu0 0.0
    %329 = vmatpush1.msra.mxu0 0.0
    %330 = vmatprep.subr.mxu0 0.0
    %331 = vmatpush1.msra.mxu0 0.0
    %332 = vmatprep.subr.mxu0 0.0
    %333 = vmatpush1.msra.mxu0 0.0
    %334 = vmatprep.subr.mxu0 0.0
    %335 = vmatpush1.msra.mxu0 0.0
    %336 = vmatprep.subr.mxu0 0.0
    %337 = vmatpush1.msra.mxu0 0.0
    %338 = vmatprep.subr.mxu0 0.0
    %339 = vmatpush1.msra.mxu0 0.0
    %340 = vmatprep.subr.mxu0 0.0
    %341 = vmatpush1.msra.mxu0 0.0
    %342 = vmatprep.subr.mxu0 0.0
    %343 = vmatpush1.msra.mxu0 0.0
    %344 = vmatprep.subr.mxu0 0.0
    %345 = vmatpush1.msra.mxu0 0.0
    %346 = vmatprep.subr.mxu0 0.0
    %347 = vmatpush1.msra.mxu0 0.0
    %348 = vmatprep.subr.mxu0 0.0
    %349 = vmatpush1.msra.mxu0 0.0
    %350 = vmatprep.subr.mxu0 0.0
    %351 = vmatpush1.msra.mxu0 0.0
    %352 = vmatprep.subr.mxu0 0.0
    %353 = vmatpush1.msra.mxu0 0.0
    %354 = vmatprep.subr.mxu0 0.0
    %355 = vmatpush1.msra.mxu0 0.0
    %356 = vmatprep.subr.mxu0 0.0
    %357 = vmatpush1.msra.mxu0 0.0
    %358 = vmatprep.subr.mxu0 0.0
    %359 = vmatpush1.msra.mxu0 0.0
    %360 = vmatprep.subr.mxu0 0.0
    %361 = vmatpush1.msra.mxu0 0.0
    %362 = vmatprep.subr.mxu0 0.0
    %363 = vmatpush1.msra.mxu0 0.0
    %364 = vmatprep.subr.mxu0 0.0
    %365 = vmatpush1.msra.mxu0 0.0
    %366 = vmatprep.mubr.f32.mxu0 0.0
    %367 = vmatmul.mubr.f32.gmra.mrb[0].mxu0 %v291
    %v368 = vpop.f32.mrb[0].mxu0
    %v369 = vadd.f32 %v272, %v368
    %v370 = vpop.f32.mrb[0].mxu0
    %371 = vmatprep.mubr.f32.mxu0 0.0
    %372 = vmatmul.mubr.f32.gmra.mrb[0].mxu0 %v294
    %v373 = vpop.f32.mrb[0].mxu0
    %v374 = vadd.f32 %v277, %v373
    %v375 = vpop.f32.mrb[0].mxu0
    %376 = vmatprep.mubr.f32.mxu0 0.0
    %377 = vmatmul.mubr.f32.gmra.mrb[0].mxu0 %v297
    %v378 = vpop.f32.mrb[0].mxu0
    %v379 = vadd.f32 %v282, %v378
    %v380 = vpop.f32.mrb[0].mxu0
    %381 = vmatprep.mubr.f32.mxu0 0.0
    %382 = vmatmul.mubr.f32.gmra.mrb[0].mxu0 %v300
    %v383 = vpop.f32.mrb[0].mxu0
    %v384 = vadd.f32 %v287, %v383
    %v385 = vpop.f32.mrb[0].mxu0
    %386 = vdwg.mxu0
    %v387 = vld [vmem:[%s2] sm:$0xf]
    %v390 = vunpack.c.l.s4 1966171168
    %v391 = vunpack.c.0.s8 %v390
    %v392 = vlaneseq
    %v393 = vshrl.u32 %v392, 7
    %v394 = vsub.s32 %v391, %v393
    %v395 = vrot.slane %v387, %v394
    %v396 = vcombine.high %v395, %v395
    %v398 = vunpack.c.l.s4 1966171168
    %v399 = vunpack.c.0.s8 %v398
    %v400 = vlaneseq
    %v401 = vshrl.u32 %v400, 7
    %v402 = vsub.s32 %v399, %v401
    %v403 = vrot.slane %v395, %v402
    %v405 = vunpack.c.l.s4 1966171168
    %v406 = vunpack.c.0.s8 %v405
    %v407 = vlaneseq
    %v408 = vshrl.u32 %v407, 7
    %v409 = vsub.s32 %v406, %v408
    %v410 = vrot.slane %v396, %v409
    %v411 = vcombine.high %v403, %v403
    %v412 = vcombine.high %v410, %v410
    %v413 = vlaneseq
    %v414 = vshrl.u32 %v413, 7
    %v415 = vsub.s32 0, %v414
    %v416 = vrot.slane %v403, %v415
    %v417 = vlaneseq
    %v418 = vshrl.u32 %v417, 7
    %v419 = vsub.s32 0, %v418
    %v420 = vrot.slane %v410, %v419
    %v421 = vlaneseq
    %v422 = vshrl.u32 %v421, 7
    %v423 = vsub.s32 0, %v422
    %v424 = vrot.slane %v411, %v423
    %v425 = vlaneseq
    %v426 = vshrl.u32 %v425, 7
    %v427 = vsub.s32 0, %v426
    %v428 = vrot.slane %v412, %v427
    %v433 = vadd.f32 %v369, %v416
    %v434 = vadd.f32 %v374, %v420
    %v435 = vadd.f32 %v379, %v424
    %v436 = vadd.f32 %v384, %v428
    %v437 = vmax.f32 %v433, 0.0
    %v438 = vmax.f32 %v434, 0.0
    %v439 = vmax.f32 %v435, 0.0
    %v440 = vmax.f32 %v436, 0.0
    %v441 = vld [vmem:[%s5] sm:$0x1]
    %v443 = vlaneseq
    %v444 = vshrl.u32 %v443, 7
    %v445 = vsub.s32 0, %v444
    %v446 = vrot.slane %v441, %v445
    %v448 = vmul.f32 %v437, %v446
    %v449 = vmul.f32 %v438, %v446
    %v450 = vmul.f32 %v439, %v446
    %v451 = vmul.f32 %v440, %v446
    %v452 = vsel %vm37, %v448, 0.0
    %453 = vadd.xlane.f32.xlu0 %v452
    %v454 = vpop.xlane.xlu0 %453
    %v455 = vsel %vm37, %v449, 0.0
    %456 = vadd.xlane.f32.xlu0 %v455
    %v457 = vpop.xlane.xlu0 %456
    %v458 = vsel %vm37, %v450, 0.0
    %459 = vadd.xlane.f32.xlu0 %v458
    %v460 = vpop.xlane.xlu0 %459
    %v461 = vsel %vm37, %v451, 0.0
    %462 = vadd.xlane.f32.xlu0 %v461
    %v463 = vpop.xlane.xlu0 %462
    %v464 = vld [vmem:[#allocation2] sm:$0x1]
    %v466 = vlaneseq
    %v467 = vshrl.u32 %v466, 7
    %v468 = vsub.s32 0, %v467
    %v469 = vrot.slane %v464, %v468
    %470 = vset.pattern.permute.xlu0 0
    %471 = vperm.xlu0 %470, %v469
    %v472 = vpop.permute.xlu0 %471
    %v474 = vadd.f32 %v454, %v472
    %v475 = vadd.f32 %v457, %v472
    %v476 = vadd.f32 %v460, %v472
    %v477 = vadd.f32 %v463, %v472
    %v482 = vlaneseq
    %v483 = vand.u32 %v482, 127
    %v484 = vlaneseq
    %v485 = vshrl.u32 %v484, 7
    %v486 = vsub.s32 %v483, %v485
    %v487 = vrot.slane %v474, %v486
    %v488 = vlaneseq
    %v489 = vshrl.u32 %v488, 7
    %v490 = vsub.s32 %v483, %v489
    %v491 = vrot.slane %v475, %v490
    %v492 = vlaneseq
    %v493 = vshrl.u32 %v492, 7
    %v494 = vsub.s32 %v483, %v493
    %v495 = vrot.slane %v476, %v494
    %v496 = vlaneseq
    %v497 = vshrl.u32 %v496, 7
    %v498 = vsub.s32 %v483, %v497
    %v499 = vrot.slane %v477, %v498
    %vm500 = vcmask 1041409
    %v501 = vsel %vm500, %v491, %v487
    %vm502 = vcmask 1042434
    %v503 = vsel %vm502, %v495, %v501
    %vm504 = vcmask 1043459
    %v505 = vsel %vm504, %v499, %v503
    %vm507 = vcmask 60416
    %v508 = vsel %vm507, %v505, -inf
    %509 = vmax.xlane.f32.xlu0 %v508
    %v510 = vpop.xlane.xlu0 %509
    %v512 = vlaneseq
    %v513 = vshrl.u32 %v512, 7
    %v514 = vsub.s32 0, %v513
    %v515 = vrot.slane %v510, %v514
    %v516 = vlaneseq
    %v517 = vshrl.u32 %v516, 7
    %v518 = vsub.s32 1, %v517
    %v519 = vrot.slane %v510, %v518
    %v520 = vlaneseq
    %v521 = vshrl.u32 %v520, 7
    %v522 = vsub.s32 2, %v521
    %v523 = vrot.slane %v510, %v522
    %v524 = vlaneseq
    %v525 = vshrl.u32 %v524, 7
    %v526 = vsub.s32 3, %v525
    %v527 = vrot.slane %v510, %v526
    %v532 = vsub.f32 %v474, %v515
    %v533 = vsub.f32 %v475, %v519
    %v534 = vsub.f32 %v476, %v523
    %v535 = vsub.f32 %v477, %v527
    %v536 = vmul.f32 %v532, 1.442695
    %v537 = vpow.pop %v536
    %v538 = vmul.f32 %v533, 1.442695
    %v539 = vpow.pop %v538
    %v540 = vmul.f32 %v534, 1.442695
    %v541 = vpow.pop %v540
    %v542 = vmul.f32 %v535, 1.442695
    %v543 = vpow.pop %v542
    %548 = vset.pattern.permute.xlu0 0
    %549 = vperm.xlu0 %548, %v537
    %v550 = vpop.permute.xlu0 %549
    %551 = vset.pattern.permute.xlu0 0
    %552 = vperm.xlu0 %551, %v539
    %v553 = vpop.permute.xlu0 %552
    %554 = vset.pattern.permute.xlu0 0
    %555 = vperm.xlu0 %554, %v541
    %v556 = vpop.permute.xlu0 %555
    %557 = vset.pattern.permute.xlu0 0
    %558 = vperm.xlu0 %557, %v543
    %v559 = vpop.permute.xlu0 %558
    %v560 = vlaneseq
    %v561 = vshrl.u32 %v560, 7
    %v562 = vsub.s32 %v483, %v561
    %v563 = vrot.slane %v550, %v562
    %v564 = vlaneseq
    %v565 = vshrl.u32 %v564, 7
    %v566 = vsub.s32 %v483, %v565
    %v567 = vrot.slane %v553, %v566
    %v568 = vlaneseq
    %v569 = vshrl.u32 %v568, 7
    %v570 = vsub.s32 %v483, %v569
    %v571 = vrot.slane %v556, %v570
    %v572 = vlaneseq
    %v573 = vshrl.u32 %v572, 7
    %v574 = vsub.s32 %v483, %v573
    %v575 = vrot.slane %v559, %v574
    %v576 = vsel %vm500, %v567, %v563
    %v577 = vsel %vm502, %v571, %v576
    %v578 = vsel %vm504, %v575, %v577
    %v580 = vsel %vm507, %v578, 0.0
    %581 = vadd.xlane.f32.xlu0 %v580
    %v582 = vpop.xlane.xlu0 %581
    %v584 = vlaneseq
    %v585 = vshrl.u32 %v584, 7
    %v586 = vsub.s32 0, %v585
    %v587 = vrot.slane %v582, %v586
    %v588 = vlaneseq
    %v589 = vshrl.u32 %v588, 7
    %v590 = vsub.s32 1, %v589
    %v591 = vrot.slane %v582, %v590
    %v592 = vlaneseq
    %v593 = vshrl.u32 %v592, 7
    %v594 = vsub.s32 2, %v593
    %v595 = vrot.slane %v582, %v594
    %v596 = vlaneseq
    %v597 = vshrl.u32 %v596, 7
    %v598 = vsub.s32 3, %v597
    %v599 = vrot.slane %v582, %v598
    %v604 = vrcp.pop %v587
    %v605 = vmul.f32 %v537, %v604
    %v606 = vrcp.pop %v591
    %v607 = vmul.f32 %v539, %v606
    %v608 = vrcp.pop %v595
    %v609 = vmul.f32 %v541, %v608
    %v610 = vrcp.pop %v599
    %v611 = vmul.f32 %v543, %v610
    %613 = vset.pattern.permute.xlu0 0
    %614 = vperm.xlu0 %613, %v605
    %v615 = vpop.permute.xlu0 %614
    %618 = vset.pattern.permute.xlu0 0
    %619 = vperm.xlu0 %618, %v607
    %v620 = vpop.permute.xlu0 %619
    %623 = vset.pattern.permute.xlu0 0
    %624 = vperm.xlu0 %623, %v609
    %v625 = vpop.permute.xlu0 %624
    %628 = vset.pattern.permute.xlu0 0
    %629 = vperm.xlu0 %628, %v611
    %v630 = vpop.permute.xlu0 %629
    %v632 = vmul.f32 %v615, %v29
    %v633 = vmul.f32 %v620, %v30
    %v634 = vmul.f32 %v625, %v31
    %v635 = vmul.f32 %v630, %v32
    %v636 = vsel %vm37, %v632, 0.0
    %v637 = vrot.slane %v636, 4
    %v638 = vadd.f32 %v636, %v637
    %v639 = vrot.slane %v638, 2
    %v640 = vadd.f32 %v638, %v639
    %v641 = vrot.slane %v640, 1
    %v642 = vadd.f32 %v640, %v641
    %v643 = vsel %vm37, %v633, 0.0
    %v644 = vrot.slane %v643, 4
    %v645 = vadd.f32 %v643, %v644
    %v646 = vrot.slane %v645, 2
    %v647 = vadd.f32 %v645, %v646
    %v648 = vrot.slane %v647, 1
    %v649 = vadd.f32 %v647, %v648
    %v650 = vsel %vm37, %v634, 0.0
    %v651 = vrot.slane %v650, 4
    %v652 = vadd.f32 %v650, %v651
    %v653 = vrot.slane %v652, 2
    %v654 = vadd.f32 %v652, %v653
    %v655 = vrot.slane %v654, 1
    %v656 = vadd.f32 %v654, %v655
    %v657 = vsel %vm37, %v635, 0.0
    %v658 = vrot.slane %v657, 4
    %v659 = vadd.f32 %v657, %v658
    %v660 = vrot.slane %v659, 2
    %v661 = vadd.f32 %v659, %v660
    %v662 = vrot.slane %v661, 1
    %v663 = vadd.f32 %v661, %v662
    %v668 = vsel %vm500, %v649, %v642
    %v669 = vsel %vm502, %v656, %v668
    %v670 = vsel %vm504, %v663, %v669
    %vm672 = vcmask 257024
    %673 = vst.msk [vmem:[#allocation3] sm:$0xf] %vm672, %v670
    // Predicated region
    $region30: #{tpu_custom_call.1} parent=1 // pred_check
      _
    $region31: #{tpu_custom_call.1} parent=1 // pred_check_branch
      %675 = sbr.rel (0) target = $region33
    $region32: #{tpu_custom_call.1} parent=1 // pred_region
      %s677 = ssub.s32 64, 64
      %678 = vsyncadd [#allocation4], %s677
      %s680 = sshll.u32 [#allocation3], 4
      %s681 = int_to_ptr.vmem [resolvable:$true] %s680
      %683 = dma.vmem_to_hbm [thread:$0]  %s681, 64, %s7, [#allocation4]
    $region33: #{tpu_custom_call.1} parent=1 // pred_fallthru
      _
    // Predicated region
    $region34: #{tpu_custom_call.1} parent=1 // pred_check
      _
    $region35: #{tpu_custom_call.1} parent=1 // pred_check_branch
      %685 = sbr.rel (0) target = $region37
    $region36: #{tpu_custom_call.1} parent=1 // pred_region
      %686 = dma.done [#allocation4], 64
    $region37: #{tpu_custom_call.1} parent=1 // pred_fallthru
      _
    %687 = vsyncpa [#allocation4], 1

// kernel: tpu_custom_call.1
$region0: #{tpu_custom_call.1}
  #allocation0 [shape = 'u32[]', space=smem, size = 0x4, offset = 0x4, fixed_abs, tag = 'smem constant byte address 0x4 - core index']
  #allocation1 [shape = 'u32[144,128]{1,0:T(1,128)}', space=vmem, size = 0x12000, scoped, tag = 'internal scratch']
  #allocation2 [shape = 'f32[1,1]{1,0:T(1,128)S(1)}', space=vmem, size = 0x200, scoped, tag = 'scoped memory for tpu_custom_call.1']
  %s0 = inlined_call_operand.vmem [shape: f32[4,8,32], index: 0, kind: input, shape index: {}]
  %s1 = inlined_call_operand.vmem [shape: f32[4,32], index: 1, kind: input, shape index: {}]
  %s2 = inlined_call_operand.vmem [shape: f32[4,32], index: 2, kind: input, shape index: {}]
  %s3 = inlined_call_operand.vmem [shape: f32[32,32], index: 3, kind: input, shape index: {}]
  %s4 = inlined_call_operand.vmem [shape: f32[64,32], index: 4, kind: input, shape index: {}]
  %s5 = inlined_call_operand.vmem [shape: f32[1,32], index: 5, kind: input, shape index: {}]
  %s6 = inlined_call_operand.<no memory space> [shape: f32[1,1], index: 6, kind: input, shape index: {}]
  %s7 = inlined_call_operand.hbm [shape: f32[4,32], index: 7, kind: output, shape index: {}]
  %s8 = sld [smem:[#allocation0]]
  $region38: #{tpu_custom_call.1} parent=0
    _
  %s10 = ssub.s32 1, %s8
  %s11 = scalar_select 0, %s10, %s8
  %v12 = vstv %s6
  %13 = vst [vmem:[#allocation2] sm:$0x1] %v12
  $region1: #{tpu_custom_call.1} parent=0
    #allocation3 [shape = 'u8[2048]{0}', space=vmem, size = 0x800, scoped, tag = 'output window, operand 0, single buffered']
    #allocation4 [shape = 's32[1]{0}', space=sflag, size = 0x4, scoped, tag = 'scoped memory for tpu_custom_call.1']
    %14 = vsyncpa [#allocation4], 0
    // Predicated region
    $region2: #{tpu_custom_call.1} parent=1 // pred_check
      _
    $region3: #{tpu_custom_call.1} parent=1 // pred_check_branch
      %16 = sbr.rel (0) target = $region5
    $region4: #{tpu_custom_call.1} parent=1 // pred_region
      _
    $region5: #{tpu_custom_call.1} parent=1 // pred_fallthru
      _
    // Predicated region
    $region6: #{tpu_custom_call.1} parent=1 // pred_check
      _
    $region7: #{tpu_custom_call.1} parent=1 // pred_check_branch
      %18 = sbr.rel (0) target = $region9
    $region8: #{tpu_custom_call.1} parent=1 // pred_region
      _
    $region9: #{tpu_custom_call.1} parent=1 // pred_fallthru
      _
    // Predicated region
    $region10: #{tpu_custom_call.1} parent=1 // pred_check
      _
    $region11: #{tpu_custom_call.1} parent=1 // pred_check_branch
      %20 = sbr.rel (0) target = $region13
    $region12: #{tpu_custom_call.1} parent=1 // pred_region
      _
    $region13: #{tpu_custom_call.1} parent=1 // pred_fallthru
      _
    // Predicated region
    $region14: #{tpu_custom_call.1} parent=1 // pred_check
      _
    $region15: #{tpu_custom_call.1} parent=1 // pred_check_branch
      %22 = sbr.rel (0) target = $region17
    $region16: #{tpu_custom_call.1} parent=1 // pred_region
      _
    $region17: #{tpu_custom_call.1} parent=1 // pred_fallthru
      _
    // Predicated region
    $region18: #{tpu_custom_call.1} parent=1 // pred_check
      _
    $region19: #{tpu_custom_call.1} parent=1 // pred_check_branch
      %24 = sbr.rel (0) target = $region21
    $region20: #{tpu_custom_call.1} parent=1 // pred_region
      _
    $region21: #{tpu_custom_call.1} parent=1 // pred_fallthru
      _
    // Predicated region
    $region22: #{tpu_custom_call.1} parent=1 // pred_check
      _
    $region23: #{tpu_custom_call.1} parent=1 // pred_check_branch
      %26 = sbr.rel (0) target = $region25
    $region24: #{tpu_custom_call.1} parent=1 // pred_region
      _
    $region25: #{tpu_custom_call.1} parent=1 // pred_fallthru
      _
    // Predicated region
    $region26: #{tpu_custom_call.1} parent=1 // pred_check
      _
    $region27: #{tpu_custom_call.1} parent=1 // pred_check_branch
      %28 = sbr.rel (0) target = $region29
    $region28: #{tpu_custom_call.1} parent=1 // pred_region
      _
    $region29: #{tpu_custom_call.1} parent=1 // pred_fallthru
      _
    %v29 = vld [vmem:[%s0] sm:$0xff]
    %v30 = vld [vmem:[%s0 + $0x8] sm:$0xff]
    %v31 = vld [vmem:[%s0 + $0x10] sm:$0xff]
    %v32 = vld [vmem:[%s0 + $0x18] sm:$0xff]
    %v33 = vld [vmem:[%s3] sm:$0xff]
    %v34 = vld [vmem:[%s3 + $0x8] sm:$0xff]
    %v35 = vld [vmem:[%s3 + $0x10] sm:$0xff]
    %v36 = vld [vmem:[%s3 + $0x18] sm:$0xff]
    %vm37 = vcmask 261120
    %v39 = vsel %vm37, %v29, 0
    %v42 = vsel %vm37, %v30, 0
    %v45 = vsel %vm37, %v31, 0
    %v48 = vsel %vm37, %v32, 0
    %50 = vmatprep.subr.mxu0 0.0
    %51 = vmatpush1.msra.mxu0 %v33
    %52 = vmatprep.subr.mxu0 0.0
    %53 = vmatpush1.msra.mxu0 %v34
    %54 = vmatprep.subr.mxu0 0.0
    %55 = vmatpush1.msra.mxu0 %v35
    %56 = vmatprep.subr.mxu0 0.0
    %57 = vmatpush1.msra.mxu0 %v36
    %58 = vmatprep.subr.mxu0 0.0
    %59 = vmatpush1.msra.mxu0 0.0
    %60 = vmatprep.subr.mxu0 0.0
    %61 = vmatpush1.msra.mxu0 0.0
    %62 = vmatprep.subr.mxu0 0.0
    %63 = vmatpush1.msra.mxu0 0.0
    %64 = vmatprep.subr.mxu0 0.0
    %65 = vmatpush1.msra.mxu0 0.0
    %66 = vmatprep.subr.mxu0 0.0
    %67 = vmatpush1.msra.mxu0 0.0
    %68 = vmatprep.subr.mxu0 0.0
    %69 = vmatpush1.msra.mxu0 0.0
    %70 = vmatprep.subr.mxu0 0.0
    %71 = vmatpush1.msra.mxu0 0.0
    %72 = vmatprep.subr.mxu0 0.0
    %73 = vmatpush1.msra.mxu0 0.0
    %74 = vmatprep.subr.mxu0 0.0
    %75 = vmatpush1.msra.mxu0 0.0
    %76 = vmatprep.subr.mxu0 0.0
    %77 = vmatpush1.msra.mxu0 0.0
    %78 = vmatprep.subr.mxu0 0.0
    %79 = vmatpush1.msra.mxu0 0.0
    %80 = vmatprep.subr.mxu0 0.0
    %81 = vmatpush1.msra.mxu0 0.0
    %82 = vmatprep.subr.mxu0 0.0
    %83 = vmatpush1.msra.mxu0 0.0
    %84 = vmatprep.subr.mxu0 0.0
    %85 = vmatpush1.msra.mxu0 0.0
    %86 = vmatprep.subr.mxu0 0.0
    %87 = vmatpush1.msra.mxu0 0.0
    %88 = vmatprep.subr.mxu0 0.0
    %89 = vmatpush1.msra.mxu0 0.0
    %90 = vmatprep.subr.mxu0 0.0
    %91 = vmatpush1.msra.mxu0 0.0
    %92 = vmatprep.subr.mxu0 0.0
    %93 = vmatpush1.msra.mxu0 0.0
    %94 = vmatprep.subr.mxu0 0.0
    %95 = vmatpush1.msra.mxu0 0.0
    %96 = vmatprep.subr.mxu0 0.0
    %97 = vmatpush1.msra.mxu0 0.0
    %98 = vmatprep.subr.mxu0 0.0
    %99 = vmatpush1.msra.mxu0 0.0
    %100 = vmatprep.subr.mxu0 0.0
    %101 = vmatpush1.msra.mxu0 0.0
    %102 = vmatprep.subr.mxu0 0.0
    %103 = vmatpush1.msra.mxu0 0.0
    %104 = vmatprep.subr.mxu0 0.0
    %105 = vmatpush1.msra.mxu0 0.0
    %106 = vmatprep.subr.mxu0 0.0
    %107 = vmatpush1.msra.mxu0 0.0
    %108 = vmatprep.subr.mxu0 0.0
    %109 = vmatpush1.msra.mxu0 0.0
    %110 = vmatprep.subr.mxu0 0.0
    %111 = vmatpush1.msra.mxu0 0.0
    %112 = vmatprep.subr.mxu0 0.0
    %113 = vmatpush1.msra.mxu0 0.0
    %114 = vmatprep.mubr.f32.mxu0 0.0
    %115 = vmatmul.mubr.f32.gmra.mrb[0].mxu0 %v39
    %v116 = vpop.f32.mrb[0].mxu0
    %v117 = vadd.f32 0.0, %v116
    %v118 = vpop.f32.mrb[0].mxu0
    %119 = vmatprep.mubr.f32.mxu0 0.0
    %120 = vmatmul.mubr.f32.gmra.mrb[0].mxu0 %v42
    %v121 = vpop.f32.mrb[0].mxu0
    %v122 = vadd.f32 0.0, %v121
    %v123 = vpop.f32.mrb[0].mxu0
    %124 = vmatprep.mubr.f32.mxu0 0.0
    %125 = vmatmul.mubr.f32.gmra.mrb[0].mxu0 %v45
    %v126 = vpop.f32.mrb[0].mxu0
    %v127 = vadd.f32 0.0, %v126
    %v128 = vpop.f32.mrb[0].mxu0
    %129 = vmatprep.mubr.f32.mxu0 0.0
    %130 = vmatmul.mubr.f32.gmra.mrb[0].mxu0 %v48
    %v131 = vpop.f32.mrb[0].mxu0
    %v132 = vadd.f32 0.0, %v131
    %v133 = vpop.f32.mrb[0].mxu0
    %134 = vdwg.mxu0
    %v135 = vld [vmem:[%s1] sm:$0xf]
    %v138 = vunpack.c.l.s4 1966171168
    %v139 = vunpack.c.0.s8 %v138
    %v140 = vlaneseq
    %v141 = vshrl.u32 %v140, 7
    %v142 = vsub.s32 %v139, %v141
    %v143 = vrot.slane %v135, %v142
    %v144 = vcombine.high %v143, %v143
    %v146 = vunpack.c.l.s4 1966171168
    %v147 = vunpack.c.0.s8 %v146
    %v148 = vlaneseq
    %v149 = vshrl.u32 %v148, 7
    %v150 = vsub.s32 %v147, %v149
    %v151 = vrot.slane %v143, %v150
    %v153 = vunpack.c.l.s4 1966171168
    %v154 = vunpack.c.0.s8 %v153
    %v155 = vlaneseq
    %v156 = vshrl.u32 %v155, 7
    %v157 = vsub.s32 %v154, %v156
    %v158 = vrot.slane %v144, %v157
    %v159 = vcombine.high %v151, %v151
    %v160 = vcombine.high %v158, %v158
    %v161 = vlaneseq
    %v162 = vshrl.u32 %v161, 7
    %v163 = vsub.s32 0, %v162
    %v164 = vrot.slane %v151, %v163
    %v165 = vlaneseq
    %v166 = vshrl.u32 %v165, 7
    %v167 = vsub.s32 0, %v166
    %v168 = vrot.slane %v158, %v167
    %v169 = vlaneseq
    %v170 = vshrl.u32 %v169, 7
    %v171 = vsub.s32 0, %v170
    %v172 = vrot.slane %v159, %v171
    %v173 = vlaneseq
    %v174 = vshrl.u32 %v173, 7
    %v175 = vsub.s32 0, %v174
    %v176 = vrot.slane %v160, %v175
    %v181 = vmul.f32 %v117, %v164
    %v182 = vmul.f32 %v122, %v168
    %v183 = vmul.f32 %v127, %v172
    %v184 = vmul.f32 %v132, %v176
    %v185 = vld [vmem:[%s4] sm:$0xff]
    %v186 = vld [vmem:[%s4 + $0x8] sm:$0xff]
    %v187 = vld [vmem:[%s4 + $0x10] sm:$0xff]
    %v188 = vld [vmem:[%s4 + $0x18] sm:$0xff]
    %v189 = vld [vmem:[%s4 + $0x20] sm:$0xff]
    %v190 = vld [vmem:[%s4 + $0x28] sm:$0xff]
    %v191 = vld [vmem:[%s4 + $0x30] sm:$0xff]
    %v192 = vld [vmem:[%s4 + $0x38] sm:$0xff]
    %v194 = vsel %vm37, %v181, 0
    %v197 = vsel %vm37, %v182, 0
    %v200 = vsel %vm37, %v183, 0
    %v203 = vsel %vm37, %v184, 0
    %205 = vmatprep.subr.mxu0 0.0
    %206 = vmatpush1.msra.mxu0 %v189
    %207 = vmatprep.subr.mxu0 0.0
    %208 = vmatpush1.msra.mxu0 %v190
    %209 = vmatprep.subr.mxu0 0.0
    %210 = vmatpush1.msra.mxu0 %v191
    %211 = vmatprep.subr.mxu0 0.0
    %212 = vmatpush1.msra.mxu0 %v192
    %213 = vmatprep.subr.mxu0 0.0
    %214 = vmatpush1.msra.mxu0 0.0
    %215 = vmatprep.subr.mxu0 0.0
    %216 = vmatpush1.msra.mxu0 0.0
    %217 = vmatprep.subr.mxu0 0.0
    %218 = vmatpush1.msra.mxu0 0.0
    %219 = vmatprep.subr.mxu0 0.0
    %220 = vmatpush1.msra.mxu0 0.0
    %221 = vmatprep.subr.mxu0 0.0
    %222 = vmatpush1.msra.mxu0 0.0
    %223 = vmatprep.subr.mxu0 0.0
    %224 = vmatpush1.msra.mxu0 0.0
    %225 = vmatprep.subr.mxu0 0.0
    %226 = vmatpush1.msra.mxu0 0.0
    %227 = vmatprep.subr.mxu0 0.0
    %228 = vmatpush1.msra.mxu0 0.0
    %229 = vmatprep.subr.mxu0 0.0
    %230 = vmatpush1.msra.mxu0 0.0
    %231 = vmatprep.subr.mxu0 0.0
    %232 = vmatpush1.msra.mxu0 0.0
    %233 = vmatprep.subr.mxu0 0.0
    %234 = vmatpush1.msra.mxu0 0.0
    %235 = vmatprep.subr.mxu0 0.0
    %236 = vmatpush1.msra.mxu0 0.0
    %237 = vmatprep.subr.mxu0 0.0
    %238 = vmatpush1.msra.mxu0 0.0
    %239 = vmatprep.subr.mxu0 0.0
    %240 = vmatpush1.msra.mxu0 0.0
    %241 = vmatprep.subr.mxu0 0.0
    %242 = vmatpush1.msra.mxu0 0.0
    %243 = vmatprep.subr.mxu0 0.0
    %244 = vmatpush1.msra.mxu0 0.0
    %245 = vmatprep.subr.mxu0 0.0
    %246 = vmatpush1.msra.mxu0 0.0
    %247 = vmatprep.subr.mxu0 0.0
    %248 = vmatpush1.msra.mxu0 0.0
    %249 = vmatprep.subr.mxu0 0.0
    %250 = vmatpush1.msra.mxu0 0.0
    %251 = vmatprep.subr.mxu0 0.0
    %252 = vmatpush1.msra.mxu0 0.0
    %253 = vmatprep.subr.mxu0 0.0
    %254 = vmatpush1.msra.mxu0 0.0
    %255 = vmatprep.subr.mxu0 0.0
    %256 = vmatpush1.msra.mxu0 0.0
    %257 = vmatprep.subr.mxu0 0.0
    %258 = vmatpush1.msra.mxu0 0.0
    %259 = vmatprep.subr.mxu0 0.0
    %260 = vmatpush1.msra.mxu0 0.0
    %261 = vmatprep.subr.mxu0 0.0
    %262 = vmatpush1.msra.mxu0 0.0
    %263 = vmatprep.subr.mxu0 0.0
    %264 = vmatpush1.msra.mxu0 0.0
    %265 = vmatprep.subr.mxu0 0.0
    %266 = vmatpush1.msra.mxu0 0.0
    %267 = vmatprep.subr.mxu0 0.0
    %268 = vmatpush1.msra.mxu0 0.0
    %269 = vmatprep.mubr.f32.mxu0 0.0
    %270 = vmatmul.mubr.f32.gmra.mrb[0].mxu0 %v194
    %v271 = vpop.f32.mrb[0].mxu0
    %v272 = vadd.f32 0.0, %v271
    %v273 = vpop.f32.mrb[0].mxu0
    %274 = vmatprep.mubr.f32.mxu0 0.0
    %275 = vmatmul.mubr.f32.gmra.mrb[0].mxu0 %v197
    %v276 = vpop.f32.mrb[0].mxu0
    %v277 = vadd.f32 0.0, %v276
    %v278 = vpop.f32.mrb[0].mxu0
    %279 = vmatprep.mubr.f32.mxu0 0.0
    %280 = vmatmul.mubr.f32.gmra.mrb[0].mxu0 %v200
    %v281 = vpop.f32.mrb[0].mxu0
    %v282 = vadd.f32 0.0, %v281
    %v283 = vpop.f32.mrb[0].mxu0
    %284 = vmatprep.mubr.f32.mxu0 0.0
    %285 = vmatmul.mubr.f32.gmra.mrb[0].mxu0 %v203
    %v286 = vpop.f32.mrb[0].mxu0
    %v287 = vadd.f32 0.0, %v286
    %v288 = vpop.f32.mrb[0].mxu0
    %289 = vdwg.mxu0
    %v291 = vsel %vm37, %v117, 0
    %v294 = vsel %vm37, %v122, 0
    %v297 = vsel %vm37, %v127, 0
    %v300 = vsel %vm37, %v132, 0
    %302 = vmatprep.subr.mxu0 0.0
    %303 = vmatpush1.msra.mxu0 %v185
    %304 = vmatprep.subr.mxu0 0.0
    %305 = vmatpush1.msra.mxu0 %v186
    %306 = vmatprep.subr.mxu0 0.0
    %307 = vmatpush1.msra.mxu0 %v187
    %308 = vmatprep.subr.mxu0 0.0
    %309 = vmatpush1.msra.mxu0 %v188
    %310 = vmatprep.subr.mxu0 0.0
    %311 = vmatpush1.msra.mxu0 0.0
    %312 = vmatprep.subr.mxu0 0.0
    %313 = vmatpush1.msra.mxu0 0.0
    %314 = vmatprep.subr.mxu0 0.0
    %315 = vmatpush1.msra.mxu0 0.0
    %316 = vmatprep.subr.mxu0 0.0
    %317 = vmatpush1.msra.mxu0 0.0
    %318 = vmatprep.subr.mxu0 0.0
    %319 = vmatpush1.msra.mxu0 0.0
    %320 = vmatprep.subr.mxu0 0.0
    %321 = vmatpush1.msra.mxu0 0.0
    %322 = vmatprep.subr.mxu0 0.0
    %323 = vmatpush1.msra.mxu0 0.0
    %324 = vmatprep.subr.mxu0 0.0
    %325 = vmatpush1.msra.mxu0 0.0
    %326 = vmatprep.subr.mxu0 0.0
    %327 = vmatpush1.msra.mxu0 0.0
    %328 = vmatprep.subr.mxu0 0.0
    %329 = vmatpush1.msra.mxu0 0.0
    %330 = vmatprep.subr.mxu0 0.0
    %331 = vmatpush1.msra.mxu0 0.0
    %332 = vmatprep.subr.mxu0 0.0
    %333 = vmatpush1.msra.mxu0 0.0
    %334 = vmatprep.subr.mxu0 0.0
    %335 = vmatpush1.msra.mxu0 0.0
    %336 = vmatprep.subr.mxu0 0.0
    %337 = vmatpush1.msra.mxu0 0.0
    %338 = vmatprep.subr.mxu0 0.0
    %339 = vmatpush1.msra.mxu0 0.0
    %340 = vmatprep.subr.mxu0 0.0
    %341 = vmatpush1.msra.mxu0 0.0
    %342 = vmatprep.subr.mxu0 0.0
    %343 = vmatpush1.msra.mxu0 0.0
    %344 = vmatprep.subr.mxu0 0.0
    %345 = vmatpush1.msra.mxu0 0.0
    %346 = vmatprep.subr.mxu0 0.0
    %347 = vmatpush1.msra.mxu0 0.0
    %348 = vmatprep.subr.mxu0 0.0
    %349 = vmatpush1.msra.mxu0 0.0
    %350 = vmatprep.subr.mxu0 0.0
    %351 = vmatpush1.msra.mxu0 0.0
    %352 = vmatprep.subr.mxu0 0.0
    %353 = vmatpush1.msra.mxu0 0.0
    %354 = vmatprep.subr.mxu0 0.0
    %355 = vmatpush1.msra.mxu0 0.0
    %356 = vmatprep.subr.mxu0 0.0
    %357 = vmatpush1.msra.mxu0 0.0
    %358 = vmatprep.subr.mxu0 0.0
    %359 = vmatpush1.msra.mxu0 0.0
    %360 = vmatprep.subr.mxu0 0.0
    %361 = vmatpush1.msra.mxu0 0.0
    %362 = vmatprep.subr.mxu0 0.0
    %363 = vmatpush1.msra.mxu0 0.0
    %364 = vmatprep.subr.mxu0 0.0
    %365 = vmatpush1.msra.mxu0 0.0
    %366 = vmatprep.mubr.f32.mxu0 0.0
    %367 = vmatmul.mubr.f32.gmra.mrb[0].mxu0 %v291
    %v368 = vpop.f32.mrb[0].mxu0
    %v369 = vadd.f32 %v272, %v368
    %v370 = vpop.f32.mrb[0].mxu0
    %371 = vmatprep.mubr.f32.mxu0 0.0
    %372 = vmatmul.mubr.f32.gmra.mrb[0].mxu0 %v294
    %v373 = vpop.f32.mrb[0].mxu0
    %v374 = vadd.f32 %v277, %v373
    %v375 = vpop.f32.mrb[0].mxu0
    %376 = vmatprep.mubr.f32.mxu0 0.0
    %377 = vmatmul.mubr.f32.gmra.mrb[0].mxu0 %v297
    %v378 = vpop.f32.mrb[0].mxu0
    %v379 = vadd.f32 %v282, %v378
    %v380 = vpop.f32.mrb[0].mxu0
    %381 = vmatprep.mubr.f32.mxu0 0.0
    %382 = vmatmul.mubr.f32.gmra.mrb[0].mxu0 %v300
    %v383 = vpop.f32.mrb[0].mxu0
    %v384 = vadd.f32 %v287, %v383
    %v385 = vpop.f32.mrb[0].mxu0
    %386 = vdwg.mxu0
    %v387 = vld [vmem:[%s2] sm:$0xf]
    %v390 = vunpack.c.l.s4 1966171168
    %v391 = vunpack.c.0.s8 %v390
    %v392 = vlaneseq
    %v393 = vshrl.u32 %v392, 7
    %v394 = vsub.s32 %v391, %v393
    %v395 = vrot.slane %v387, %v394
    %v396 = vcombine.high %v395, %v395
    %v398 = vunpack.c.l.s4 1966171168
    %v399 = vunpack.c.0.s8 %v398
    %v400 = vlaneseq
    %v401 = vshrl.u32 %v400, 7
    %v402 = vsub.s32 %v399, %v401
    %v403 = vrot.slane %v395, %v402
    %v405 = vunpack.c.l.s4 1966171168
    %v406 = vunpack.c.0.s8 %v405
    %v407 = vlaneseq
    %v408 = vshrl.u32 %v407, 7
    %v409 = vsub.s32 %v406, %v408
    %v410 = vrot.slane %v396, %v409
    %v411 = vcombine.high %v403, %v403
    %v412 = vcombine.high %v410, %v410
    %v413 = vlaneseq
    %v414 = vshrl.u32 %v413, 7
    %v415 = vsub.s32 0, %v414
    %v416 = vrot.slane %v403, %v415
    %v417 = vlaneseq
    %v418 = vshrl.u32 %v417, 7
    %v419 = vsub.s32 0, %v418
    %v420 = vrot.slane %v410, %v419
    %v421 = vlaneseq
    %v422 = vshrl.u32 %v421, 7
    %v423 = vsub.s32 0, %v422
    %v424 = vrot.slane %v411, %v423
    %v425 = vlaneseq
    %v426 = vshrl.u32 %v425, 7
    %v427 = vsub.s32 0, %v426
    %v428 = vrot.slane %v412, %v427
    %v433 = vadd.f32 %v369, %v416
    %v434 = vadd.f32 %v374, %v420
    %v435 = vadd.f32 %v379, %v424
    %v436 = vadd.f32 %v384, %v428
    %v437 = vmax.f32 %v433, 0.0
    %v438 = vmax.f32 %v434, 0.0
    %v439 = vmax.f32 %v435, 0.0
    %v440 = vmax.f32 %v436, 0.0
    %v441 = vld [vmem:[%s5] sm:$0x1]
    %v443 = vlaneseq
    %v444 = vshrl.u32 %v443, 7
    %v445 = vsub.s32 0, %v444
    %v446 = vrot.slane %v441, %v445
    %v448 = vmul.f32 %v437, %v446
    %v449 = vmul.f32 %v438, %v446
    %v450 = vmul.f32 %v439, %v446
    %v451 = vmul.f32 %v440, %v446
    %v452 = vsel %vm37, %v448, 0.0
    %453 = vadd.xlane.f32.xlu0 %v452
    %v454 = vpop.xlane.xlu0 %453
    %v455 = vsel %vm37, %v449, 0.0
    %456 = vadd.xlane.f32.xlu0 %v455
    %v457 = vpop.xlane.xlu0 %456
    %v458 = vsel %vm37, %v450, 0.0
    %459 = vadd.xlane.f32.xlu0 %v458
    %v460 = vpop.xlane.xlu0 %459
    %v461 = vsel %vm37, %v451, 0.0
    %462 = vadd.xlane.f32.xlu0 %v461
    %v463 = vpop.xlane.xlu0 %462
    %v464 = vld [vmem:[#allocation2] sm:$0x1]
    %v466 = vlaneseq
    %v467 = vshrl.u32 %v466, 7
    %v468 = vsub.s32 0, %v467
    %v469 = vrot.slane %v464, %v468
    %470 = vset.pattern.permute.xlu0 0
    %471 = vperm.xlu0 %470, %v469
    %v472 = vpop.permute.xlu0 %471
    %v474 = vadd.f32 %v454, %v472
    %v475 = vadd.f32 %v457, %v472
    %v476 = vadd.f32 %v460, %v472
    %v477 = vadd.f32 %v463, %v472
    %v482 = vlaneseq
    %v483 = vand.u32 %v482, 127
    %v484 = vlaneseq
    %v485 = vshrl.u32 %v484, 7
    %v486 = vsub.s32 %v483, %v485
    %v487 = vrot.slane %v474, %v486
    %v488 = vlaneseq
    %v489 = vshrl.u32 %v488, 7
    %v490 = vsub.s32 %v483, %v489
    %v491 = vrot.slane %v475, %v490
    %v492 = vlaneseq
    %v493 = vshrl.u32 %v492, 7
    %v494 = vsub.s32 %v483, %v493
    %v495 = vrot.slane %v476, %v494
    %v496 = vlaneseq
    %v497 = vshrl.u32 %v496, 7
    %v498 = vsub.s32 %v483, %v497
    %v499 = vrot.slane %v477, %v498
    %vm500 = vcmask 1041409
    %v501 = vsel %vm500, %v491, %v487
    %vm502 = vcmask 1042434
    %v503 = vsel %vm502, %v495, %v501
    %vm504 = vcmask 1043459
    %v505 = vsel %vm504, %v499, %v503
    %vm507 = vcmask 60416
    %v508 = vsel %vm507, %v505, -inf
    %509 = vmax.xlane.f32.xlu0 %v508
    %v510 = vpop.xlane.xlu0 %509
    %v512 = vlaneseq
    %v513 = vshrl.u32 %v512, 7
    %v514 = vsub.s32 0, %v513
    %v515 = vrot.slane %v510, %v514
    %v516 = vlaneseq
    %v517 = vshrl.u32 %v516, 7
    %v518 = vsub.s32 1, %v517
    %v519 = vrot.slane %v510, %v518
    %v520 = vlaneseq
    %v521 = vshrl.u32 %v520, 7
    %v522 = vsub.s32 2, %v521
    %v523 = vrot.slane %v510, %v522
    %v524 = vlaneseq
    %v525 = vshrl.u32 %v524, 7
    %v526 = vsub.s32 3, %v525
    %v527 = vrot.slane %v510, %v526
    %v532 = vsub.f32 %v474, %v515
    %v533 = vsub.f32 %v475, %v519
    %v534 = vsub.f32 %v476, %v523
    %v535 = vsub.f32 %v477, %v527
    %v536 = vmul.f32 %v532, 1.442695
    %v537 = vpow.pop %v536
    %v538 = vmul.f32 %v533, 1.442695
    %v539 = vpow.pop %v538
    %v540 = vmul.f32 %v534, 1.442695
    %v541 = vpow.pop %v540
    %v542 = vmul.f32 %v535, 1.442695
    %v543 = vpow.pop %v542
    %548 = vset.pattern.permute.xlu0 0
    %549 = vperm.xlu0 %548, %v537
    %v550 = vpop.permute.xlu0 %549
    %551 = vset.pattern.permute.xlu0 0
    %552 = vperm.xlu0 %551, %v539
    %v553 = vpop.permute.xlu0 %552
    %554 = vset.pattern.permute.xlu0 0
    %555 = vperm.xlu0 %554, %v541
    %v556 = vpop.permute.xlu0 %555
    %557 = vset.pattern.permute.xlu0 0
    %558 = vperm.xlu0 %557, %v543
    %v559 = vpop.permute.xlu0 %558
    %v560 = vlaneseq
    %v561 = vshrl.u32 %v560, 7
    %v562 = vsub.s32 %v483, %v561
    %v563 = vrot.slane %v550, %v562
    %v564 = vlaneseq
    %v565 = vshrl.u32 %v564, 7
    %v566 = vsub.s32 %v483, %v565
    %v567 = vrot.slane %v553, %v566
    %v568 = vlaneseq
    %v569 = vshrl.u32 %v568, 7
    %v570 = vsub.s32 %v483, %v569
    %v571 = vrot.slane %v556, %v570
    %v572 = vlaneseq
    %v573 = vshrl.u32 %v572, 7
    %v574 = vsub.s32 %v483, %v573
    %v575 = vrot.slane %v559, %v574
    %v576 = vsel %vm500, %v567, %v563
    %v577 = vsel %vm502, %v571, %v576
    %v578 = vsel %vm504, %v575, %v577
    %v580 = vsel %vm507, %v578, 0.0
    %581 = vadd.xlane.f32.xlu0 %v580
    %v582 = vpop.xlane.xlu0 %581
    %v584 = vlaneseq
    %v585 = vshrl.u32 %v584, 7
    %v586 = vsub.s32 0, %v585
    %v587 = vrot.slane %v582, %v586
    %v588 = vlaneseq
    %v589 = vshrl.u32 %v588, 7
    %v590 = vsub.s32 1, %v589
    %v591 = vrot.slane %v582, %v590
    %v592 = vlaneseq
    %v593 = vshrl.u32 %v592, 7
    %v594 = vsub.s32 2, %v593
    %v595 = vrot.slane %v582, %v594
    %v596 = vlaneseq
    %v597 = vshrl.u32 %v596, 7
    %v598 = vsub.s32 3, %v597
    %v599 = vrot.slane %v582, %v598
    %v604 = vrcp.pop %v587
    %v605 = vmul.f32 %v537, %v604
    %v606 = vrcp.pop %v591
    %v607 = vmul.f32 %v539, %v606
    %v608 = vrcp.pop %v595
    %v609 = vmul.f32 %v541, %v608
    %v610 = vrcp.pop %v599
    %v611 = vmul.f32 %v543, %v610
    %613 = vset.pattern.permute.xlu0 0
    %614 = vperm.xlu0 %613, %v605
    %v615 = vpop.permute.xlu0 %614
    %618 = vset.pattern.permute.xlu0 0
    %619 = vperm.xlu0 %618, %v607
    %v620 = vpop.permute.xlu0 %619
    %623 = vset.pattern.permute.xlu0 0
    %624 = vperm.xlu0 %623, %v609
    %v625 = vpop.permute.xlu0 %624
    %628 = vset.pattern.permute.xlu0 0
    %629 = vperm.xlu0 %628, %v611
    %v630 = vpop.permute.xlu0 %629
    %v632 = vmul.f32 %v615, %v29
    %v633 = vmul.f32 %v620, %v30
    %v634 = vmul.f32 %v625, %v31
    %v635 = vmul.f32 %v630, %v32
    %v636 = vsel %vm37, %v632, 0.0
    %v637 = vrot.slane %v636, 4
    %v638 = vadd.f32 %v636, %v637
    %v639 = vrot.slane %v638, 2
    %v640 = vadd.f32 %v638, %v639
    %v641 = vrot.slane %v640, 1
    %v642 = vadd.f32 %v640, %v641
    %v643 = vsel %vm37, %v633, 0.0
    %v644 = vrot.slane %v643, 4
    %v645 = vadd.f32 %v643, %v644
    %v646 = vrot.slane %v645, 2
    %v647 = vadd.f32 %v645, %v646
    %v648 = vrot.slane %v647, 1
    %v649 = vadd.f32 %v647, %v648
    %v650 = vsel %vm37, %v634, 0.0
    %v651 = vrot.slane %v650, 4
    %v652 = vadd.f32 %v650, %v651
    %v653 = vrot.slane %v652, 2
    %v654 = vadd.f32 %v652, %v653
    %v655 = vrot.slane %v654, 1
    %v656 = vadd.f32 %v654, %v655
    %v657 = vsel %vm37, %v635, 0.0
    %v658 = vrot.slane %v657, 4
    %v659 = vadd.f32 %v657, %v658
    %v660 = vrot.slane %v659, 2
    %v661 = vadd.f32 %v659, %v660
    %v662 = vrot.slane %v661, 1
    %v663 = vadd.f32 %v661, %v662
    %v668 = vsel %vm500, %v649, %v642
    %v669 = vsel %vm502, %v656, %v668
    %v670 = vsel %vm504, %v663, %v669
    %vm672 = vcmask 257024
    %673 = vst.msk [vmem:[#allocation3] sm:$0xf] %vm672, %v670
    // Predicated region
    $region30: #{tpu_custom_call.1} parent=1 // pred_check
      _
    $region31: #{tpu_custom_call.1} parent=1 // pred_check_branch
      %675 = sbr.rel (0) target = $region33
    $region32: #{tpu_custom_call.1} parent=1 // pred_region
      %s677 = ssub.s32 64, 64
      %678 = vsyncadd [#allocation4], %s677
      %s680 = sshll.u32 [#allocation3], 4
      %s681 = int_to_ptr.vmem [resolvable:$true] %s680
      %683 = dma.vmem_to_hbm [thread:$0]  %s681, 64, %s7, [#allocation4]
    $region33: #{tpu_custom_call.1} parent=1 // pred_fallthru
      _
    // Predicated region
    $region34: #{tpu_custom_call.1} parent=1 // pred_check
      _
    $region35: #{tpu_custom_call.1} parent=1 // pred_check_branch
      %685 = sbr.rel (0) target = $region37
    $region36: #{tpu_custom_call.1} parent=1 // pred_region
      %686 = dma.done [#allocation4], 64
    $region37: #{tpu_custom_call.1} parent=1 // pred_fallthru
      _
    %687 = vsyncpa [#allocation4], 1

</llo_original>
